<compile_context>
chip_gen: v7x
topology: tpu7x:2x2x1
jax: 0.10.0
libtpu: 0.0.40
codegen_flags: <defaults>
</compile_context>

<pallas_src>
import functools

import jax
import jax.numpy as jnp
from jax.experimental import pallas as pl
from jax.experimental.pallas import tpu as pltpu

_SQRT_2_OVER_PI = 0.7978845608028654  # sqrt(2/pi)
_INV_SQRT_2 = 0.7071067811865476      # 1/sqrt(2)

_LANES = 128                          # lane-dense last dim (one vreg width)
_TARGET_BLOCK_BYTES = 4 * 1024 * 1024 # 4 MiB per block (review: 4-8 MiB)
_VMEM_LIMIT_BYTES = 40 * 1024 * 1024  # 4 blocks live (16 MiB) + headroom; < 64 MiB v7x physical
_MIN_PALLAS_ELEMENTS = 64 * 1024      # below this, launch/plumbing overhead dominates

# Scheduler-hint tables (per element); purely advisory.
_FLOPS_PER_ELEM = {"gelu_new": 8, "swish": 4, "gelu": 5, "relu": 1}
_TRANS_PER_ELEM = {"gelu_new": 1, "swish": 1, "gelu": 1, "relu": 0}


def _math_dtype(dtype, activation_type):
    """bf16 math stays native bf16 (v6e/v7x VALU/EUP); everything else f32."""
    if jnp.dtype(dtype) == jnp.bfloat16 and activation_type != "gelu":
        return jnp.bfloat16
    return jnp.float32


def _apply_activation(x, activation_type):
    """Elementwise activation in x.dtype (constants typed to match)."""
    dt = x.dtype
    if activation_type == "gelu_new":
        # 0.5 * x * (1 + tanh(sqrt(2/pi) * (x + 0.044715 * x^3)))
        # Horner form: inner = x * (c1 + c2 * x^2);  out = h + h*tanh(inner), h = 0.5*x
        c1 = jnp.asarray(_SQRT_2_OVER_PI, dt)
        c2 = jnp.asarray(_SQRT_2_OVER_PI * 0.044715, dt)
        half = jnp.asarray(0.5, dt)
        inner = x * (c1 + c2 * (x * x))
        h = half * x
        return h + h * jnp.tanh(inner)
    elif activation_type == "relu":
        return jnp.maximum(x, jnp.asarray(0, dt))
    elif activation_type == "swish":
        # x * sigmoid(x); sigmoid via tanh keeps this on the EUP slot (no divide).
        half = jnp.asarray(0.5, dt)
        one = jnp.asarray(1.0, dt)
        return x * (half * (one + jnp.tanh(half * x)))
    elif activation_type == "gelu":
        # exact (erf-based) gelu; always computed in f32 (see _math_dtype).
        half = jnp.asarray(0.5, dt)
        one = jnp.asarray(1.0, dt)
        return half * x * (one + jax.lax.erf(x * jnp.asarray(_INV_SQRT_2, dt)))
    else:
        raise ValueError(f"unsupported activation_type: {activation_type}")


def _activation_kernel(x_ref, o_ref, *, activation_type, compute_dtype):
    x = x_ref[...].astype(compute_dtype)  # no-op when input already == compute dtype
    o_ref[...] = _apply_activation(x, activation_type).astype(o_ref.dtype)


def _round_up(n, m):
    return -(-n // m) * m


def activations_forward(x, activation_type="gelu_new"):
    """Forward pass of the `Activations` module: f(x), elementwise."""
    total = x.size
    compute_dtype = _math_dtype(x.dtype, activation_type)

    # Fast/fallback path: tiny inputs (launch overhead dominates) and ragged
    # totals (size % 128 != 0) go through the fused XLA elementwise op, which
    # is a single read+write of x — already at the HBM roofline, and cheaper
    # than any pad/slice plumbing around the kernel.
    if total < _MIN_PALLAS_ELEMENTS or total % _LANES != 0:
        return _apply_activation(x.astype(compute_dtype), activation_type).astype(x.dtype)

    rows = total // _LANES
    x2d = x.reshape(rows, _LANES)  # row-major flatten: layout-preserving, no copy

    itemsize = jnp.dtype(x.dtype).itemsize
    pack = max(8, 32 // itemsize)  # sublane pack: 8 (f32) / 16 (bf16) / 32 (int8)
    max_tile_rows = max(pack, (_TARGET_BLOCK_BYTES // (_LANES * itemsize)) // pack * pack)

    # >= 2 tiles whenever we take the kernel path (feeds both v7x TCs), capped
    # at the ~4 MiB block size; tile_r is always a multiple of the sublane pack
    # so the BlockSpec satisfies the (8,128) rule (ragged edge blocks are fine).
    tile_r = min(max_tile_rows, _round_up(pl.cdiv(rows, 2), pack))
    grid = (pl.cdiv(rows, tile_r),)

    kernel = functools.partial(
        _activation_kernel,
        activation_type=activation_type,
        compute_dtype=compute_dtype,
    )

    out2d = pl.pallas_call(
        kernel,
        out_shape=jax.ShapeDtypeStruct((rows, _LANES), x.dtype),
        grid_spec=pltpu.PrefetchScalarGridSpec(
            num_scalar_prefetch=0,
            grid=grid,
            in_specs=[pl.BlockSpec((tile_r, _LANES), lambda i: (i, 0))],
            out_specs=pl.BlockSpec((tile_r, _LANES), lambda i: (i, 0)),
        ),
        compiler_params=pltpu.CompilerParams(
            # Every tile is independent -> shardable across v7x's 2 TensorCores.
            dimension_semantics=("parallel",),
            vmem_limit_bytes=_VMEM_LIMIT_BYTES,
        ),
        cost_estimate=pl.CostEstimate(
            flops=_FLOPS_PER_ELEM[activation_type] * total,
            transcendentals=_TRANS_PER_ELEM[activation_type] * total,
            bytes_accessed=2 * x.nbytes,
        ),
    )(x2d)

    return out2d.reshape(x.shape)


def _reference(x, activation_type="gelu_new"):
    return _apply_activation(x.astype(jnp.float32), activation_type).astype(x.dtype)


if __name__ == "__main__":
    key = jax.random.PRNGKey(0)
    keys = jax.random.split(key, 5)

    # 1) Primary adapter-typical input (batch=2, seq=8, hidden=32): tiny -> fused fast path.
    x0 = jax.random.normal(keys[0], (2, 8, 32), dtype=jnp.float32)
    out0 = jax.block_until_ready(activations_forward(x0, "gelu_new"))
    assert out0.shape == x0.shape and out0.dtype == x0.dtype
    assert jnp.allclose(out0, _reference(x0, "gelu_new"), atol=1e-5, rtol=1e-5), "gelu_new small mismatch"

    # 2) Pallas path, f32 gelu_new: rows=6144 -> tile_r=3072, grid=(2,) (megacore-friendly split).
    x1 = jax.random.normal(keys[1], (4, 256, 768), dtype=jnp.float32)
    out1 = jax.block_until_ready(activations_forward(x1, "gelu_new"))
    assert jnp.allclose(out1, _reference(x1, "gelu_new"), atol=1e-5, rtol=1e-5), "gelu_new pallas mismatch"

    # 3) Pallas path, multi-step pipeline: rows=32768 -> 4 MiB blocks, grid=(4,), f32 swish.
    x2 = jax.random.normal(keys[2], (4096, 1024), dtype=jnp.float32)
    out2 = jax.block_until_ready(activations_forward(x2, "swish"))
    assert jnp.allclose(out2, _reference(x2, "swish"), atol=1e-5, rtol=1e-5), "swish pallas mismatch"

    # 4) Pallas path, native-bf16 math (loose tolerance vs f32 reference).
    x3 = jax.random.normal(keys[3], (4, 256, 256), dtype=jnp.float32).astype(jnp.bfloat16)
    out3 = jax.block_until_ready(activations_forward(x3, "gelu_new"))
    ref3 = _reference(x3, "gelu_new")
    assert out3.dtype == jnp.bfloat16 and out3.shape == x3.shape
    assert jnp.allclose(out3.astype(jnp.float32), ref3.astype(jnp.float32),
                        atol=0.1, rtol=0.1), "gelu_new bf16 mismatch"

    # 5) Ragged total (not a multiple of 128): roofline-optimal fused fallback, no pad/slice.
    x4 = jax.random.normal(keys[4], (2, 8, 33), dtype=jnp.float32)
    out4 = jax.block_until_ready(activations_forward(x4, "relu"))
    assert out4.shape == x4.shape
    assert jnp.allclose(out4, _reference(x4, "relu"), atol=1e-6, rtol=1e-6), "relu ragged mismatch"

    print("KERNEL_OK")
</pallas_src>

<mosaic_0001>
module attributes {stable_mosaic.version = 11 : i64} {
  func.func @_activation_kernel(%arg0: i32, %arg1: memref<3072x128xf32, #tpu.memory_space<vmem>>, %arg2: memref<3072x128xf32, #tpu.memory_space<vmem>>) attributes {dimension_semantics = [#tpu.dimension_semantics<parallel>], iteration_bounds = array<i64: 2>, scalar_prefetch = 0 : i64, scratch_operands = 0 : i64, tpu.core_type = #tpu.core_type<tc>, window_params = [{transform_indices = @transform_0, window_bounds = array<i64: 3072, 128>}, {transform_indices = @transform_1, window_bounds = array<i64: 3072, 128>}]} {
    %c0 = arith.constant 0 : index
    %c0_0 = arith.constant 0 : index
    %0 = vector.load %arg1[%c0, %c0_0] : memref<3072x128xf32, #tpu.memory_space<vmem>>, vector<3072x128xf32>
    %1 = arith.mulf %0, %0 : vector<3072x128xf32>
    %cst = arith.constant 0.0356774069 : f32
    %2 = vector.broadcast %cst : f32 to vector<3072x128xf32>
    %3 = arith.mulf %2, %1 : vector<3072x128xf32>
    %cst_1 = arith.constant 0.797884583 : f32
    %4 = vector.broadcast %cst_1 : f32 to vector<3072x128xf32>
    %5 = arith.addf %4, %3 : vector<3072x128xf32>
    %6 = arith.mulf %0, %5 : vector<3072x128xf32>
    %cst_2 = arith.constant 5.000000e-01 : f32
    %7 = vector.broadcast %cst_2 : f32 to vector<3072x128xf32>
    %8 = arith.mulf %7, %0 : vector<3072x128xf32>
    %9 = math.tanh %6 : vector<3072x128xf32>
    %10 = arith.mulf %8, %9 : vector<3072x128xf32>
    %11 = arith.addf %8, %10 : vector<3072x128xf32>
    %c0_3 = arith.constant 0 : index
    %c0_4 = arith.constant 0 : index
    %12 = vector.load %arg2[%c0_3, %c0_4] : memref<3072x128xf32, #tpu.memory_space<vmem>>, vector<3072x128xf32>
    tpu.vector_store %arg2[%c0_3, %c0_4], %11 {strides = array<i32>} : memref<3072x128xf32, #tpu.memory_space<vmem>>, vector<3072x128xf32>,
    return
  }
  func.func @transform_0(%arg0: i32) -> (i32, i32) {
    %c0_i32 = arith.constant 0 : i32
    %c0_i32_0 = arith.constant 0 : i32
    return %arg0, %c0_i32 : i32, i32
  }
  func.func @transform_1(%arg0: i32) -> (i32, i32) {
    %c0_i32 = arith.constant 0 : i32
    %c0_i32_0 = arith.constant 0 : i32
    return %arg0, %c0_i32 : i32, i32
  }
}

</mosaic_0001>

<llo_original>
// kernel: tpu_custom_call.1
$region0: #{tpu_custom_call.1}
  #allocation0 [shape = 'u32[]', space=smem, size = 0x4, offset = 0x4, fixed_abs, tag = 'smem constant byte address 0x4 - core index']
  #allocation1 [shape = 'u32[144,128]{1,0:T(1,128)}', space=vmem, size = 0x12000, scoped, tag = 'internal scratch']
  %s0 = inlined_call_operand.hbm [shape: f32[6144,128], index: 0, kind: input, shape index: {}]
  %s1 = inlined_call_operand.hbm [shape: f32[6144,128], index: 1, kind: output, shape index: {}]
  %s2 = sld [smem:[#allocation0]]
  $region41: #{tpu_custom_call.1} parent=0
    _
  %s4 = ssub.s32 1, %s2
  %s5 = scalar_select 0, %s4, %s2
  $region1: #{tpu_custom_call.1} parent=0
    #allocation2 [shape = 'u8[3145728]{0}', space=vmem, size = 0x300000, scoped, tag = 'input window, operand 0']
    #allocation3 [shape = 's32[2]{0}', space=sflag, size = 0x8, scoped, tag = 'scoped memory for tpu_custom_call.1']
    #allocation4 [shape = 's32[2]{0}', space=sflag, size = 0x8, scoped, tag = 'scoped memory for tpu_custom_call.1']
    #allocation5 [shape = 'u8[3145728]{0}', space=vmem, size = 0x300000, scoped, tag = 'output window, operand 0']
    %6 = vsyncpa [#allocation3], 0
    %s7 = scalar_lea.sflag [#allocation3], 1
    %8 = vsyncpa %s7, 0
    %9 = vsyncpa [#allocation4], 0
    %s10 = scalar_lea.sflag [#allocation4], 1
    %11 = vsyncpa %s10, 0
    loop: start=0, step=1, limit=4
    $region2: #{tpu_custom_call.1} parent=1 // loop_pre_header
      _
    $region3: #{tpu_custom_call.1} parent=1 // loop_header
      %s13 = sphi 0, %s17
      %p14 = scmp.ge.s32.totalorder %s13, 4
      %s23 = sphi 0, %s25
      %s26 = sphi 0, %s23
      %s27 = sphi 0, %s26
      %s43 = sphi 0, %s27
      %s49 = sphi 0, %s51
      %s52 = sphi 0, %s49
      %s53 = sphi 0, %s52
      %s69 = sphi 0, %s53
    $region4: #{tpu_custom_call.1} parent=1 // loop_header_branch
      %16 = sbr.rel (%p14) target = $region8
    $region5: #{tpu_custom_call.1} parent=1 // loop_body
      %s18 = ssub.s32 %s13, 1
      %s19 = ssub.s32 %s13, 2
      %s20 = sadd.s32 %s13, 1
      %s21 = ssub.s32 %s13, %s20
      %p22 = scmp.eq.s32.totalorder %s21, 0
      %s24 = sadd.s32 %s23, 1
      %s25 = scalar_select %p22, %s23, %s24
      %p28 = pneg %p22
      %p29 = scmp.eq.s32.totalorder %s13, 1
      %p30 = por %p28, %p29
      %p31 = scmp.ne.s32.totalorder %s23, %s26
      %p32 = scmp.eq.s32.totalorder %s13, 0
      %p33 = por %p31, %p32
      %p34 = scmp.ne.s32.totalorder %s23, %s26
      %p35 = scmp.eq.s32.totalorder %s18, 1
      %p36 = por %p34, %p35
      %p37 = scmp.ne.s32.totalorder %s26, %s27
      %p38 = scmp.eq.s32.totalorder %s18, 0
      %p39 = por %p37, %p38
      %p40 = scmp.ne.s32.totalorder %s26, %s27
      %p41 = scmp.eq.s32.totalorder %s19, 1
      %p42 = por %p40, %p41
      %p44 = scmp.ne.s32.totalorder %s27, %s43
      %p45 = scmp.eq.s32.totalorder %s19, 0
      %p46 = por %p44, %p45
      %s47 = ssub.s32 %s13, %s20
      %p48 = scmp.eq.s32.totalorder %s47, 0
      %s50 = sadd.s32 %s49, 1
      %s51 = scalar_select %p48, %s49, %s50
      %p54 = pneg %p48
      %p55 = scmp.eq.s32.totalorder %s13, 1
      %p56 = por %p54, %p55
      %p57 = scmp.ne.s32.totalorder %s49, %s52
      %p58 = scmp.eq.s32.totalorder %s13, 0
      %p59 = por %p57, %p58
      %p60 = scmp.ne.s32.totalorder %s49, %s52
      %p61 = scmp.eq.s32.totalorder %s18, 1
      %p62 = por %p60, %p61
      %p63 = scmp.ne.s32.totalorder %s52, %s53
      %p64 = scmp.eq.s32.totalorder %s18, 0
      %p65 = por %p63, %p64
      %p66 = scmp.ne.s32.totalorder %s52, %s53
      %p67 = scmp.eq.s32.totalorder %s19, 1
      %p68 = por %p66, %p67
      %p70 = scmp.ne.s32.totalorder %s53, %s69
      %p71 = scmp.eq.s32.totalorder %s19, 0
      %p72 = por %p70, %p71
      %p73 = scmp.le.s32.totalorder 1, %s13
      %p74 = scmp.lt.s32.totalorder %s13, 3
      %p75 = pnand %p73, %p74
      %p76 = pneg %p75
      // Predicated region
      $region9: #{tpu_custom_call.1} parent=5 // pred_check
        _
      $region10: #{tpu_custom_call.1} parent=5 // pred_check_branch
        %78 = sbr.rel (%p75) target = $region12
      $region11: #{tpu_custom_call.1} parent=5 // pred_region
        %s79 = ssub.s32 %s13, 1
      $region12: #{tpu_custom_call.1} parent=5 // pred_fallthru
        _
      %p80 = scmp.lt.s32.totalorder %s13, 2
      // Predicated region
      $region13: #{tpu_custom_call.1} parent=5 // pred_check
        %p81 = pneg %p80
      $region14: #{tpu_custom_call.1} parent=5 // pred_check_branch
        %83 = sbr.rel (%p81) target = $region16
      $region15: #{tpu_custom_call.1} parent=5 // pred_region
        // Predicated region
        $region17: #{tpu_custom_call.1} parent=15 // pred_check
          %p84 = pneg %p33
        $region18: #{tpu_custom_call.1} parent=15 // pred_check_branch
          %86 = sbr.rel (%p84) target = $region20
        $region19: #{tpu_custom_call.1} parent=15 // pred_region
          %s87 = sand.u32 %s23, 1
          %s88 = scalar_lea.sflag [#allocation3], %s87
          %s89 = sand.u32 %s23, 1
          %s90 = smul.addr %s89, 3072
          %s91 = scalar_lea.vmem [#allocation2], %s90
          %s92 = smul.u32 384, %s13
          %s94 = ssub.s32 49152, 49152
          %95 = vsyncadd %s88, %s94
          %s96 = smul.addr %s92, 128
          %s97 = scalar_lea.hbm %s0, %s96
          %s98 = sshll.u32 %s91, 4
          %s99 = int_to_ptr.vmem [resolvable:$true] %s98
          %104 = dma.hbm_to_vmem [thread:$0]  %s97, 49152, %s99, %s88, 128, 128, 8
        $region20: #{tpu_custom_call.1} parent=15 // pred_fallthru
          _
      $region16: #{tpu_custom_call.1} parent=5 // pred_fallthru
        _
      %p105 = scmp.le.s32.totalorder 1, %s13
      %p106 = scmp.lt.s32.totalorder %s13, 3
      %p107 = pnand %p105, %p106
      %p108 = pneg %p107
      // Predicated region
      $region21: #{tpu_custom_call.1} parent=5 // pred_check
        _
      $region22: #{tpu_custom_call.1} parent=5 // pred_check_branch
        %110 = sbr.rel (%p107) target = $region24
      $region23: #{tpu_custom_call.1} parent=5 // pred_region
        %s111 = ssub.s32 %s13, 1
        %s112 = sand.u32 %s26, 1
        %s113 = scalar_lea.sflag [#allocation3], %s112
        %s114 = sand.u32 %s26, 1
        %s115 = smul.addr %s114, 3072
        %s116 = scalar_lea.vmem [#allocation2], %s115
        // Predicated region
        $region25: #{tpu_custom_call.1} parent=23 // pred_check
          %p117 = pneg %p39
        $region26: #{tpu_custom_call.1} parent=23 // pred_check_branch
          %119 = sbr.rel (%p117) target = $region28
        $region27: #{tpu_custom_call.1} parent=23 // pred_region
          %120 = dma.done %s113, 49152
        $region28: #{tpu_custom_call.1} parent=23 // pred_fallthru
          _
        %s121 = sand.u32 %s26, 1
        %s122 = scalar_lea.sflag [#allocation3], %s121
        %s123 = sand.u32 %s26, 1
        %s124 = smul.addr %s123, 3072
        %s125 = scalar_lea.vmem [#allocation2], %s124
        %p126 = pneg %p39
        %p127 = pneg %p36
        %p128 = pneg %p65
        %p129 = pneg %p62
        %s130 = sand.u32 %s52, 1
        %s131 = scalar_lea.sflag [#allocation4], %s130
        %s132 = sand.u32 %s52, 1
        %s133 = smul.addr %s132, 3072
        %s134 = scalar_lea.vmem [#allocation5], %s133
        %s135 = smul.u32 384, %s18
        %s136 = smul.u32 384, %s18
        %v137 = vld [vmem:[%s116] sm:$0xff]
        %v138 = vld [vmem:[%s116 + $0x8] sm:$0xff]
        %v139 = vld [vmem:[%s116 + $0x10] sm:$0xff]
        %v140 = vld [vmem:[%s116 + $0x18] sm:$0xff]
        %v141 = vld [vmem:[%s116 + $0x20] sm:$0xff]
        %v142 = vld [vmem:[%s116 + $0x28] sm:$0xff]
        %v143 = vld [vmem:[%s116 + $0x30] sm:$0xff]
        %v144 = vld [vmem:[%s116 + $0x38] sm:$0xff]
        %v145 = vld [vmem:[%s116 + $0x40] sm:$0xff]
        %v146 = vld [vmem:[%s116 + $0x48] sm:$0xff]
        %v147 = vld [vmem:[%s116 + $0x50] sm:$0xff]
        %v148 = vld [vmem:[%s116 + $0x58] sm:$0xff]
        %v149 = vld [vmem:[%s116 + $0x60] sm:$0xff]
        %v150 = vld [vmem:[%s116 + $0x68] sm:$0xff]
        %v151 = vld [vmem:[%s116 + $0x70] sm:$0xff]
        %v152 = vld [vmem:[%s116 + $0x78] sm:$0xff]
        %v153 = vld [vmem:[%s116 + $0x80] sm:$0xff]
        %v154 = vld [vmem:[%s116 + $0x88] sm:$0xff]
        %v155 = vld [vmem:[%s116 + $0x90] sm:$0xff]
        %v156 = vld [vmem:[%s116 + $0x98] sm:$0xff]
        %v157 = vld [vmem:[%s116 + $0xa0] sm:$0xff]
        %v158 = vld [vmem:[%s116 + $0xa8] sm:$0xff]
        %v159 = vld [vmem:[%s116 + $0xb0] sm:$0xff]
        %v160 = vld [vmem:[%s116 + $0xb8] sm:$0xff]
        %v161 = vld [vmem:[%s116 + $0xc0] sm:$0xff]
        %v162 = vld [vmem:[%s116 + $0xc8] sm:$0xff]
        %v163 = vld [vmem:[%s116 + $0xd0] sm:$0xff]
        %v164 = vld [vmem:[%s116 + $0xd8] sm:$0xff]
        %v165 = vld [vmem:[%s116 + $0xe0] sm:$0xff]
        %v166 = vld [vmem:[%s116 + $0xe8] sm:$0xff]
        %v167 = vld [vmem:[%s116 + $0xf0] sm:$0xff]
        %v168 = vld [vmem:[%s116 + $0xf8] sm:$0xff]
        %v169 = vld [vmem:[%s116 + $0x100] sm:$0xff]
        %v170 = vld [vmem:[%s116 + $0x108] sm:$0xff]
        %v171 = vld [vmem:[%s116 + $0x110] sm:$0xff]
        %v172 = vld [vmem:[%s116 + $0x118] sm:$0xff]
        %v173 = vld [vmem:[%s116 + $0x120] sm:$0xff]
        %v174 = vld [vmem:[%s116 + $0x128] sm:$0xff]
        %v175 = vld [vmem:[%s116 + $0x130] sm:$0xff]
        %v176 = vld [vmem:[%s116 + $0x138] sm:$0xff]
        %v177 = vld [vmem:[%s116 + $0x140] sm:$0xff]
        %v178 = vld [vmem:[%s116 + $0x148] sm:$0xff]
        %v179 = vld [vmem:[%s116 + $0x150] sm:$0xff]
        %v180 = vld [vmem:[%s116 + $0x158] sm:$0xff]
        %v181 = vld [vmem:[%s116 + $0x160] sm:$0xff]
        %v182 = vld [vmem:[%s116 + $0x168] sm:$0xff]
        %v183 = vld [vmem:[%s116 + $0x170] sm:$0xff]
        %v184 = vld [vmem:[%s116 + $0x178] sm:$0xff]
        %v185 = vld [vmem:[%s116 + $0x180] sm:$0xff]
        %v186 = vld [vmem:[%s116 + $0x188] sm:$0xff]
        %v187 = vld [vmem:[%s116 + $0x190] sm:$0xff]
        %v188 = vld [vmem:[%s116 + $0x198] sm:$0xff]
        %v189 = vld [vmem:[%s116 + $0x1a0] sm:$0xff]
        %v190 = vld [vmem:[%s116 + $0x1a8] sm:$0xff]
        %v191 = vld [vmem:[%s116 + $0x1b0] sm:$0xff]
        %v192 = vld [vmem:[%s116 + $0x1b8] sm:$0xff]
        %v193 = vld [vmem:[%s116 + $0x1c0] sm:$0xff]
        %v194 = vld [vmem:[%s116 + $0x1c8] sm:$0xff]
        %v195 = vld [vmem:[%s116 + $0x1d0] sm:$0xff]
        %v196 = vld [vmem:[%s116 + $0x1d8] sm:$0xff]
        %v197 = vld [vmem:[%s116 + $0x1e0] sm:$0xff]
        %v198 = vld [vmem:[%s116 + $0x1e8] sm:$0xff]
        %v199 = vld [vmem:[%s116 + $0x1f0] sm:$0xff]
        %v200 = vld [vmem:[%s116 + $0x1f8] sm:$0xff]
        %v201 = vld [vmem:[%s116 + $0x200] sm:$0xff]
        %v202 = vld [vmem:[%s116 + $0x208] sm:$0xff]
        %v203 = vld [vmem:[%s116 + $0x210] sm:$0xff]
        %v204 = vld [vmem:[%s116 + $0x218] sm:$0xff]
        %v205 = vld [vmem:[%s116 + $0x220] sm:$0xff]
        %v206 = vld [vmem:[%s116 + $0x228] sm:$0xff]
        %v207 = vld [vmem:[%s116 + $0x230] sm:$0xff]
        %v208 = vld [vmem:[%s116 + $0x238] sm:$0xff]
        %v209 = vld [vmem:[%s116 + $0x240] sm:$0xff]
        %v210 = vld [vmem:[%s116 + $0x248] sm:$0xff]
        %v211 = vld [vmem:[%s116 + $0x250] sm:$0xff]
        %v212 = vld [vmem:[%s116 + $0x258] sm:$0xff]
        %v213 = vld [vmem:[%s116 + $0x260] sm:$0xff]
        %v214 = vld [vmem:[%s116 + $0x268] sm:$0xff]
        %v215 = vld [vmem:[%s116 + $0x270] sm:$0xff]
        %v216 = vld [vmem:[%s116 + $0x278] sm:$0xff]
        %v217 = vld [vmem:[%s116 + $0x280] sm:$0xff]
        %v218 = vld [vmem:[%s116 + $0x288] sm:$0xff]
        %v219 = vld [vmem:[%s116 + $0x290] sm:$0xff]
        %v220 = vld [vmem:[%s116 + $0x298] sm:$0xff]
        %v221 = vld [vmem:[%s116 + $0x2a0] sm:$0xff]
        %v222 = vld [vmem:[%s116 + $0x2a8] sm:$0xff]
        %v223 = vld [vmem:[%s116 + $0x2b0] sm:$0xff]
        %v224 = vld [vmem:[%s116 + $0x2b8] sm:$0xff]
        %v225 = vld [vmem:[%s116 + $0x2c0] sm:$0xff]
        %v226 = vld [vmem:[%s116 + $0x2c8] sm:$0xff]
        %v227 = vld [vmem:[%s116 + $0x2d0] sm:$0xff]
        %v228 = vld [vmem:[%s116 + $0x2d8] sm:$0xff]
        %v229 = vld [vmem:[%s116 + $0x2e0] sm:$0xff]
        %v230 = vld [vmem:[%s116 + $0x2e8] sm:$0xff]
        %v231 = vld [vmem:[%s116 + $0x2f0] sm:$0xff]
        %v232 = vld [vmem:[%s116 + $0x2f8] sm:$0xff]
        %v233 = vld [vmem:[%s116 + $0x300] sm:$0xff]
        %v234 = vld [vmem:[%s116 + $0x308] sm:$0xff]
        %v235 = vld [vmem:[%s116 + $0x310] sm:$0xff]
        %v236 = vld [vmem:[%s116 + $0x318] sm:$0xff]
        %v237 = vld [vmem:[%s116 + $0x320] sm:$0xff]
        %v238 = vld [vmem:[%s116 + $0x328] sm:$0xff]
        %v239 = vld [vmem:[%s116 + $0x330] sm:$0xff]
        %v240 = vld [vmem:[%s116 + $0x338] sm:$0xff]
        %v241 = vld [vmem:[%s116 + $0x340] sm:$0xff]
        %v242 = vld [vmem:[%s116 + $0x348] sm:$0xff]
        %v243 = vld [vmem:[%s116 + $0x350] sm:$0xff]
        %v244 = vld [vmem:[%s116 + $0x358] sm:$0xff]
        %v245 = vld [vmem:[%s116 + $0x360] sm:$0xff]
        %v246 = vld [vmem:[%s116 + $0x368] sm:$0xff]
        %v247 = vld [vmem:[%s116 + $0x370] sm:$0xff]
        %v248 = vld [vmem:[%s116 + $0x378] sm:$0xff]
        %v249 = vld [vmem:[%s116 + $0x380] sm:$0xff]
        %v250 = vld [vmem:[%s116 + $0x388] sm:$0xff]
        %v251 = vld [vmem:[%s116 + $0x390] sm:$0xff]
        %v252 = vld [vmem:[%s116 + $0x398] sm:$0xff]
        %v253 = vld [vmem:[%s116 + $0x3a0] sm:$0xff]
        %v254 = vld [vmem:[%s116 + $0x3a8] sm:$0xff]
        %v255 = vld [vmem:[%s116 + $0x3b0] sm:$0xff]
        %v256 = vld [vmem:[%s116 + $0x3b8] sm:$0xff]
        %v257 = vld [vmem:[%s116 + $0x3c0] sm:$0xff]
        %v258 = vld [vmem:[%s116 + $0x3c8] sm:$0xff]
        %v259 = vld [vmem:[%s116 + $0x3d0] sm:$0xff]
        %v260 = vld [vmem:[%s116 + $0x3d8] sm:$0xff]
        %v261 = vld [vmem:[%s116 + $0x3e0] sm:$0xff]
        %v262 = vld [vmem:[%s116 + $0x3e8] sm:$0xff]
        %v263 = vld [vmem:[%s116 + $0x3f0] sm:$0xff]
        %v264 = vld [vmem:[%s116 + $0x3f8] sm:$0xff]
        %v265 = vld [vmem:[%s116 + $0x400] sm:$0xff]
        %v266 = vld [vmem:[%s116 + $0x408] sm:$0xff]
        %v267 = vld [vmem:[%s116 + $0x410] sm:$0xff]
        %v268 = vld [vmem:[%s116 + $0x418] sm:$0xff]
        %v269 = vld [vmem:[%s116 + $0x420] sm:$0xff]
        %v270 = vld [vmem:[%s116 + $0x428] sm:$0xff]
        %v271 = vld [vmem:[%s116 + $0x430] sm:$0xff]
        %v272 = vld [vmem:[%s116 + $0x438] sm:$0xff]
        %v273 = vld [vmem:[%s116 + $0x440] sm:$0xff]
        %v274 = vld [vmem:[%s116 + $0x448] sm:$0xff]
        %v275 = vld [vmem:[%s116 + $0x450] sm:$0xff]
        %v276 = vld [vmem:[%s116 + $0x458] sm:$0xff]
        %v277 = vld [vmem:[%s116 + $0x460] sm:$0xff]
        %v278 = vld [vmem:[%s116 + $0x468] sm:$0xff]
        %v279 = vld [vmem:[%s116 + $0x470] sm:$0xff]
        %v280 = vld [vmem:[%s116 + $0x478] sm:$0xff]
        %v281 = vld [vmem:[%s116 + $0x480] sm:$0xff]
        %v282 = vld [vmem:[%s116 + $0x488] sm:$0xff]
        %v283 = vld [vmem:[%s116 + $0x490] sm:$0xff]
        %v284 = vld [vmem:[%s116 + $0x498] sm:$0xff]
        %v285 = vld [vmem:[%s116 + $0x4a0] sm:$0xff]
        %v286 = vld [vmem:[%s116 + $0x4a8] sm:$0xff]
        %v287 = vld [vmem:[%s116 + $0x4b0] sm:$0xff]
        %v288 = vld [vmem:[%s116 + $0x4b8] sm:$0xff]
        %v289 = vld [vmem:[%s116 + $0x4c0] sm:$0xff]
        %v290 = vld [vmem:[%s116 + $0x4c8] sm:$0xff]
        %v291 = vld [vmem:[%s116 + $0x4d0] sm:$0xff]
        %v292 = vld [vmem:[%s116 + $0x4d8] sm:$0xff]
        %v293 = vld [vmem:[%s116 + $0x4e0] sm:$0xff]
        %v294 = vld [vmem:[%s116 + $0x4e8] sm:$0xff]
        %v295 = vld [vmem:[%s116 + $0x4f0] sm:$0xff]
        %v296 = vld [vmem:[%s116 + $0x4f8] sm:$0xff]
        %v297 = vld [vmem:[%s116 + $0x500] sm:$0xff]
        %v298 = vld [vmem:[%s116 + $0x508] sm:$0xff]
        %v299 = vld [vmem:[%s116 + $0x510] sm:$0xff]
        %v300 = vld [vmem:[%s116 + $0x518] sm:$0xff]
        %v301 = vld [vmem:[%s116 + $0x520] sm:$0xff]
        %v302 = vld [vmem:[%s116 + $0x528] sm:$0xff]
        %v303 = vld [vmem:[%s116 + $0x530] sm:$0xff]
        %v304 = vld [vmem:[%s116 + $0x538] sm:$0xff]
        %v305 = vld [vmem:[%s116 + $0x540] sm:$0xff]
        %v306 = vld [vmem:[%s116 + $0x548] sm:$0xff]
        %v307 = vld [vmem:[%s116 + $0x550] sm:$0xff]
        %v308 = vld [vmem:[%s116 + $0x558] sm:$0xff]
        %v309 = vld [vmem:[%s116 + $0x560] sm:$0xff]
        %v310 = vld [vmem:[%s116 + $0x568] sm:$0xff]
        %v311 = vld [vmem:[%s116 + $0x570] sm:$0xff]
        %v312 = vld [vmem:[%s116 + $0x578] sm:$0xff]
        %v313 = vld [vmem:[%s116 + $0x580] sm:$0xff]
        %v314 = vld [vmem:[%s116 + $0x588] sm:$0xff]
        %v315 = vld [vmem:[%s116 + $0x590] sm:$0xff]
        %v316 = vld [vmem:[%s116 + $0x598] sm:$0xff]
        %v317 = vld [vmem:[%s116 + $0x5a0] sm:$0xff]
        %v318 = vld [vmem:[%s116 + $0x5a8] sm:$0xff]
        %v319 = vld [vmem:[%s116 + $0x5b0] sm:$0xff]
        %v320 = vld [vmem:[%s116 + $0x5b8] sm:$0xff]
        %v321 = vld [vmem:[%s116 + $0x5c0] sm:$0xff]
        %v322 = vld [vmem:[%s116 + $0x5c8] sm:$0xff]
        %v323 = vld [vmem:[%s116 + $0x5d0] sm:$0xff]
        %v324 = vld [vmem:[%s116 + $0x5d8] sm:$0xff]
        %v325 = vld [vmem:[%s116 + $0x5e0] sm:$0xff]
        %v326 = vld [vmem:[%s116 + $0x5e8] sm:$0xff]
        %v327 = vld [vmem:[%s116 + $0x5f0] sm:$0xff]
        %v328 = vld [vmem:[%s116 + $0x5f8] sm:$0xff]
        %v329 = vld [vmem:[%s116 + $0x600] sm:$0xff]
        %v330 = vld [vmem:[%s116 + $0x608] sm:$0xff]
        %v331 = vld [vmem:[%s116 + $0x610] sm:$0xff]
        %v332 = vld [vmem:[%s116 + $0x618] sm:$0xff]
        %v333 = vld [vmem:[%s116 + $0x620] sm:$0xff]
        %v334 = vld [vmem:[%s116 + $0x628] sm:$0xff]
        %v335 = vld [vmem:[%s116 + $0x630] sm:$0xff]
        %v336 = vld [vmem:[%s116 + $0x638] sm:$0xff]
        %v337 = vld [vmem:[%s116 + $0x640] sm:$0xff]
        %v338 = vld [vmem:[%s116 + $0x648] sm:$0xff]
        %v339 = vld [vmem:[%s116 + $0x650] sm:$0xff]
        %v340 = vld [vmem:[%s116 + $0x658] sm:$0xff]
        %v341 = vld [vmem:[%s116 + $0x660] sm:$0xff]
        %v342 = vld [vmem:[%s116 + $0x668] sm:$0xff]
        %v343 = vld [vmem:[%s116 + $0x670] sm:$0xff]
        %v344 = vld [vmem:[%s116 + $0x678] sm:$0xff]
        %v345 = vld [vmem:[%s116 + $0x680] sm:$0xff]
        %v346 = vld [vmem:[%s116 + $0x688] sm:$0xff]
        %v347 = vld [vmem:[%s116 + $0x690] sm:$0xff]
        %v348 = vld [vmem:[%s116 + $0x698] sm:$0xff]
        %v349 = vld [vmem:[%s116 + $0x6a0] sm:$0xff]
        %v350 = vld [vmem:[%s116 + $0x6a8] sm:$0xff]
        %v351 = vld [vmem:[%s116 + $0x6b0] sm:$0xff]
        %v352 = vld [vmem:[%s116 + $0x6b8] sm:$0xff]
        %v353 = vld [vmem:[%s116 + $0x6c0] sm:$0xff]
        %v354 = vld [vmem:[%s116 + $0x6c8] sm:$0xff]
        %v355 = vld [vmem:[%s116 + $0x6d0] sm:$0xff]
        %v356 = vld [vmem:[%s116 + $0x6d8] sm:$0xff]
        %v357 = vld [vmem:[%s116 + $0x6e0] sm:$0xff]
        %v358 = vld [vmem:[%s116 + $0x6e8] sm:$0xff]
        %v359 = vld [vmem:[%s116 + $0x6f0] sm:$0xff]
        %v360 = vld [vmem:[%s116 + $0x6f8] sm:$0xff]
        %v361 = vld [vmem:[%s116 + $0x700] sm:$0xff]
        %v362 = vld [vmem:[%s116 + $0x708] sm:$0xff]
        %v363 = vld [vmem:[%s116 + $0x710] sm:$0xff]
        %v364 = vld [vmem:[%s116 + $0x718] sm:$0xff]
        %v365 = vld [vmem:[%s116 + $0x720] sm:$0xff]
        %v366 = vld [vmem:[%s116 + $0x728] sm:$0xff]
        %v367 = vld [vmem:[%s116 + $0x730] sm:$0xff]
        %v368 = vld [vmem:[%s116 + $0x738] sm:$0xff]
        %v369 = vld [vmem:[%s116 + $0x740] sm:$0xff]
        %v370 = vld [vmem:[%s116 + $0x748] sm:$0xff]
        %v371 = vld [vmem:[%s116 + $0x750] sm:$0xff]
        %v372 = vld [vmem:[%s116 + $0x758] sm:$0xff]
        %v373 = vld [vmem:[%s116 + $0x760] sm:$0xff]
        %v374 = vld [vmem:[%s116 + $0x768] sm:$0xff]
        %v375 = vld [vmem:[%s116 + $0x770] sm:$0xff]
        %v376 = vld [vmem:[%s116 + $0x778] sm:$0xff]
        %v377 = vld [vmem:[%s116 + $0x780] sm:$0xff]
        %v378 = vld [vmem:[%s116 + $0x788] sm:$0xff]
        %v379 = vld [vmem:[%s116 + $0x790] sm:$0xff]
        %v380 = vld [vmem:[%s116 + $0x798] sm:$0xff]
        %v381 = vld [vmem:[%s116 + $0x7a0] sm:$0xff]
        %v382 = vld [vmem:[%s116 + $0x7a8] sm:$0xff]
        %v383 = vld [vmem:[%s116 + $0x7b0] sm:$0xff]
        %v384 = vld [vmem:[%s116 + $0x7b8] sm:$0xff]
        %v385 = vld [vmem:[%s116 + $0x7c0] sm:$0xff]
        %v386 = vld [vmem:[%s116 + $0x7c8] sm:$0xff]
        %v387 = vld [vmem:[%s116 + $0x7d0] sm:$0xff]
        %v388 = vld [vmem:[%s116 + $0x7d8] sm:$0xff]
        %v389 = vld [vmem:[%s116 + $0x7e0] sm:$0xff]
        %v390 = vld [vmem:[%s116 + $0x7e8] sm:$0xff]
        %v391 = vld [vmem:[%s116 + $0x7f0] sm:$0xff]
        %v392 = vld [vmem:[%s116 + $0x7f8] sm:$0xff]
        %v393 = vld [vmem:[%s116 + $0x800] sm:$0xff]
        %v394 = vld [vmem:[%s116 + $0x808] sm:$0xff]
        %v395 = vld [vmem:[%s116 + $0x810] sm:$0xff]
        %v396 = vld [vmem:[%s116 + $0x818] sm:$0xff]
        %v397 = vld [vmem:[%s116 + $0x820] sm:$0xff]
        %v398 = vld [vmem:[%s116 + $0x828] sm:$0xff]
        %v399 = vld [vmem:[%s116 + $0x830] sm:$0xff]
        %v400 = vld [vmem:[%s116 + $0x838] sm:$0xff]
        %v401 = vld [vmem:[%s116 + $0x840] sm:$0xff]
        %v402 = vld [vmem:[%s116 + $0x848] sm:$0xff]
        %v403 = vld [vmem:[%s116 + $0x850] sm:$0xff]
        %v404 = vld [vmem:[%s116 + $0x858] sm:$0xff]
        %v405 = vld [vmem:[%s116 + $0x860] sm:$0xff]
        %v406 = vld [vmem:[%s116 + $0x868] sm:$0xff]
        %v407 = vld [vmem:[%s116 + $0x870] sm:$0xff]
        %v408 = vld [vmem:[%s116 + $0x878] sm:$0xff]
        %v409 = vld [vmem:[%s116 + $0x880] sm:$0xff]
        %v410 = vld [vmem:[%s116 + $0x888] sm:$0xff]
        %v411 = vld [vmem:[%s116 + $0x890] sm:$0xff]
        %v412 = vld [vmem:[%s116 + $0x898] sm:$0xff]
        %v413 = vld [vmem:[%s116 + $0x8a0] sm:$0xff]
        %v414 = vld [vmem:[%s116 + $0x8a8] sm:$0xff]
        %v415 = vld [vmem:[%s116 + $0x8b0] sm:$0xff]
        %v416 = vld [vmem:[%s116 + $0x8b8] sm:$0xff]
        %v417 = vld [vmem:[%s116 + $0x8c0] sm:$0xff]
        %v418 = vld [vmem:[%s116 + $0x8c8] sm:$0xff]
        %v419 = vld [vmem:[%s116 + $0x8d0] sm:$0xff]
        %v420 = vld [vmem:[%s116 + $0x8d8] sm:$0xff]
        %v421 = vld [vmem:[%s116 + $0x8e0] sm:$0xff]
        %v422 = vld [vmem:[%s116 + $0x8e8] sm:$0xff]
        %v423 = vld [vmem:[%s116 + $0x8f0] sm:$0xff]
        %v424 = vld [vmem:[%s116 + $0x8f8] sm:$0xff]
        %v425 = vld [vmem:[%s116 + $0x900] sm:$0xff]
        %v426 = vld [vmem:[%s116 + $0x908] sm:$0xff]
        %v427 = vld [vmem:[%s116 + $0x910] sm:$0xff]
        %v428 = vld [vmem:[%s116 + $0x918] sm:$0xff]
        %v429 = vld [vmem:[%s116 + $0x920] sm:$0xff]
        %v430 = vld [vmem:[%s116 + $0x928] sm:$0xff]
        %v431 = vld [vmem:[%s116 + $0x930] sm:$0xff]
        %v432 = vld [vmem:[%s116 + $0x938] sm:$0xff]
        %v433 = vld [vmem:[%s116 + $0x940] sm:$0xff]
        %v434 = vld [vmem:[%s116 + $0x948] sm:$0xff]
        %v435 = vld [vmem:[%s116 + $0x950] sm:$0xff]
        %v436 = vld [vmem:[%s116 + $0x958] sm:$0xff]
        %v437 = vld [vmem:[%s116 + $0x960] sm:$0xff]
        %v438 = vld [vmem:[%s116 + $0x968] sm:$0xff]
        %v439 = vld [vmem:[%s116 + $0x970] sm:$0xff]
        %v440 = vld [vmem:[%s116 + $0x978] sm:$0xff]
        %v441 = vld [vmem:[%s116 + $0x980] sm:$0xff]
        %v442 = vld [vmem:[%s116 + $0x988] sm:$0xff]
        %v443 = vld [vmem:[%s116 + $0x990] sm:$0xff]
        %v444 = vld [vmem:[%s116 + $0x998] sm:$0xff]
        %v445 = vld [vmem:[%s116 + $0x9a0] sm:$0xff]
        %v446 = vld [vmem:[%s116 + $0x9a8] sm:$0xff]
        %v447 = vld [vmem:[%s116 + $0x9b0] sm:$0xff]
        %v448 = vld [vmem:[%s116 + $0x9b8] sm:$0xff]
        %v449 = vld [vmem:[%s116 + $0x9c0] sm:$0xff]
        %v450 = vld [vmem:[%s116 + $0x9c8] sm:$0xff]
        %v451 = vld [vmem:[%s116 + $0x9d0] sm:$0xff]
        %v452 = vld [vmem:[%s116 + $0x9d8] sm:$0xff]
        %v453 = vld [vmem:[%s116 + $0x9e0] sm:$0xff]
        %v454 = vld [vmem:[%s116 + $0x9e8] sm:$0xff]
        %v455 = vld [vmem:[%s116 + $0x9f0] sm:$0xff]
        %v456 = vld [vmem:[%s116 + $0x9f8] sm:$0xff]
        %v457 = vld [vmem:[%s116 + $0xa00] sm:$0xff]
        %v458 = vld [vmem:[%s116 + $0xa08] sm:$0xff]
        %v459 = vld [vmem:[%s116 + $0xa10] sm:$0xff]
        %v460 = vld [vmem:[%s116 + $0xa18] sm:$0xff]
        %v461 = vld [vmem:[%s116 + $0xa20] sm:$0xff]
        %v462 = vld [vmem:[%s116 + $0xa28] sm:$0xff]
        %v463 = vld [vmem:[%s116 + $0xa30] sm:$0xff]
        %v464 = vld [vmem:[%s116 + $0xa38] sm:$0xff]
        %v465 = vld [vmem:[%s116 + $0xa40] sm:$0xff]
        %v466 = vld [vmem:[%s116 + $0xa48] sm:$0xff]
        %v467 = vld [vmem:[%s116 + $0xa50] sm:$0xff]
        %v468 = vld [vmem:[%s116 + $0xa58] sm:$0xff]
        %v469 = vld [vmem:[%s116 + $0xa60] sm:$0xff]
        %v470 = vld [vmem:[%s116 + $0xa68] sm:$0xff]
        %v471 = vld [vmem:[%s116 + $0xa70] sm:$0xff]
        %v472 = vld [vmem:[%s116 + $0xa78] sm:$0xff]
        %v473 = vld [vmem:[%s116 + $0xa80] sm:$0xff]
        %v474 = vld [vmem:[%s116 + $0xa88] sm:$0xff]
        %v475 = vld [vmem:[%s116 + $0xa90] sm:$0xff]
        %v476 = vld [vmem:[%s116 + $0xa98] sm:$0xff]
        %v477 = vld [vmem:[%s116 + $0xaa0] sm:$0xff]
        %v478 = vld [vmem:[%s116 + $0xaa8] sm:$0xff]
        %v479 = vld [vmem:[%s116 + $0xab0] sm:$0xff]
        %v480 = vld [vmem:[%s116 + $0xab8] sm:$0xff]
        %v481 = vld [vmem:[%s116 + $0xac0] sm:$0xff]
        %v482 = vld [vmem:[%s116 + $0xac8] sm:$0xff]
        %v483 = vld [vmem:[%s116 + $0xad0] sm:$0xff]
        %v484 = vld [vmem:[%s116 + $0xad8] sm:$0xff]
        %v485 = vld [vmem:[%s116 + $0xae0] sm:$0xff]
        %v486 = vld [vmem:[%s116 + $0xae8] sm:$0xff]
        %v487 = vld [vmem:[%s116 + $0xaf0] sm:$0xff]
        %v488 = vld [vmem:[%s116 + $0xaf8] sm:$0xff]
        %v489 = vld [vmem:[%s116 + $0xb00] sm:$0xff]
        %v490 = vld [vmem:[%s116 + $0xb08] sm:$0xff]
        %v491 = vld [vmem:[%s116 + $0xb10] sm:$0xff]
        %v492 = vld [vmem:[%s116 + $0xb18] sm:$0xff]
        %v493 = vld [vmem:[%s116 + $0xb20] sm:$0xff]
        %v494 = vld [vmem:[%s116 + $0xb28] sm:$0xff]
        %v495 = vld [vmem:[%s116 + $0xb30] sm:$0xff]
        %v496 = vld [vmem:[%s116 + $0xb38] sm:$0xff]
        %v497 = vld [vmem:[%s116 + $0xb40] sm:$0xff]
        %v498 = vld [vmem:[%s116 + $0xb48] sm:$0xff]
        %v499 = vld [vmem:[%s116 + $0xb50] sm:$0xff]
        %v500 = vld [vmem:[%s116 + $0xb58] sm:$0xff]
        %v501 = vld [vmem:[%s116 + $0xb60] sm:$0xff]
        %v502 = vld [vmem:[%s116 + $0xb68] sm:$0xff]
        %v503 = vld [vmem:[%s116 + $0xb70] sm:$0xff]
        %v504 = vld [vmem:[%s116 + $0xb78] sm:$0xff]
        %v505 = vld [vmem:[%s116 + $0xb80] sm:$0xff]
        %v506 = vld [vmem:[%s116 + $0xb88] sm:$0xff]
        %v507 = vld [vmem:[%s116 + $0xb90] sm:$0xff]
        %v508 = vld [vmem:[%s116 + $0xb98] sm:$0xff]
        %v509 = vld [vmem:[%s116 + $0xba0] sm:$0xff]
        %v510 = vld [vmem:[%s116 + $0xba8] sm:$0xff]
        %v511 = vld [vmem:[%s116 + $0xbb0] sm:$0xff]
        %v512 = vld [vmem:[%s116 + $0xbb8] sm:$0xff]
        %v513 = vld [vmem:[%s116 + $0xbc0] sm:$0xff]
        %v514 = vld [vmem:[%s116 + $0xbc8] sm:$0xff]
        %v515 = vld [vmem:[%s116 + $0xbd0] sm:$0xff]
        %v516 = vld [vmem:[%s116 + $0xbd8] sm:$0xff]
        %v517 = vld [vmem:[%s116 + $0xbe0] sm:$0xff]
        %v518 = vld [vmem:[%s116 + $0xbe8] sm:$0xff]
        %v519 = vld [vmem:[%s116 + $0xbf0] sm:$0xff]
        %v520 = vld [vmem:[%s116 + $0xbf8] sm:$0xff]
        %v521 = vmul.f32 %v137, %v137
        %v522 = vmul.f32 %v138, %v138
        %v523 = vmul.f32 %v139, %v139
        %v524 = vmul.f32 %v140, %v140
        %v525 = vmul.f32 %v141, %v141
        %v526 = vmul.f32 %v142, %v142
        %v527 = vmul.f32 %v143, %v143
        %v528 = vmul.f32 %v144, %v144
        %v529 = vmul.f32 %v145, %v145
        %v530 = vmul.f32 %v146, %v146
        %v531 = vmul.f32 %v147, %v147
        %v532 = vmul.f32 %v148, %v148
        %v533 = vmul.f32 %v149, %v149
        %v534 = vmul.f32 %v150, %v150
        %v535 = vmul.f32 %v151, %v151
        %v536 = vmul.f32 %v152, %v152
        %v537 = vmul.f32 %v153, %v153
        %v538 = vmul.f32 %v154, %v154
        %v539 = vmul.f32 %v155, %v155
        %v540 = vmul.f32 %v156, %v156
        %v541 = vmul.f32 %v157, %v157
        %v542 = vmul.f32 %v158, %v158
        %v543 = vmul.f32 %v159, %v159
        %v544 = vmul.f32 %v160, %v160
        %v545 = vmul.f32 %v161, %v161
        %v546 = vmul.f32 %v162, %v162
        %v547 = vmul.f32 %v163, %v163
        %v548 = vmul.f32 %v164, %v164
        %v549 = vmul.f32 %v165, %v165
        %v550 = vmul.f32 %v166, %v166
        %v551 = vmul.f32 %v167, %v167
        %v552 = vmul.f32 %v168, %v168
        %v553 = vmul.f32 %v169, %v169
        %v554 = vmul.f32 %v170, %v170
        %v555 = vmul.f32 %v171, %v171
        %v556 = vmul.f32 %v172, %v172
        %v557 = vmul.f32 %v173, %v173
        %v558 = vmul.f32 %v174, %v174
        %v559 = vmul.f32 %v175, %v175
        %v560 = vmul.f32 %v176, %v176
        %v561 = vmul.f32 %v177, %v177
        %v562 = vmul.f32 %v178, %v178
        %v563 = vmul.f32 %v179, %v179
        %v564 = vmul.f32 %v180, %v180
        %v565 = vmul.f32 %v181, %v181
        %v566 = vmul.f32 %v182, %v182
        %v567 = vmul.f32 %v183, %v183
        %v568 = vmul.f32 %v184, %v184
        %v569 = vmul.f32 %v185, %v185
        %v570 = vmul.f32 %v186, %v186
        %v571 = vmul.f32 %v187, %v187
        %v572 = vmul.f32 %v188, %v188
        %v573 = vmul.f32 %v189, %v189
        %v574 = vmul.f32 %v190, %v190
        %v575 = vmul.f32 %v191, %v191
        %v576 = vmul.f32 %v192, %v192
        %v577 = vmul.f32 %v193, %v193
        %v578 = vmul.f32 %v194, %v194
        %v579 = vmul.f32 %v195, %v195
        %v580 = vmul.f32 %v196, %v196
        %v581 = vmul.f32 %v197, %v197
        %v582 = vmul.f32 %v198, %v198
        %v583 = vmul.f32 %v199, %v199
        %v584 = vmul.f32 %v200, %v200
        %v585 = vmul.f32 %v201, %v201
        %v586 = vmul.f32 %v202, %v202
        %v587 = vmul.f32 %v203, %v203
        %v588 = vmul.f32 %v204, %v204
        %v589 = vmul.f32 %v205, %v205
        %v590 = vmul.f32 %v206, %v206
        %v591 = vmul.f32 %v207, %v207
        %v592 = vmul.f32 %v208, %v208
        %v593 = vmul.f32 %v209, %v209
        %v594 = vmul.f32 %v210, %v210
        %v595 = vmul.f32 %v211, %v211
        %v596 = vmul.f32 %v212, %v212
        %v597 = vmul.f32 %v213, %v213
        %v598 = vmul.f32 %v214, %v214
        %v599 = vmul.f32 %v215, %v215
        %v600 = vmul.f32 %v216, %v216
        %v601 = vmul.f32 %v217, %v217
        %v602 = vmul.f32 %v218, %v218
        %v603 = vmul.f32 %v219, %v219
        %v604 = vmul.f32 %v220, %v220
        %v605 = vmul.f32 %v221, %v221
        %v606 = vmul.f32 %v222, %v222
        %v607 = vmul.f32 %v223, %v223
        %v608 = vmul.f32 %v224, %v224
        %v609 = vmul.f32 %v225, %v225
        %v610 = vmul.f32 %v226, %v226
        %v611 = vmul.f32 %v227, %v227
        %v612 = vmul.f32 %v228, %v228
        %v613 = vmul.f32 %v229, %v229
        %v614 = vmul.f32 %v230, %v230
        %v615 = vmul.f32 %v231, %v231
        %v616 = vmul.f32 %v232, %v232
        %v617 = vmul.f32 %v233, %v233
        %v618 = vmul.f32 %v234, %v234
        %v619 = vmul.f32 %v235, %v235
        %v620 = vmul.f32 %v236, %v236
        %v621 = vmul.f32 %v237, %v237
        %v622 = vmul.f32 %v238, %v238
        %v623 = vmul.f32 %v239, %v239
        %v624 = vmul.f32 %v240, %v240
        %v625 = vmul.f32 %v241, %v241
        %v626 = vmul.f32 %v242, %v242
        %v627 = vmul.f32 %v243, %v243
        %v628 = vmul.f32 %v244, %v244
        %v629 = vmul.f32 %v245, %v245
        %v630 = vmul.f32 %v246, %v246
        %v631 = vmul.f32 %v247, %v247
        %v632 = vmul.f32 %v248, %v248
        %v633 = vmul.f32 %v249, %v249
        %v634 = vmul.f32 %v250, %v250
        %v635 = vmul.f32 %v251, %v251
        %v636 = vmul.f32 %v252, %v252
        %v637 = vmul.f32 %v253, %v253
        %v638 = vmul.f32 %v254, %v254
        %v639 = vmul.f32 %v255, %v255
        %v640 = vmul.f32 %v256, %v256
        %v641 = vmul.f32 %v257, %v257
        %v642 = vmul.f32 %v258, %v258
        %v643 = vmul.f32 %v259, %v259
        %v644 = vmul.f32 %v260, %v260
        %v645 = vmul.f32 %v261, %v261
        %v646 = vmul.f32 %v262, %v262
        %v647 = vmul.f32 %v263, %v263
        %v648 = vmul.f32 %v264, %v264
        %v649 = vmul.f32 %v265, %v265
        %v650 = vmul.f32 %v266, %v266
        %v651 = vmul.f32 %v267, %v267
        %v652 = vmul.f32 %v268, %v268
        %v653 = vmul.f32 %v269, %v269
        %v654 = vmul.f32 %v270, %v270
        %v655 = vmul.f32 %v271, %v271
        %v656 = vmul.f32 %v272, %v272
        %v657 = vmul.f32 %v273, %v273
        %v658 = vmul.f32 %v274, %v274
        %v659 = vmul.f32 %v275, %v275
        %v660 = vmul.f32 %v276, %v276
        %v661 = vmul.f32 %v277, %v277
        %v662 = vmul.f32 %v278, %v278
        %v663 = vmul.f32 %v279, %v279
        %v664 = vmul.f32 %v280, %v280
        %v665 = vmul.f32 %v281, %v281
        %v666 = vmul.f32 %v282, %v282
        %v667 = vmul.f32 %v283, %v283
        %v668 = vmul.f32 %v284, %v284
        %v669 = vmul.f32 %v285, %v285
        %v670 = vmul.f32 %v286, %v286
        %v671 = vmul.f32 %v287, %v287
        %v672 = vmul.f32 %v288, %v288
        %v673 = vmul.f32 %v289, %v289
        %v674 = vmul.f32 %v290, %v290
        %v675 = vmul.f32 %v291, %v291
        %v676 = vmul.f32 %v292, %v292
        %v677 = vmul.f32 %v293, %v293
        %v678 = vmul.f32 %v294, %v294
        %v679 = vmul.f32 %v295, %v295
        %v680 = vmul.f32 %v296, %v296
        %v681 = vmul.f32 %v297, %v297
        %v682 = vmul.f32 %v298, %v298
        %v683 = vmul.f32 %v299, %v299
        %v684 = vmul.f32 %v300, %v300
        %v685 = vmul.f32 %v301, %v301
        %v686 = vmul.f32 %v302, %v302
        %v687 = vmul.f32 %v303, %v303
        %v688 = vmul.f32 %v304, %v304
        %v689 = vmul.f32 %v305, %v305
        %v690 = vmul.f32 %v306, %v306
        %v691 = vmul.f32 %v307, %v307
        %v692 = vmul.f32 %v308, %v308
        %v693 = vmul.f32 %v309, %v309
        %v694 = vmul.f32 %v310, %v310
        %v695 = vmul.f32 %v311, %v311
        %v696 = vmul.f32 %v312, %v312
        %v697 = vmul.f32 %v313, %v313
        %v698 = vmul.f32 %v314, %v314
        %v699 = vmul.f32 %v315, %v315
        %v700 = vmul.f32 %v316, %v316
        %v701 = vmul.f32 %v317, %v317
        %v702 = vmul.f32 %v318, %v318
        %v703 = vmul.f32 %v319, %v319
        %v704 = vmul.f32 %v320, %v320
        %v705 = vmul.f32 %v321, %v321
        %v706 = vmul.f32 %v322, %v322
        %v707 = vmul.f32 %v323, %v323
        %v708 = vmul.f32 %v324, %v324
        %v709 = vmul.f32 %v325, %v325
        %v710 = vmul.f32 %v326, %v326
        %v711 = vmul.f32 %v327, %v327
        %v712 = vmul.f32 %v328, %v328
        %v713 = vmul.f32 %v329, %v329
        %v714 = vmul.f32 %v330, %v330
        %v715 = vmul.f32 %v331, %v331
        %v716 = vmul.f32 %v332, %v332
        %v717 = vmul.f32 %v333, %v333
        %v718 = vmul.f32 %v334, %v334
        %v719 = vmul.f32 %v335, %v335
        %v720 = vmul.f32 %v336, %v336
        %v721 = vmul.f32 %v337, %v337
        %v722 = vmul.f32 %v338, %v338
        %v723 = vmul.f32 %v339, %v339
        %v724 = vmul.f32 %v340, %v340
        %v725 = vmul.f32 %v341, %v341
        %v726 = vmul.f32 %v342, %v342
        %v727 = vmul.f32 %v343, %v343
        %v728 = vmul.f32 %v344, %v344
        %v729 = vmul.f32 %v345, %v345
        %v730 = vmul.f32 %v346, %v346
        %v731 = vmul.f32 %v347, %v347
        %v732 = vmul.f32 %v348, %v348
        %v733 = vmul.f32 %v349, %v349
        %v734 = vmul.f32 %v350, %v350
        %v735 = vmul.f32 %v351, %v351
        %v736 = vmul.f32 %v352, %v352
        %v737 = vmul.f32 %v353, %v353
        %v738 = vmul.f32 %v354, %v354
        %v739 = vmul.f32 %v355, %v355
        %v740 = vmul.f32 %v356, %v356
        %v741 = vmul.f32 %v357, %v357
        %v742 = vmul.f32 %v358, %v358
        %v743 = vmul.f32 %v359, %v359
        %v744 = vmul.f32 %v360, %v360
        %v745 = vmul.f32 %v361, %v361
        %v746 = vmul.f32 %v362, %v362
        %v747 = vmul.f32 %v363, %v363
        %v748 = vmul.f32 %v364, %v364
        %v749 = vmul.f32 %v365, %v365
        %v750 = vmul.f32 %v366, %v366
        %v751 = vmul.f32 %v367, %v367
        %v752 = vmul.f32 %v368, %v368
        %v753 = vmul.f32 %v369, %v369
        %v754 = vmul.f32 %v370, %v370
        %v755 = vmul.f32 %v371, %v371
        %v756 = vmul.f32 %v372, %v372
        %v757 = vmul.f32 %v373, %v373
        %v758 = vmul.f32 %v374, %v374
        %v759 = vmul.f32 %v375, %v375
        %v760 = vmul.f32 %v376, %v376
        %v761 = vmul.f32 %v377, %v377
        %v762 = vmul.f32 %v378, %v378
        %v763 = vmul.f32 %v379, %v379
        %v764 = vmul.f32 %v380, %v380
        %v765 = vmul.f32 %v381, %v381
        %v766 = vmul.f32 %v382, %v382
        %v767 = vmul.f32 %v383, %v383
        %v768 = vmul.f32 %v384, %v384
        %v769 = vmul.f32 %v385, %v385
        %v770 = vmul.f32 %v386, %v386
        %v771 = vmul.f32 %v387, %v387
        %v772 = vmul.f32 %v388, %v388
        %v773 = vmul.f32 %v389, %v389
        %v774 = vmul.f32 %v390, %v390
        %v775 = vmul.f32 %v391, %v391
        %v776 = vmul.f32 %v392, %v392
        %v777 = vmul.f32 %v393, %v393
        %v778 = vmul.f32 %v394, %v394
        %v779 = vmul.f32 %v395, %v395
        %v780 = vmul.f32 %v396, %v396
        %v781 = vmul.f32 %v397, %v397
        %v782 = vmul.f32 %v398, %v398
        %v783 = vmul.f32 %v399, %v399
        %v784 = vmul.f32 %v400, %v400
        %v785 = vmul.f32 %v401, %v401
        %v786 = vmul.f32 %v402, %v402
        %v787 = vmul.f32 %v403, %v403
        %v788 = vmul.f32 %v404, %v404
        %v789 = vmul.f32 %v405, %v405
        %v790 = vmul.f32 %v406, %v406
        %v791 = vmul.f32 %v407, %v407
        %v792 = vmul.f32 %v408, %v408
        %v793 = vmul.f32 %v409, %v409
        %v794 = vmul.f32 %v410, %v410
        %v795 = vmul.f32 %v411, %v411
        %v796 = vmul.f32 %v412, %v412
        %v797 = vmul.f32 %v413, %v413
        %v798 = vmul.f32 %v414, %v414
        %v799 = vmul.f32 %v415, %v415
        %v800 = vmul.f32 %v416, %v416
        %v801 = vmul.f32 %v417, %v417
        %v802 = vmul.f32 %v418, %v418
        %v803 = vmul.f32 %v419, %v419
        %v804 = vmul.f32 %v420, %v420
        %v805 = vmul.f32 %v421, %v421
        %v806 = vmul.f32 %v422, %v422
        %v807 = vmul.f32 %v423, %v423
        %v808 = vmul.f32 %v424, %v424
        %v809 = vmul.f32 %v425, %v425
        %v810 = vmul.f32 %v426, %v426
        %v811 = vmul.f32 %v427, %v427
        %v812 = vmul.f32 %v428, %v428
        %v813 = vmul.f32 %v429, %v429
        %v814 = vmul.f32 %v430, %v430
        %v815 = vmul.f32 %v431, %v431
        %v816 = vmul.f32 %v432, %v432
        %v817 = vmul.f32 %v433, %v433
        %v818 = vmul.f32 %v434, %v434
        %v819 = vmul.f32 %v435, %v435
        %v820 = vmul.f32 %v436, %v436
        %v821 = vmul.f32 %v437, %v437
        %v822 = vmul.f32 %v438, %v438
        %v823 = vmul.f32 %v439, %v439
        %v824 = vmul.f32 %v440, %v440
        %v825 = vmul.f32 %v441, %v441
        %v826 = vmul.f32 %v442, %v442
        %v827 = vmul.f32 %v443, %v443
        %v828 = vmul.f32 %v444, %v444
        %v829 = vmul.f32 %v445, %v445
        %v830 = vmul.f32 %v446, %v446
        %v831 = vmul.f32 %v447, %v447
        %v832 = vmul.f32 %v448, %v448
        %v833 = vmul.f32 %v449, %v449
        %v834 = vmul.f32 %v450, %v450
        %v835 = vmul.f32 %v451, %v451
        %v836 = vmul.f32 %v452, %v452
        %v837 = vmul.f32 %v453, %v453
        %v838 = vmul.f32 %v454, %v454
        %v839 = vmul.f32 %v455, %v455
        %v840 = vmul.f32 %v456, %v456
        %v841 = vmul.f32 %v457, %v457
        %v842 = vmul.f32 %v458, %v458
        %v843 = vmul.f32 %v459, %v459
        %v844 = vmul.f32 %v460, %v460
        %v845 = vmul.f32 %v461, %v461
        %v846 = vmul.f32 %v462, %v462
        %v847 = vmul.f32 %v463, %v463
        %v848 = vmul.f32 %v464, %v464
        %v849 = vmul.f32 %v465, %v465
        %v850 = vmul.f32 %v466, %v466
        %v851 = vmul.f32 %v467, %v467
        %v852 = vmul.f32 %v468, %v468
        %v853 = vmul.f32 %v469, %v469
        %v854 = vmul.f32 %v470, %v470
        %v855 = vmul.f32 %v471, %v471
        %v856 = vmul.f32 %v472, %v472
        %v857 = vmul.f32 %v473, %v473
        %v858 = vmul.f32 %v474, %v474
        %v859 = vmul.f32 %v475, %v475
        %v860 = vmul.f32 %v476, %v476
        %v861 = vmul.f32 %v477, %v477
        %v862 = vmul.f32 %v478, %v478
        %v863 = vmul.f32 %v479, %v479
        %v864 = vmul.f32 %v480, %v480
        %v865 = vmul.f32 %v481, %v481
        %v866 = vmul.f32 %v482, %v482
        %v867 = vmul.f32 %v483, %v483
        %v868 = vmul.f32 %v484, %v484
        %v869 = vmul.f32 %v485, %v485
        %v870 = vmul.f32 %v486, %v486
        %v871 = vmul.f32 %v487, %v487
        %v872 = vmul.f32 %v488, %v488
        %v873 = vmul.f32 %v489, %v489
        %v874 = vmul.f32 %v490, %v490
        %v875 = vmul.f32 %v491, %v491
        %v876 = vmul.f32 %v492, %v492
        %v877 = vmul.f32 %v493, %v493
        %v878 = vmul.f32 %v494, %v494
        %v879 = vmul.f32 %v495, %v495
        %v880 = vmul.f32 %v496, %v496
        %v881 = vmul.f32 %v497, %v497
        %v882 = vmul.f32 %v498, %v498
        %v883 = vmul.f32 %v499, %v499
        %v884 = vmul.f32 %v500, %v500
        %v885 = vmul.f32 %v501, %v501
        %v886 = vmul.f32 %v502, %v502
        %v887 = vmul.f32 %v503, %v503
        %v888 = vmul.f32 %v504, %v504
        %v889 = vmul.f32 %v505, %v505
        %v890 = vmul.f32 %v506, %v506
        %v891 = vmul.f32 %v507, %v507
        %v892 = vmul.f32 %v508, %v508
        %v893 = vmul.f32 %v509, %v509
        %v894 = vmul.f32 %v510, %v510
        %v895 = vmul.f32 %v511, %v511
        %v896 = vmul.f32 %v512, %v512
        %v897 = vmul.f32 %v513, %v513
        %v898 = vmul.f32 %v514, %v514
        %v899 = vmul.f32 %v515, %v515
        %v900 = vmul.f32 %v516, %v516
        %v901 = vmul.f32 %v517, %v517
        %v902 = vmul.f32 %v518, %v518
        %v903 = vmul.f32 %v519, %v519
        %v904 = vmul.f32 %v520, %v520
        %v905 = vmul.f32 %v521, 0.035677407
        %v906 = vmul.f32 %v522, 0.035677407
        %v907 = vmul.f32 %v523, 0.035677407
        %v908 = vmul.f32 %v524, 0.035677407
        %v909 = vmul.f32 %v525, 0.035677407
        %v910 = vmul.f32 %v526, 0.035677407
        %v911 = vmul.f32 %v527, 0.035677407
        %v912 = vmul.f32 %v528, 0.035677407
        %v913 = vmul.f32 %v529, 0.035677407
        %v914 = vmul.f32 %v530, 0.035677407
        %v915 = vmul.f32 %v531, 0.035677407
        %v916 = vmul.f32 %v532, 0.035677407
        %v917 = vmul.f32 %v533, 0.035677407
        %v918 = vmul.f32 %v534, 0.035677407
        %v919 = vmul.f32 %v535, 0.035677407
        %v920 = vmul.f32 %v536, 0.035677407
        %v921 = vmul.f32 %v537, 0.035677407
        %v922 = vmul.f32 %v538, 0.035677407
        %v923 = vmul.f32 %v539, 0.035677407
        %v924 = vmul.f32 %v540, 0.035677407
        %v925 = vmul.f32 %v541, 0.035677407
        %v926 = vmul.f32 %v542, 0.035677407
        %v927 = vmul.f32 %v543, 0.035677407
        %v928 = vmul.f32 %v544, 0.035677407
        %v929 = vmul.f32 %v545, 0.035677407
        %v930 = vmul.f32 %v546, 0.035677407
        %v931 = vmul.f32 %v547, 0.035677407
        %v932 = vmul.f32 %v548, 0.035677407
        %v933 = vmul.f32 %v549, 0.035677407
        %v934 = vmul.f32 %v550, 0.035677407
        %v935 = vmul.f32 %v551, 0.035677407
        %v936 = vmul.f32 %v552, 0.035677407
        %v937 = vmul.f32 %v553, 0.035677407
        %v938 = vmul.f32 %v554, 0.035677407
        %v939 = vmul.f32 %v555, 0.035677407
        %v940 = vmul.f32 %v556, 0.035677407
        %v941 = vmul.f32 %v557, 0.035677407
        %v942 = vmul.f32 %v558, 0.035677407
        %v943 = vmul.f32 %v559, 0.035677407
        %v944 = vmul.f32 %v560, 0.035677407
        %v945 = vmul.f32 %v561, 0.035677407
        %v946 = vmul.f32 %v562, 0.035677407
        %v947 = vmul.f32 %v563, 0.035677407
        %v948 = vmul.f32 %v564, 0.035677407
        %v949 = vmul.f32 %v565, 0.035677407
        %v950 = vmul.f32 %v566, 0.035677407
        %v951 = vmul.f32 %v567, 0.035677407
        %v952 = vmul.f32 %v568, 0.035677407
        %v953 = vmul.f32 %v569, 0.035677407
        %v954 = vmul.f32 %v570, 0.035677407
        %v955 = vmul.f32 %v571, 0.035677407
        %v956 = vmul.f32 %v572, 0.035677407
        %v957 = vmul.f32 %v573, 0.035677407
        %v958 = vmul.f32 %v574, 0.035677407
        %v959 = vmul.f32 %v575, 0.035677407
        %v960 = vmul.f32 %v576, 0.035677407
        %v961 = vmul.f32 %v577, 0.035677407
        %v962 = vmul.f32 %v578, 0.035677407
        %v963 = vmul.f32 %v579, 0.035677407
        %v964 = vmul.f32 %v580, 0.035677407
        %v965 = vmul.f32 %v581, 0.035677407
        %v966 = vmul.f32 %v582, 0.035677407
        %v967 = vmul.f32 %v583, 0.035677407
        %v968 = vmul.f32 %v584, 0.035677407
        %v969 = vmul.f32 %v585, 0.035677407
        %v970 = vmul.f32 %v586, 0.035677407
        %v971 = vmul.f32 %v587, 0.035677407
        %v972 = vmul.f32 %v588, 0.035677407
        %v973 = vmul.f32 %v589, 0.035677407
        %v974 = vmul.f32 %v590, 0.035677407
        %v975 = vmul.f32 %v591, 0.035677407
        %v976 = vmul.f32 %v592, 0.035677407
        %v977 = vmul.f32 %v593, 0.035677407
        %v978 = vmul.f32 %v594, 0.035677407
        %v979 = vmul.f32 %v595, 0.035677407
        %v980 = vmul.f32 %v596, 0.035677407
        %v981 = vmul.f32 %v597, 0.035677407
        %v982 = vmul.f32 %v598, 0.035677407
        %v983 = vmul.f32 %v599, 0.035677407
        %v984 = vmul.f32 %v600, 0.035677407
        %v985 = vmul.f32 %v601, 0.035677407
        %v986 = vmul.f32 %v602, 0.035677407
        %v987 = vmul.f32 %v603, 0.035677407
        %v988 = vmul.f32 %v604, 0.035677407
        %v989 = vmul.f32 %v605, 0.035677407
        %v990 = vmul.f32 %v606, 0.035677407
        %v991 = vmul.f32 %v607, 0.035677407
        %v992 = vmul.f32 %v608, 0.035677407
        %v993 = vmul.f32 %v609, 0.035677407
        %v994 = vmul.f32 %v610, 0.035677407
        %v995 = vmul.f32 %v611, 0.035677407
        %v996 = vmul.f32 %v612, 0.035677407
        %v997 = vmul.f32 %v613, 0.035677407
        %v998 = vmul.f32 %v614, 0.035677407
        %v999 = vmul.f32 %v615, 0.035677407
        %v1000 = vmul.f32 %v616, 0.035677407
        %v1001 = vmul.f32 %v617, 0.035677407
        %v1002 = vmul.f32 %v618, 0.035677407
        %v1003 = vmul.f32 %v619, 0.035677407
        %v1004 = vmul.f32 %v620, 0.035677407
        %v1005 = vmul.f32 %v621, 0.035677407
        %v1006 = vmul.f32 %v622, 0.035677407
        %v1007 = vmul.f32 %v623, 0.035677407
        %v1008 = vmul.f32 %v624, 0.035677407
        %v1009 = vmul.f32 %v625, 0.035677407
        %v1010 = vmul.f32 %v626, 0.035677407
        %v1011 = vmul.f32 %v627, 0.035677407
        %v1012 = vmul.f32 %v628, 0.035677407
        %v1013 = vmul.f32 %v629, 0.035677407
        %v1014 = vmul.f32 %v630, 0.035677407
        %v1015 = vmul.f32 %v631, 0.035677407
        %v1016 = vmul.f32 %v632, 0.035677407
        %v1017 = vmul.f32 %v633, 0.035677407
        %v1018 = vmul.f32 %v634, 0.035677407
        %v1019 = vmul.f32 %v635, 0.035677407
        %v1020 = vmul.f32 %v636, 0.035677407
        %v1021 = vmul.f32 %v637, 0.035677407
        %v1022 = vmul.f32 %v638, 0.035677407
        %v1023 = vmul.f32 %v639, 0.035677407
        %v1024 = vmul.f32 %v640, 0.035677407
        %v1025 = vmul.f32 %v641, 0.035677407
        %v1026 = vmul.f32 %v642, 0.035677407
        %v1027 = vmul.f32 %v643, 0.035677407
        %v1028 = vmul.f32 %v644, 0.035677407
        %v1029 = vmul.f32 %v645, 0.035677407
        %v1030 = vmul.f32 %v646, 0.035677407
        %v1031 = vmul.f32 %v647, 0.035677407
        %v1032 = vmul.f32 %v648, 0.035677407
        %v1033 = vmul.f32 %v649, 0.035677407
        %v1034 = vmul.f32 %v650, 0.035677407
        %v1035 = vmul.f32 %v651, 0.035677407
        %v1036 = vmul.f32 %v652, 0.035677407
        %v1037 = vmul.f32 %v653, 0.035677407
        %v1038 = vmul.f32 %v654, 0.035677407
        %v1039 = vmul.f32 %v655, 0.035677407
        %v1040 = vmul.f32 %v656, 0.035677407
        %v1041 = vmul.f32 %v657, 0.035677407
        %v1042 = vmul.f32 %v658, 0.035677407
        %v1043 = vmul.f32 %v659, 0.035677407
        %v1044 = vmul.f32 %v660, 0.035677407
        %v1045 = vmul.f32 %v661, 0.035677407
        %v1046 = vmul.f32 %v662, 0.035677407
        %v1047 = vmul.f32 %v663, 0.035677407
        %v1048 = vmul.f32 %v664, 0.035677407
        %v1049 = vmul.f32 %v665, 0.035677407
        %v1050 = vmul.f32 %v666, 0.035677407
        %v1051 = vmul.f32 %v667, 0.035677407
        %v1052 = vmul.f32 %v668, 0.035677407
        %v1053 = vmul.f32 %v669, 0.035677407
        %v1054 = vmul.f32 %v670, 0.035677407
        %v1055 = vmul.f32 %v671, 0.035677407
        %v1056 = vmul.f32 %v672, 0.035677407
        %v1057 = vmul.f32 %v673, 0.035677407
        %v1058 = vmul.f32 %v674, 0.035677407
        %v1059 = vmul.f32 %v675, 0.035677407
        %v1060 = vmul.f32 %v676, 0.035677407
        %v1061 = vmul.f32 %v677, 0.035677407
        %v1062 = vmul.f32 %v678, 0.035677407
        %v1063 = vmul.f32 %v679, 0.035677407
        %v1064 = vmul.f32 %v680, 0.035677407
        %v1065 = vmul.f32 %v681, 0.035677407
        %v1066 = vmul.f32 %v682, 0.035677407
        %v1067 = vmul.f32 %v683, 0.035677407
        %v1068 = vmul.f32 %v684, 0.035677407
        %v1069 = vmul.f32 %v685, 0.035677407
        %v1070 = vmul.f32 %v686, 0.035677407
        %v1071 = vmul.f32 %v687, 0.035677407
        %v1072 = vmul.f32 %v688, 0.035677407
        %v1073 = vmul.f32 %v689, 0.035677407
        %v1074 = vmul.f32 %v690, 0.035677407
        %v1075 = vmul.f32 %v691, 0.035677407
        %v1076 = vmul.f32 %v692, 0.035677407
        %v1077 = vmul.f32 %v693, 0.035677407
        %v1078 = vmul.f32 %v694, 0.035677407
        %v1079 = vmul.f32 %v695, 0.035677407
        %v1080 = vmul.f32 %v696, 0.035677407
        %v1081 = vmul.f32 %v697, 0.035677407
        %v1082 = vmul.f32 %v698, 0.035677407
        %v1083 = vmul.f32 %v699, 0.035677407
        %v1084 = vmul.f32 %v700, 0.035677407
        %v1085 = vmul.f32 %v701, 0.035677407
        %v1086 = vmul.f32 %v702, 0.035677407
        %v1087 = vmul.f32 %v703, 0.035677407
        %v1088 = vmul.f32 %v704, 0.035677407
        %v1089 = vmul.f32 %v705, 0.035677407
        %v1090 = vmul.f32 %v706, 0.035677407
        %v1091 = vmul.f32 %v707, 0.035677407
        %v1092 = vmul.f32 %v708, 0.035677407
        %v1093 = vmul.f32 %v709, 0.035677407
        %v1094 = vmul.f32 %v710, 0.035677407
        %v1095 = vmul.f32 %v711, 0.035677407
        %v1096 = vmul.f32 %v712, 0.035677407
        %v1097 = vmul.f32 %v713, 0.035677407
        %v1098 = vmul.f32 %v714, 0.035677407
        %v1099 = vmul.f32 %v715, 0.035677407
        %v1100 = vmul.f32 %v716, 0.035677407
        %v1101 = vmul.f32 %v717, 0.035677407
        %v1102 = vmul.f32 %v718, 0.035677407
        %v1103 = vmul.f32 %v719, 0.035677407
        %v1104 = vmul.f32 %v720, 0.035677407
        %v1105 = vmul.f32 %v721, 0.035677407
        %v1106 = vmul.f32 %v722, 0.035677407
        %v1107 = vmul.f32 %v723, 0.035677407
        %v1108 = vmul.f32 %v724, 0.035677407
        %v1109 = vmul.f32 %v725, 0.035677407
        %v1110 = vmul.f32 %v726, 0.035677407
        %v1111 = vmul.f32 %v727, 0.035677407
        %v1112 = vmul.f32 %v728, 0.035677407
        %v1113 = vmul.f32 %v729, 0.035677407
        %v1114 = vmul.f32 %v730, 0.035677407
        %v1115 = vmul.f32 %v731, 0.035677407
        %v1116 = vmul.f32 %v732, 0.035677407
        %v1117 = vmul.f32 %v733, 0.035677407
        %v1118 = vmul.f32 %v734, 0.035677407
        %v1119 = vmul.f32 %v735, 0.035677407
        %v1120 = vmul.f32 %v736, 0.035677407
        %v1121 = vmul.f32 %v737, 0.035677407
        %v1122 = vmul.f32 %v738, 0.035677407
        %v1123 = vmul.f32 %v739, 0.035677407
        %v1124 = vmul.f32 %v740, 0.035677407
        %v1125 = vmul.f32 %v741, 0.035677407
        %v1126 = vmul.f32 %v742, 0.035677407
        %v1127 = vmul.f32 %v743, 0.035677407
        %v1128 = vmul.f32 %v744, 0.035677407
        %v1129 = vmul.f32 %v745, 0.035677407
        %v1130 = vmul.f32 %v746, 0.035677407
        %v1131 = vmul.f32 %v747, 0.035677407
        %v1132 = vmul.f32 %v748, 0.035677407
        %v1133 = vmul.f32 %v749, 0.035677407
        %v1134 = vmul.f32 %v750, 0.035677407
        %v1135 = vmul.f32 %v751, 0.035677407
        %v1136 = vmul.f32 %v752, 0.035677407
        %v1137 = vmul.f32 %v753, 0.035677407
        %v1138 = vmul.f32 %v754, 0.035677407
        %v1139 = vmul.f32 %v755, 0.035677407
        %v1140 = vmul.f32 %v756, 0.035677407
        %v1141 = vmul.f32 %v757, 0.035677407
        %v1142 = vmul.f32 %v758, 0.035677407
        %v1143 = vmul.f32 %v759, 0.035677407
        %v1144 = vmul.f32 %v760, 0.035677407
        %v1145 = vmul.f32 %v761, 0.035677407
        %v1146 = vmul.f32 %v762, 0.035677407
        %v1147 = vmul.f32 %v763, 0.035677407
        %v1148 = vmul.f32 %v764, 0.035677407
        %v1149 = vmul.f32 %v765, 0.035677407
        %v1150 = vmul.f32 %v766, 0.035677407
        %v1151 = vmul.f32 %v767, 0.035677407
        %v1152 = vmul.f32 %v768, 0.035677407
        %v1153 = vmul.f32 %v769, 0.035677407
        %v1154 = vmul.f32 %v770, 0.035677407
        %v1155 = vmul.f32 %v771, 0.035677407
        %v1156 = vmul.f32 %v772, 0.035677407
        %v1157 = vmul.f32 %v773, 0.035677407
        %v1158 = vmul.f32 %v774, 0.035677407
        %v1159 = vmul.f32 %v775, 0.035677407
        %v1160 = vmul.f32 %v776, 0.035677407
        %v1161 = vmul.f32 %v777, 0.035677407
        %v1162 = vmul.f32 %v778, 0.035677407
        %v1163 = vmul.f32 %v779, 0.035677407
        %v1164 = vmul.f32 %v780, 0.035677407
        %v1165 = vmul.f32 %v781, 0.035677407
        %v1166 = vmul.f32 %v782, 0.035677407
        %v1167 = vmul.f32 %v783, 0.035677407
        %v1168 = vmul.f32 %v784, 0.035677407
        %v1169 = vmul.f32 %v785, 0.035677407
        %v1170 = vmul.f32 %v786, 0.035677407
        %v1171 = vmul.f32 %v787, 0.035677407
        %v1172 = vmul.f32 %v788, 0.035677407
        %v1173 = vmul.f32 %v789, 0.035677407
        %v1174 = vmul.f32 %v790, 0.035677407
        %v1175 = vmul.f32 %v791, 0.035677407
        %v1176 = vmul.f32 %v792, 0.035677407
        %v1177 = vmul.f32 %v793, 0.035677407
        %v1178 = vmul.f32 %v794, 0.035677407
        %v1179 = vmul.f32 %v795, 0.035677407
        %v1180 = vmul.f32 %v796, 0.035677407
        %v1181 = vmul.f32 %v797, 0.035677407
        %v1182 = vmul.f32 %v798, 0.035677407
        %v1183 = vmul.f32 %v799, 0.035677407
        %v1184 = vmul.f32 %v800, 0.035677407
        %v1185 = vmul.f32 %v801, 0.035677407
        %v1186 = vmul.f32 %v802, 0.035677407
        %v1187 = vmul.f32 %v803, 0.035677407
        %v1188 = vmul.f32 %v804, 0.035677407
        %v1189 = vmul.f32 %v805, 0.035677407
        %v1190 = vmul.f32 %v806, 0.035677407
        %v1191 = vmul.f32 %v807, 0.035677407
        %v1192 = vmul.f32 %v808, 0.035677407
        %v1193 = vmul.f32 %v809, 0.035677407
        %v1194 = vmul.f32 %v810, 0.035677407
        %v1195 = vmul.f32 %v811, 0.035677407
        %v1196 = vmul.f32 %v812, 0.035677407
        %v1197 = vmul.f32 %v813, 0.035677407
        %v1198 = vmul.f32 %v814, 0.035677407
        %v1199 = vmul.f32 %v815, 0.035677407
        %v1200 = vmul.f32 %v816, 0.035677407
        %v1201 = vmul.f32 %v817, 0.035677407
        %v1202 = vmul.f32 %v818, 0.035677407
        %v1203 = vmul.f32 %v819, 0.035677407
        %v1204 = vmul.f32 %v820, 0.035677407
        %v1205 = vmul.f32 %v821, 0.035677407
        %v1206 = vmul.f32 %v822, 0.035677407
        %v1207 = vmul.f32 %v823, 0.035677407
        %v1208 = vmul.f32 %v824, 0.035677407
        %v1209 = vmul.f32 %v825, 0.035677407
        %v1210 = vmul.f32 %v826, 0.035677407
        %v1211 = vmul.f32 %v827, 0.035677407
        %v1212 = vmul.f32 %v828, 0.035677407
        %v1213 = vmul.f32 %v829, 0.035677407
        %v1214 = vmul.f32 %v830, 0.035677407
        %v1215 = vmul.f32 %v831, 0.035677407
        %v1216 = vmul.f32 %v832, 0.035677407
        %v1217 = vmul.f32 %v833, 0.035677407
        %v1218 = vmul.f32 %v834, 0.035677407
        %v1219 = vmul.f32 %v835, 0.035677407
        %v1220 = vmul.f32 %v836, 0.035677407
        %v1221 = vmul.f32 %v837, 0.035677407
        %v1222 = vmul.f32 %v838, 0.035677407
        %v1223 = vmul.f32 %v839, 0.035677407
        %v1224 = vmul.f32 %v840, 0.035677407
        %v1225 = vmul.f32 %v841, 0.035677407
        %v1226 = vmul.f32 %v842, 0.035677407
        %v1227 = vmul.f32 %v843, 0.035677407
        %v1228 = vmul.f32 %v844, 0.035677407
        %v1229 = vmul.f32 %v845, 0.035677407
        %v1230 = vmul.f32 %v846, 0.035677407
        %v1231 = vmul.f32 %v847, 0.035677407
        %v1232 = vmul.f32 %v848, 0.035677407
        %v1233 = vmul.f32 %v849, 0.035677407
        %v1234 = vmul.f32 %v850, 0.035677407
        %v1235 = vmul.f32 %v851, 0.035677407
        %v1236 = vmul.f32 %v852, 0.035677407
        %v1237 = vmul.f32 %v853, 0.035677407
        %v1238 = vmul.f32 %v854, 0.035677407
        %v1239 = vmul.f32 %v855, 0.035677407
        %v1240 = vmul.f32 %v856, 0.035677407
        %v1241 = vmul.f32 %v857, 0.035677407
        %v1242 = vmul.f32 %v858, 0.035677407
        %v1243 = vmul.f32 %v859, 0.035677407
        %v1244 = vmul.f32 %v860, 0.035677407
        %v1245 = vmul.f32 %v861, 0.035677407
        %v1246 = vmul.f32 %v862, 0.035677407
        %v1247 = vmul.f32 %v863, 0.035677407
        %v1248 = vmul.f32 %v864, 0.035677407
        %v1249 = vmul.f32 %v865, 0.035677407
        %v1250 = vmul.f32 %v866, 0.035677407
        %v1251 = vmul.f32 %v867, 0.035677407
        %v1252 = vmul.f32 %v868, 0.035677407
        %v1253 = vmul.f32 %v869, 0.035677407
        %v1254 = vmul.f32 %v870, 0.035677407
        %v1255 = vmul.f32 %v871, 0.035677407
        %v1256 = vmul.f32 %v872, 0.035677407
        %v1257 = vmul.f32 %v873, 0.035677407
        %v1258 = vmul.f32 %v874, 0.035677407
        %v1259 = vmul.f32 %v875, 0.035677407
        %v1260 = vmul.f32 %v876, 0.035677407
        %v1261 = vmul.f32 %v877, 0.035677407
        %v1262 = vmul.f32 %v878, 0.035677407
        %v1263 = vmul.f32 %v879, 0.035677407
        %v1264 = vmul.f32 %v880, 0.035677407
        %v1265 = vmul.f32 %v881, 0.035677407
        %v1266 = vmul.f32 %v882, 0.035677407
        %v1267 = vmul.f32 %v883, 0.035677407
        %v1268 = vmul.f32 %v884, 0.035677407
        %v1269 = vmul.f32 %v885, 0.035677407
        %v1270 = vmul.f32 %v886, 0.035677407
        %v1271 = vmul.f32 %v887, 0.035677407
        %v1272 = vmul.f32 %v888, 0.035677407
        %v1273 = vmul.f32 %v889, 0.035677407
        %v1274 = vmul.f32 %v890, 0.035677407
        %v1275 = vmul.f32 %v891, 0.035677407
        %v1276 = vmul.f32 %v892, 0.035677407
        %v1277 = vmul.f32 %v893, 0.035677407
        %v1278 = vmul.f32 %v894, 0.035677407
        %v1279 = vmul.f32 %v895, 0.035677407
        %v1280 = vmul.f32 %v896, 0.035677407
        %v1281 = vmul.f32 %v897, 0.035677407
        %v1282 = vmul.f32 %v898, 0.035677407
        %v1283 = vmul.f32 %v899, 0.035677407
        %v1284 = vmul.f32 %v900, 0.035677407
        %v1285 = vmul.f32 %v901, 0.035677407
        %v1286 = vmul.f32 %v902, 0.035677407
        %v1287 = vmul.f32 %v903, 0.035677407
        %v1288 = vmul.f32 %v904, 0.035677407
        %v1289 = vadd.f32 %v905, 0.7978846
        %v1290 = vadd.f32 %v906, 0.7978846
        %v1291 = vadd.f32 %v907, 0.7978846
        %v1292 = vadd.f32 %v908, 0.7978846
        %v1293 = vadd.f32 %v909, 0.7978846
        %v1294 = vadd.f32 %v910, 0.7978846
        %v1295 = vadd.f32 %v911, 0.7978846
        %v1296 = vadd.f32 %v912, 0.7978846
        %v1297 = vadd.f32 %v913, 0.7978846
        %v1298 = vadd.f32 %v914, 0.7978846
        %v1299 = vadd.f32 %v915, 0.7978846
        %v1300 = vadd.f32 %v916, 0.7978846
        %v1301 = vadd.f32 %v917, 0.7978846
        %v1302 = vadd.f32 %v918, 0.7978846
        %v1303 = vadd.f32 %v919, 0.7978846
        %v1304 = vadd.f32 %v920, 0.7978846
        %v1305 = vadd.f32 %v921, 0.7978846
        %v1306 = vadd.f32 %v922, 0.7978846
        %v1307 = vadd.f32 %v923, 0.7978846
        %v1308 = vadd.f32 %v924, 0.7978846
        %v1309 = vadd.f32 %v925, 0.7978846
        %v1310 = vadd.f32 %v926, 0.7978846
        %v1311 = vadd.f32 %v927, 0.7978846
        %v1312 = vadd.f32 %v928, 0.7978846
        %v1313 = vadd.f32 %v929, 0.7978846
        %v1314 = vadd.f32 %v930, 0.7978846
        %v1315 = vadd.f32 %v931, 0.7978846
        %v1316 = vadd.f32 %v932, 0.7978846
        %v1317 = vadd.f32 %v933, 0.7978846
        %v1318 = vadd.f32 %v934, 0.7978846
        %v1319 = vadd.f32 %v935, 0.7978846
        %v1320 = vadd.f32 %v936, 0.7978846
        %v1321 = vadd.f32 %v937, 0.7978846
        %v1322 = vadd.f32 %v938, 0.7978846
        %v1323 = vadd.f32 %v939, 0.7978846
        %v1324 = vadd.f32 %v940, 0.7978846
        %v1325 = vadd.f32 %v941, 0.7978846
        %v1326 = vadd.f32 %v942, 0.7978846
        %v1327 = vadd.f32 %v943, 0.7978846
        %v1328 = vadd.f32 %v944, 0.7978846
        %v1329 = vadd.f32 %v945, 0.7978846
        %v1330 = vadd.f32 %v946, 0.7978846
        %v1331 = vadd.f32 %v947, 0.7978846
        %v1332 = vadd.f32 %v948, 0.7978846
        %v1333 = vadd.f32 %v949, 0.7978846
        %v1334 = vadd.f32 %v950, 0.7978846
        %v1335 = vadd.f32 %v951, 0.7978846
        %v1336 = vadd.f32 %v952, 0.7978846
        %v1337 = vadd.f32 %v953, 0.7978846
        %v1338 = vadd.f32 %v954, 0.7978846
        %v1339 = vadd.f32 %v955, 0.7978846
        %v1340 = vadd.f32 %v956, 0.7978846
        %v1341 = vadd.f32 %v957, 0.7978846
        %v1342 = vadd.f32 %v958, 0.7978846
        %v1343 = vadd.f32 %v959, 0.7978846
        %v1344 = vadd.f32 %v960, 0.7978846
        %v1345 = vadd.f32 %v961, 0.7978846
        %v1346 = vadd.f32 %v962, 0.7978846
        %v1347 = vadd.f32 %v963, 0.7978846
        %v1348 = vadd.f32 %v964, 0.7978846
        %v1349 = vadd.f32 %v965, 0.7978846
        %v1350 = vadd.f32 %v966, 0.7978846
        %v1351 = vadd.f32 %v967, 0.7978846
        %v1352 = vadd.f32 %v968, 0.7978846
        %v1353 = vadd.f32 %v969, 0.7978846
        %v1354 = vadd.f32 %v970, 0.7978846
        %v1355 = vadd.f32 %v971, 0.7978846
        %v1356 = vadd.f32 %v972, 0.7978846
        %v1357 = vadd.f32 %v973, 0.7978846
        %v1358 = vadd.f32 %v974, 0.7978846
        %v1359 = vadd.f32 %v975, 0.7978846
        %v1360 = vadd.f32 %v976, 0.7978846
        %v1361 = vadd.f32 %v977, 0.7978846
        %v1362 = vadd.f32 %v978, 0.7978846
        %v1363 = vadd.f32 %v979, 0.7978846
        %v1364 = vadd.f32 %v980, 0.7978846
        %v1365 = vadd.f32 %v981, 0.7978846
        %v1366 = vadd.f32 %v982, 0.7978846
        %v1367 = vadd.f32 %v983, 0.7978846
        %v1368 = vadd.f32 %v984, 0.7978846
        %v1369 = vadd.f32 %v985, 0.7978846
        %v1370 = vadd.f32 %v986, 0.7978846
        %v1371 = vadd.f32 %v987, 0.7978846
        %v1372 = vadd.f32 %v988, 0.7978846
        %v1373 = vadd.f32 %v989, 0.7978846
        %v1374 = vadd.f32 %v990, 0.7978846
        %v1375 = vadd.f32 %v991, 0.7978846
        %v1376 = vadd.f32 %v992, 0.7978846
        %v1377 = vadd.f32 %v993, 0.7978846
        %v1378 = vadd.f32 %v994, 0.7978846
        %v1379 = vadd.f32 %v995, 0.7978846
        %v1380 = vadd.f32 %v996, 0.7978846
        %v1381 = vadd.f32 %v997, 0.7978846
        %v1382 = vadd.f32 %v998, 0.7978846
        %v1383 = vadd.f32 %v999, 0.7978846
        %v1384 = vadd.f32 %v1000, 0.7978846
        %v1385 = vadd.f32 %v1001, 0.7978846
        %v1386 = vadd.f32 %v1002, 0.7978846
        %v1387 = vadd.f32 %v1003, 0.7978846
        %v1388 = vadd.f32 %v1004, 0.7978846
        %v1389 = vadd.f32 %v1005, 0.7978846
        %v1390 = vadd.f32 %v1006, 0.7978846
        %v1391 = vadd.f32 %v1007, 0.7978846
        %v1392 = vadd.f32 %v1008, 0.7978846
        %v1393 = vadd.f32 %v1009, 0.7978846
        %v1394 = vadd.f32 %v1010, 0.7978846
        %v1395 = vadd.f32 %v1011, 0.7978846
        %v1396 = vadd.f32 %v1012, 0.7978846
        %v1397 = vadd.f32 %v1013, 0.7978846
        %v1398 = vadd.f32 %v1014, 0.7978846
        %v1399 = vadd.f32 %v1015, 0.7978846
        %v1400 = vadd.f32 %v1016, 0.7978846
        %v1401 = vadd.f32 %v1017, 0.7978846
        %v1402 = vadd.f32 %v1018, 0.7978846
        %v1403 = vadd.f32 %v1019, 0.7978846
        %v1404 = vadd.f32 %v1020, 0.7978846
        %v1405 = vadd.f32 %v1021, 0.7978846
        %v1406 = vadd.f32 %v1022, 0.7978846
        %v1407 = vadd.f32 %v1023, 0.7978846
        %v1408 = vadd.f32 %v1024, 0.7978846
        %v1409 = vadd.f32 %v1025, 0.7978846
        %v1410 = vadd.f32 %v1026, 0.7978846
        %v1411 = vadd.f32 %v1027, 0.7978846
        %v1412 = vadd.f32 %v1028, 0.7978846
        %v1413 = vadd.f32 %v1029, 0.7978846
        %v1414 = vadd.f32 %v1030, 0.7978846
        %v1415 = vadd.f32 %v1031, 0.7978846
        %v1416 = vadd.f32 %v1032, 0.7978846
        %v1417 = vadd.f32 %v1033, 0.7978846
        %v1418 = vadd.f32 %v1034, 0.7978846
        %v1419 = vadd.f32 %v1035, 0.7978846
        %v1420 = vadd.f32 %v1036, 0.7978846
        %v1421 = vadd.f32 %v1037, 0.7978846
        %v1422 = vadd.f32 %v1038, 0.7978846
        %v1423 = vadd.f32 %v1039, 0.7978846
        %v1424 = vadd.f32 %v1040, 0.7978846
        %v1425 = vadd.f32 %v1041, 0.7978846
        %v1426 = vadd.f32 %v1042, 0.7978846
        %v1427 = vadd.f32 %v1043, 0.7978846
        %v1428 = vadd.f32 %v1044, 0.7978846
        %v1429 = vadd.f32 %v1045, 0.7978846
        %v1430 = vadd.f32 %v1046, 0.7978846
        %v1431 = vadd.f32 %v1047, 0.7978846
        %v1432 = vadd.f32 %v1048, 0.7978846
        %v1433 = vadd.f32 %v1049, 0.7978846
        %v1434 = vadd.f32 %v1050, 0.7978846
        %v1435 = vadd.f32 %v1051, 0.7978846
        %v1436 = vadd.f32 %v1052, 0.7978846
        %v1437 = vadd.f32 %v1053, 0.7978846
        %v1438 = vadd.f32 %v1054, 0.7978846
        %v1439 = vadd.f32 %v1055, 0.7978846
        %v1440 = vadd.f32 %v1056, 0.7978846
        %v1441 = vadd.f32 %v1057, 0.7978846
        %v1442 = vadd.f32 %v1058, 0.7978846
        %v1443 = vadd.f32 %v1059, 0.7978846
        %v1444 = vadd.f32 %v1060, 0.7978846
        %v1445 = vadd.f32 %v1061, 0.7978846
        %v1446 = vadd.f32 %v1062, 0.7978846
        %v1447 = vadd.f32 %v1063, 0.7978846
        %v1448 = vadd.f32 %v1064, 0.7978846
        %v1449 = vadd.f32 %v1065, 0.7978846
        %v1450 = vadd.f32 %v1066, 0.7978846
        %v1451 = vadd.f32 %v1067, 0.7978846
        %v1452 = vadd.f32 %v1068, 0.7978846
        %v1453 = vadd.f32 %v1069, 0.7978846
        %v1454 = vadd.f32 %v1070, 0.7978846
        %v1455 = vadd.f32 %v1071, 0.7978846
        %v1456 = vadd.f32 %v1072, 0.7978846
        %v1457 = vadd.f32 %v1073, 0.7978846
        %v1458 = vadd.f32 %v1074, 0.7978846
        %v1459 = vadd.f32 %v1075, 0.7978846
        %v1460 = vadd.f32 %v1076, 0.7978846
        %v1461 = vadd.f32 %v1077, 0.7978846
        %v1462 = vadd.f32 %v1078, 0.7978846
        %v1463 = vadd.f32 %v1079, 0.7978846
        %v1464 = vadd.f32 %v1080, 0.7978846
        %v1465 = vadd.f32 %v1081, 0.7978846
        %v1466 = vadd.f32 %v1082, 0.7978846
        %v1467 = vadd.f32 %v1083, 0.7978846
        %v1468 = vadd.f32 %v1084, 0.7978846
        %v1469 = vadd.f32 %v1085, 0.7978846
        %v1470 = vadd.f32 %v1086, 0.7978846
        %v1471 = vadd.f32 %v1087, 0.7978846
        %v1472 = vadd.f32 %v1088, 0.7978846
        %v1473 = vadd.f32 %v1089, 0.7978846
        %v1474 = vadd.f32 %v1090, 0.7978846
        %v1475 = vadd.f32 %v1091, 0.7978846
        %v1476 = vadd.f32 %v1092, 0.7978846
        %v1477 = vadd.f32 %v1093, 0.7978846
        %v1478 = vadd.f32 %v1094, 0.7978846
        %v1479 = vadd.f32 %v1095, 0.7978846
        %v1480 = vadd.f32 %v1096, 0.7978846
        %v1481 = vadd.f32 %v1097, 0.7978846
        %v1482 = vadd.f32 %v1098, 0.7978846
        %v1483 = vadd.f32 %v1099, 0.7978846
        %v1484 = vadd.f32 %v1100, 0.7978846
        %v1485 = vadd.f32 %v1101, 0.7978846
        %v1486 = vadd.f32 %v1102, 0.7978846
        %v1487 = vadd.f32 %v1103, 0.7978846
        %v1488 = vadd.f32 %v1104, 0.7978846
        %v1489 = vadd.f32 %v1105, 0.7978846
        %v1490 = vadd.f32 %v1106, 0.7978846
        %v1491 = vadd.f32 %v1107, 0.7978846
        %v1492 = vadd.f32 %v1108, 0.7978846
        %v1493 = vadd.f32 %v1109, 0.7978846
        %v1494 = vadd.f32 %v1110, 0.7978846
        %v1495 = vadd.f32 %v1111, 0.7978846
        %v1496 = vadd.f32 %v1112, 0.7978846
        %v1497 = vadd.f32 %v1113, 0.7978846
        %v1498 = vadd.f32 %v1114, 0.7978846
        %v1499 = vadd.f32 %v1115, 0.7978846
        %v1500 = vadd.f32 %v1116, 0.7978846
        %v1501 = vadd.f32 %v1117, 0.7978846
        %v1502 = vadd.f32 %v1118, 0.7978846
        %v1503 = vadd.f32 %v1119, 0.7978846
        %v1504 = vadd.f32 %v1120, 0.7978846
        %v1505 = vadd.f32 %v1121, 0.7978846
        %v1506 = vadd.f32 %v1122, 0.7978846
        %v1507 = vadd.f32 %v1123, 0.7978846
        %v1508 = vadd.f32 %v1124, 0.7978846
        %v1509 = vadd.f32 %v1125, 0.7978846
        %v1510 = vadd.f32 %v1126, 0.7978846
        %v1511 = vadd.f32 %v1127, 0.7978846
        %v1512 = vadd.f32 %v1128, 0.7978846
        %v1513 = vadd.f32 %v1129, 0.7978846
        %v1514 = vadd.f32 %v1130, 0.7978846
        %v1515 = vadd.f32 %v1131, 0.7978846
        %v1516 = vadd.f32 %v1132, 0.7978846
        %v1517 = vadd.f32 %v1133, 0.7978846
        %v1518 = vadd.f32 %v1134, 0.7978846
        %v1519 = vadd.f32 %v1135, 0.7978846
        %v1520 = vadd.f32 %v1136, 0.7978846
        %v1521 = vadd.f32 %v1137, 0.7978846
        %v1522 = vadd.f32 %v1138, 0.7978846
        %v1523 = vadd.f32 %v1139, 0.7978846
        %v1524 = vadd.f32 %v1140, 0.7978846
        %v1525 = vadd.f32 %v1141, 0.7978846
        %v1526 = vadd.f32 %v1142, 0.7978846
        %v1527 = vadd.f32 %v1143, 0.7978846
        %v1528 = vadd.f32 %v1144, 0.7978846
        %v1529 = vadd.f32 %v1145, 0.7978846
        %v1530 = vadd.f32 %v1146, 0.7978846
        %v1531 = vadd.f32 %v1147, 0.7978846
        %v1532 = vadd.f32 %v1148, 0.7978846
        %v1533 = vadd.f32 %v1149, 0.7978846
        %v1534 = vadd.f32 %v1150, 0.7978846
        %v1535 = vadd.f32 %v1151, 0.7978846
        %v1536 = vadd.f32 %v1152, 0.7978846
        %v1537 = vadd.f32 %v1153, 0.7978846
        %v1538 = vadd.f32 %v1154, 0.7978846
        %v1539 = vadd.f32 %v1155, 0.7978846
        %v1540 = vadd.f32 %v1156, 0.7978846
        %v1541 = vadd.f32 %v1157, 0.7978846
        %v1542 = vadd.f32 %v1158, 0.7978846
        %v1543 = vadd.f32 %v1159, 0.7978846
        %v1544 = vadd.f32 %v1160, 0.7978846
        %v1545 = vadd.f32 %v1161, 0.7978846
        %v1546 = vadd.f32 %v1162, 0.7978846
        %v1547 = vadd.f32 %v1163, 0.7978846
        %v1548 = vadd.f32 %v1164, 0.7978846
        %v1549 = vadd.f32 %v1165, 0.7978846
        %v1550 = vadd.f32 %v1166, 0.7978846
        %v1551 = vadd.f32 %v1167, 0.7978846
        %v1552 = vadd.f32 %v1168, 0.7978846
        %v1553 = vadd.f32 %v1169, 0.7978846
        %v1554 = vadd.f32 %v1170, 0.7978846
        %v1555 = vadd.f32 %v1171, 0.7978846
        %v1556 = vadd.f32 %v1172, 0.7978846
        %v1557 = vadd.f32 %v1173, 0.7978846
        %v1558 = vadd.f32 %v1174, 0.7978846
        %v1559 = vadd.f32 %v1175, 0.7978846
        %v1560 = vadd.f32 %v1176, 0.7978846
        %v1561 = vadd.f32 %v1177, 0.7978846
        %v1562 = vadd.f32 %v1178, 0.7978846
        %v1563 = vadd.f32 %v1179, 0.7978846
        %v1564 = vadd.f32 %v1180, 0.7978846
        %v1565 = vadd.f32 %v1181, 0.7978846
        %v1566 = vadd.f32 %v1182, 0.7978846
        %v1567 = vadd.f32 %v1183, 0.7978846
        %v1568 = vadd.f32 %v1184, 0.7978846
        %v1569 = vadd.f32 %v1185, 0.7978846
        %v1570 = vadd.f32 %v1186, 0.7978846
        %v1571 = vadd.f32 %v1187, 0.7978846
        %v1572 = vadd.f32 %v1188, 0.7978846
        %v1573 = vadd.f32 %v1189, 0.7978846
        %v1574 = vadd.f32 %v1190, 0.7978846
        %v1575 = vadd.f32 %v1191, 0.7978846
        %v1576 = vadd.f32 %v1192, 0.7978846
        %v1577 = vadd.f32 %v1193, 0.7978846
        %v1578 = vadd.f32 %v1194, 0.7978846
        %v1579 = vadd.f32 %v1195, 0.7978846
        %v1580 = vadd.f32 %v1196, 0.7978846
        %v1581 = vadd.f32 %v1197, 0.7978846
        %v1582 = vadd.f32 %v1198, 0.7978846
        %v1583 = vadd.f32 %v1199, 0.7978846
        %v1584 = vadd.f32 %v1200, 0.7978846
        %v1585 = vadd.f32 %v1201, 0.7978846
        %v1586 = vadd.f32 %v1202, 0.7978846
        %v1587 = vadd.f32 %v1203, 0.7978846
        %v1588 = vadd.f32 %v1204, 0.7978846
        %v1589 = vadd.f32 %v1205, 0.7978846
        %v1590 = vadd.f32 %v1206, 0.7978846
        %v1591 = vadd.f32 %v1207, 0.7978846
        %v1592 = vadd.f32 %v1208, 0.7978846
        %v1593 = vadd.f32 %v1209, 0.7978846
        %v1594 = vadd.f32 %v1210, 0.7978846
        %v1595 = vadd.f32 %v1211, 0.7978846
        %v1596 = vadd.f32 %v1212, 0.7978846
        %v1597 = vadd.f32 %v1213, 0.7978846
        %v1598 = vadd.f32 %v1214, 0.7978846
        %v1599 = vadd.f32 %v1215, 0.7978846
        %v1600 = vadd.f32 %v1216, 0.7978846
        %v1601 = vadd.f32 %v1217, 0.7978846
        %v1602 = vadd.f32 %v1218, 0.7978846
        %v1603 = vadd.f32 %v1219, 0.7978846
        %v1604 = vadd.f32 %v1220, 0.7978846
        %v1605 = vadd.f32 %v1221, 0.7978846
        %v1606 = vadd.f32 %v1222, 0.7978846
        %v1607 = vadd.f32 %v1223, 0.7978846
        %v1608 = vadd.f32 %v1224, 0.7978846
        %v1609 = vadd.f32 %v1225, 0.7978846
        %v1610 = vadd.f32 %v1226, 0.7978846
        %v1611 = vadd.f32 %v1227, 0.7978846
        %v1612 = vadd.f32 %v1228, 0.7978846
        %v1613 = vadd.f32 %v1229, 0.7978846
        %v1614 = vadd.f32 %v1230, 0.7978846
        %v1615 = vadd.f32 %v1231, 0.7978846
        %v1616 = vadd.f32 %v1232, 0.7978846
        %v1617 = vadd.f32 %v1233, 0.7978846
        %v1618 = vadd.f32 %v1234, 0.7978846
        %v1619 = vadd.f32 %v1235, 0.7978846
        %v1620 = vadd.f32 %v1236, 0.7978846
        %v1621 = vadd.f32 %v1237, 0.7978846
        %v1622 = vadd.f32 %v1238, 0.7978846
        %v1623 = vadd.f32 %v1239, 0.7978846
        %v1624 = vadd.f32 %v1240, 0.7978846
        %v1625 = vadd.f32 %v1241, 0.7978846
        %v1626 = vadd.f32 %v1242, 0.7978846
        %v1627 = vadd.f32 %v1243, 0.7978846
        %v1628 = vadd.f32 %v1244, 0.7978846
        %v1629 = vadd.f32 %v1245, 0.7978846
        %v1630 = vadd.f32 %v1246, 0.7978846
        %v1631 = vadd.f32 %v1247, 0.7978846
        %v1632 = vadd.f32 %v1248, 0.7978846
        %v1633 = vadd.f32 %v1249, 0.7978846
        %v1634 = vadd.f32 %v1250, 0.7978846
        %v1635 = vadd.f32 %v1251, 0.7978846
        %v1636 = vadd.f32 %v1252, 0.7978846
        %v1637 = vadd.f32 %v1253, 0.7978846
        %v1638 = vadd.f32 %v1254, 0.7978846
        %v1639 = vadd.f32 %v1255, 0.7978846
        %v1640 = vadd.f32 %v1256, 0.7978846
        %v1641 = vadd.f32 %v1257, 0.7978846
        %v1642 = vadd.f32 %v1258, 0.7978846
        %v1643 = vadd.f32 %v1259, 0.7978846
        %v1644 = vadd.f32 %v1260, 0.7978846
        %v1645 = vadd.f32 %v1261, 0.7978846
        %v1646 = vadd.f32 %v1262, 0.7978846
        %v1647 = vadd.f32 %v1263, 0.7978846
        %v1648 = vadd.f32 %v1264, 0.7978846
        %v1649 = vadd.f32 %v1265, 0.7978846
        %v1650 = vadd.f32 %v1266, 0.7978846
        %v1651 = vadd.f32 %v1267, 0.7978846
        %v1652 = vadd.f32 %v1268, 0.7978846
        %v1653 = vadd.f32 %v1269, 0.7978846
        %v1654 = vadd.f32 %v1270, 0.7978846
        %v1655 = vadd.f32 %v1271, 0.7978846
        %v1656 = vadd.f32 %v1272, 0.7978846
        %v1657 = vadd.f32 %v1273, 0.7978846
        %v1658 = vadd.f32 %v1274, 0.7978846
        %v1659 = vadd.f32 %v1275, 0.7978846
        %v1660 = vadd.f32 %v1276, 0.7978846
        %v1661 = vadd.f32 %v1277, 0.7978846
        %v1662 = vadd.f32 %v1278, 0.7978846
        %v1663 = vadd.f32 %v1279, 0.7978846
        %v1664 = vadd.f32 %v1280, 0.7978846
        %v1665 = vadd.f32 %v1281, 0.7978846
        %v1666 = vadd.f32 %v1282, 0.7978846
        %v1667 = vadd.f32 %v1283, 0.7978846
        %v1668 = vadd.f32 %v1284, 0.7978846
        %v1669 = vadd.f32 %v1285, 0.7978846
        %v1670 = vadd.f32 %v1286, 0.7978846
        %v1671 = vadd.f32 %v1287, 0.7978846
        %v1672 = vadd.f32 %v1288, 0.7978846
        %v1673 = vmul.f32 %v137, %v1289
        %v1674 = vmul.f32 %v138, %v1290
        %v1675 = vmul.f32 %v139, %v1291
        %v1676 = vmul.f32 %v140, %v1292
        %v1677 = vmul.f32 %v141, %v1293
        %v1678 = vmul.f32 %v142, %v1294
        %v1679 = vmul.f32 %v143, %v1295
        %v1680 = vmul.f32 %v144, %v1296
        %v1681 = vmul.f32 %v145, %v1297
        %v1682 = vmul.f32 %v146, %v1298
        %v1683 = vmul.f32 %v147, %v1299
        %v1684 = vmul.f32 %v148, %v1300
        %v1685 = vmul.f32 %v149, %v1301
        %v1686 = vmul.f32 %v150, %v1302
        %v1687 = vmul.f32 %v151, %v1303
        %v1688 = vmul.f32 %v152, %v1304
        %v1689 = vmul.f32 %v153, %v1305
        %v1690 = vmul.f32 %v154, %v1306
        %v1691 = vmul.f32 %v155, %v1307
        %v1692 = vmul.f32 %v156, %v1308
        %v1693 = vmul.f32 %v157, %v1309
        %v1694 = vmul.f32 %v158, %v1310
        %v1695 = vmul.f32 %v159, %v1311
        %v1696 = vmul.f32 %v160, %v1312
        %v1697 = vmul.f32 %v161, %v1313
        %v1698 = vmul.f32 %v162, %v1314
        %v1699 = vmul.f32 %v163, %v1315
        %v1700 = vmul.f32 %v164, %v1316
        %v1701 = vmul.f32 %v165, %v1317
        %v1702 = vmul.f32 %v166, %v1318
        %v1703 = vmul.f32 %v167, %v1319
        %v1704 = vmul.f32 %v168, %v1320
        %v1705 = vmul.f32 %v169, %v1321
        %v1706 = vmul.f32 %v170, %v1322
        %v1707 = vmul.f32 %v171, %v1323
        %v1708 = vmul.f32 %v172, %v1324
        %v1709 = vmul.f32 %v173, %v1325
        %v1710 = vmul.f32 %v174, %v1326
        %v1711 = vmul.f32 %v175, %v1327
        %v1712 = vmul.f32 %v176, %v1328
        %v1713 = vmul.f32 %v177, %v1329
        %v1714 = vmul.f32 %v178, %v1330
        %v1715 = vmul.f32 %v179, %v1331
        %v1716 = vmul.f32 %v180, %v1332
        %v1717 = vmul.f32 %v181, %v1333
        %v1718 = vmul.f32 %v182, %v1334
        %v1719 = vmul.f32 %v183, %v1335
        %v1720 = vmul.f32 %v184, %v1336
        %v1721 = vmul.f32 %v185, %v1337
        %v1722 = vmul.f32 %v186, %v1338
        %v1723 = vmul.f32 %v187, %v1339
        %v1724 = vmul.f32 %v188, %v1340
        %v1725 = vmul.f32 %v189, %v1341
        %v1726 = vmul.f32 %v190, %v1342
        %v1727 = vmul.f32 %v191, %v1343
        %v1728 = vmul.f32 %v192, %v1344
        %v1729 = vmul.f32 %v193, %v1345
        %v1730 = vmul.f32 %v194, %v1346
        %v1731 = vmul.f32 %v195, %v1347
        %v1732 = vmul.f32 %v196, %v1348
        %v1733 = vmul.f32 %v197, %v1349
        %v1734 = vmul.f32 %v198, %v1350
        %v1735 = vmul.f32 %v199, %v1351
        %v1736 = vmul.f32 %v200, %v1352
        %v1737 = vmul.f32 %v201, %v1353
        %v1738 = vmul.f32 %v202, %v1354
        %v1739 = vmul.f32 %v203, %v1355
        %v1740 = vmul.f32 %v204, %v1356
        %v1741 = vmul.f32 %v205, %v1357
        %v1742 = vmul.f32 %v206, %v1358
        %v1743 = vmul.f32 %v207, %v1359
        %v1744 = vmul.f32 %v208, %v1360
        %v1745 = vmul.f32 %v209, %v1361
        %v1746 = vmul.f32 %v210, %v1362
        %v1747 = vmul.f32 %v211, %v1363
        %v1748 = vmul.f32 %v212, %v1364
        %v1749 = vmul.f32 %v213, %v1365
        %v1750 = vmul.f32 %v214, %v1366
        %v1751 = vmul.f32 %v215, %v1367
        %v1752 = vmul.f32 %v216, %v1368
        %v1753 = vmul.f32 %v217, %v1369
        %v1754 = vmul.f32 %v218, %v1370
        %v1755 = vmul.f32 %v219, %v1371
        %v1756 = vmul.f32 %v220, %v1372
        %v1757 = vmul.f32 %v221, %v1373
        %v1758 = vmul.f32 %v222, %v1374
        %v1759 = vmul.f32 %v223, %v1375
        %v1760 = vmul.f32 %v224, %v1376
        %v1761 = vmul.f32 %v225, %v1377
        %v1762 = vmul.f32 %v226, %v1378
        %v1763 = vmul.f32 %v227, %v1379
        %v1764 = vmul.f32 %v228, %v1380
        %v1765 = vmul.f32 %v229, %v1381
        %v1766 = vmul.f32 %v230, %v1382
        %v1767 = vmul.f32 %v231, %v1383
        %v1768 = vmul.f32 %v232, %v1384
        %v1769 = vmul.f32 %v233, %v1385
        %v1770 = vmul.f32 %v234, %v1386
        %v1771 = vmul.f32 %v235, %v1387
        %v1772 = vmul.f32 %v236, %v1388
        %v1773 = vmul.f32 %v237, %v1389
        %v1774 = vmul.f32 %v238, %v1390
        %v1775 = vmul.f32 %v239, %v1391
        %v1776 = vmul.f32 %v240, %v1392
        %v1777 = vmul.f32 %v241, %v1393
        %v1778 = vmul.f32 %v242, %v1394
        %v1779 = vmul.f32 %v243, %v1395
        %v1780 = vmul.f32 %v244, %v1396
        %v1781 = vmul.f32 %v245, %v1397
        %v1782 = vmul.f32 %v246, %v1398
        %v1783 = vmul.f32 %v247, %v1399
        %v1784 = vmul.f32 %v248, %v1400
        %v1785 = vmul.f32 %v249, %v1401
        %v1786 = vmul.f32 %v250, %v1402
        %v1787 = vmul.f32 %v251, %v1403
        %v1788 = vmul.f32 %v252, %v1404
        %v1789 = vmul.f32 %v253, %v1405
        %v1790 = vmul.f32 %v254, %v1406
        %v1791 = vmul.f32 %v255, %v1407
        %v1792 = vmul.f32 %v256, %v1408
        %v1793 = vmul.f32 %v257, %v1409
        %v1794 = vmul.f32 %v258, %v1410
        %v1795 = vmul.f32 %v259, %v1411
        %v1796 = vmul.f32 %v260, %v1412
        %v1797 = vmul.f32 %v261, %v1413
        %v1798 = vmul.f32 %v262, %v1414
        %v1799 = vmul.f32 %v263, %v1415
        %v1800 = vmul.f32 %v264, %v1416
        %v1801 = vmul.f32 %v265, %v1417
        %v1802 = vmul.f32 %v266, %v1418
        %v1803 = vmul.f32 %v267, %v1419
        %v1804 = vmul.f32 %v268, %v1420
        %v1805 = vmul.f32 %v269, %v1421
        %v1806 = vmul.f32 %v270, %v1422
        %v1807 = vmul.f32 %v271, %v1423
        %v1808 = vmul.f32 %v272, %v1424
        %v1809 = vmul.f32 %v273, %v1425
        %v1810 = vmul.f32 %v274, %v1426
        %v1811 = vmul.f32 %v275, %v1427
        %v1812 = vmul.f32 %v276, %v1428
        %v1813 = vmul.f32 %v277, %v1429
        %v1814 = vmul.f32 %v278, %v1430
        %v1815 = vmul.f32 %v279, %v1431
        %v1816 = vmul.f32 %v280, %v1432
        %v1817 = vmul.f32 %v281, %v1433
        %v1818 = vmul.f32 %v282, %v1434
        %v1819 = vmul.f32 %v283, %v1435
        %v1820 = vmul.f32 %v284, %v1436
        %v1821 = vmul.f32 %v285, %v1437
        %v1822 = vmul.f32 %v286, %v1438
        %v1823 = vmul.f32 %v287, %v1439
        %v1824 = vmul.f32 %v288, %v1440
        %v1825 = vmul.f32 %v289, %v1441
        %v1826 = vmul.f32 %v290, %v1442
        %v1827 = vmul.f32 %v291, %v1443
        %v1828 = vmul.f32 %v292, %v1444
        %v1829 = vmul.f32 %v293, %v1445
        %v1830 = vmul.f32 %v294, %v1446
        %v1831 = vmul.f32 %v295, %v1447
        %v1832 = vmul.f32 %v296, %v1448
        %v1833 = vmul.f32 %v297, %v1449
        %v1834 = vmul.f32 %v298, %v1450
        %v1835 = vmul.f32 %v299, %v1451
        %v1836 = vmul.f32 %v300, %v1452
        %v1837 = vmul.f32 %v301, %v1453
        %v1838 = vmul.f32 %v302, %v1454
        %v1839 = vmul.f32 %v303, %v1455
        %v1840 = vmul.f32 %v304, %v1456
        %v1841 = vmul.f32 %v305, %v1457
        %v1842 = vmul.f32 %v306, %v1458
        %v1843 = vmul.f32 %v307, %v1459
        %v1844 = vmul.f32 %v308, %v1460
        %v1845 = vmul.f32 %v309, %v1461
        %v1846 = vmul.f32 %v310, %v1462
        %v1847 = vmul.f32 %v311, %v1463
        %v1848 = vmul.f32 %v312, %v1464
        %v1849 = vmul.f32 %v313, %v1465
        %v1850 = vmul.f32 %v314, %v1466
        %v1851 = vmul.f32 %v315, %v1467
        %v1852 = vmul.f32 %v316, %v1468
        %v1853 = vmul.f32 %v317, %v1469
        %v1854 = vmul.f32 %v318, %v1470
        %v1855 = vmul.f32 %v319, %v1471
        %v1856 = vmul.f32 %v320, %v1472
        %v1857 = vmul.f32 %v321, %v1473
        %v1858 = vmul.f32 %v322, %v1474
        %v1859 = vmul.f32 %v323, %v1475
        %v1860 = vmul.f32 %v324, %v1476
        %v1861 = vmul.f32 %v325, %v1477
        %v1862 = vmul.f32 %v326, %v1478
        %v1863 = vmul.f32 %v327, %v1479
        %v1864 = vmul.f32 %v328, %v1480
        %v1865 = vmul.f32 %v329, %v1481
        %v1866 = vmul.f32 %v330, %v1482
        %v1867 = vmul.f32 %v331, %v1483
        %v1868 = vmul.f32 %v332, %v1484
        %v1869 = vmul.f32 %v333, %v1485
        %v1870 = vmul.f32 %v334, %v1486
        %v1871 = vmul.f32 %v335, %v1487
        %v1872 = vmul.f32 %v336, %v1488
        %v1873 = vmul.f32 %v337, %v1489
        %v1874 = vmul.f32 %v338, %v1490
        %v1875 = vmul.f32 %v339, %v1491
        %v1876 = vmul.f32 %v340, %v1492
        %v1877 = vmul.f32 %v341, %v1493
        %v1878 = vmul.f32 %v342, %v1494
        %v1879 = vmul.f32 %v343, %v1495
        %v1880 = vmul.f32 %v344, %v1496
        %v1881 = vmul.f32 %v345, %v1497
        %v1882 = vmul.f32 %v346, %v1498
        %v1883 = vmul.f32 %v347, %v1499
        %v1884 = vmul.f32 %v348, %v1500
        %v1885 = vmul.f32 %v349, %v1501
        %v1886 = vmul.f32 %v350, %v1502
        %v1887 = vmul.f32 %v351, %v1503
        %v1888 = vmul.f32 %v352, %v1504
        %v1889 = vmul.f32 %v353, %v1505
        %v1890 = vmul.f32 %v354, %v1506
        %v1891 = vmul.f32 %v355, %v1507
        %v1892 = vmul.f32 %v356, %v1508
        %v1893 = vmul.f32 %v357, %v1509
        %v1894 = vmul.f32 %v358, %v1510
        %v1895 = vmul.f32 %v359, %v1511
        %v1896 = vmul.f32 %v360, %v1512
        %v1897 = vmul.f32 %v361, %v1513
        %v1898 = vmul.f32 %v362, %v1514
        %v1899 = vmul.f32 %v363, %v1515
        %v1900 = vmul.f32 %v364, %v1516
        %v1901 = vmul.f32 %v365, %v1517
        %v1902 = vmul.f32 %v366, %v1518
        %v1903 = vmul.f32 %v367, %v1519
        %v1904 = vmul.f32 %v368, %v1520
        %v1905 = vmul.f32 %v369, %v1521
        %v1906 = vmul.f32 %v370, %v1522
        %v1907 = vmul.f32 %v371, %v1523
        %v1908 = vmul.f32 %v372, %v1524
        %v1909 = vmul.f32 %v373, %v1525
        %v1910 = vmul.f32 %v374, %v1526
        %v1911 = vmul.f32 %v375, %v1527
        %v1912 = vmul.f32 %v376, %v1528
        %v1913 = vmul.f32 %v377, %v1529
        %v1914 = vmul.f32 %v378, %v1530
        %v1915 = vmul.f32 %v379, %v1531
        %v1916 = vmul.f32 %v380, %v1532
        %v1917 = vmul.f32 %v381, %v1533
        %v1918 = vmul.f32 %v382, %v1534
        %v1919 = vmul.f32 %v383, %v1535
        %v1920 = vmul.f32 %v384, %v1536
        %v1921 = vmul.f32 %v385, %v1537
        %v1922 = vmul.f32 %v386, %v1538
        %v1923 = vmul.f32 %v387, %v1539
        %v1924 = vmul.f32 %v388, %v1540
        %v1925 = vmul.f32 %v389, %v1541
        %v1926 = vmul.f32 %v390, %v1542
        %v1927 = vmul.f32 %v391, %v1543
        %v1928 = vmul.f32 %v392, %v1544
        %v1929 = vmul.f32 %v393, %v1545
        %v1930 = vmul.f32 %v394, %v1546
        %v1931 = vmul.f32 %v395, %v1547
        %v1932 = vmul.f32 %v396, %v1548
        %v1933 = vmul.f32 %v397, %v1549
        %v1934 = vmul.f32 %v398, %v1550
        %v1935 = vmul.f32 %v399, %v1551
        %v1936 = vmul.f32 %v400, %v1552
        %v1937 = vmul.f32 %v401, %v1553
        %v1938 = vmul.f32 %v402, %v1554
        %v1939 = vmul.f32 %v403, %v1555
        %v1940 = vmul.f32 %v404, %v1556
        %v1941 = vmul.f32 %v405, %v1557
        %v1942 = vmul.f32 %v406, %v1558
        %v1943 = vmul.f32 %v407, %v1559
        %v1944 = vmul.f32 %v408, %v1560
        %v1945 = vmul.f32 %v409, %v1561
        %v1946 = vmul.f32 %v410, %v1562
        %v1947 = vmul.f32 %v411, %v1563
        %v1948 = vmul.f32 %v412, %v1564
        %v1949 = vmul.f32 %v413, %v1565
        %v1950 = vmul.f32 %v414, %v1566
        %v1951 = vmul.f32 %v415, %v1567
        %v1952 = vmul.f32 %v416, %v1568
        %v1953 = vmul.f32 %v417, %v1569
        %v1954 = vmul.f32 %v418, %v1570
        %v1955 = vmul.f32 %v419, %v1571
        %v1956 = vmul.f32 %v420, %v1572
        %v1957 = vmul.f32 %v421, %v1573
        %v1958 = vmul.f32 %v422, %v1574
        %v1959 = vmul.f32 %v423, %v1575
        %v1960 = vmul.f32 %v424, %v1576
        %v1961 = vmul.f32 %v425, %v1577
        %v1962 = vmul.f32 %v426, %v1578
        %v1963 = vmul.f32 %v427, %v1579
        %v1964 = vmul.f32 %v428, %v1580
        %v1965 = vmul.f32 %v429, %v1581
        %v1966 = vmul.f32 %v430, %v1582
        %v1967 = vmul.f32 %v431, %v1583
        %v1968 = vmul.f32 %v432, %v1584
        %v1969 = vmul.f32 %v433, %v1585
        %v1970 = vmul.f32 %v434, %v1586
        %v1971 = vmul.f32 %v435, %v1587
        %v1972 = vmul.f32 %v436, %v1588
        %v1973 = vmul.f32 %v437, %v1589
        %v1974 = vmul.f32 %v438, %v1590
        %v1975 = vmul.f32 %v439, %v1591
        %v1976 = vmul.f32 %v440, %v1592
        %v1977 = vmul.f32 %v441, %v1593
        %v1978 = vmul.f32 %v442, %v1594
        %v1979 = vmul.f32 %v443, %v1595
        %v1980 = vmul.f32 %v444, %v1596
        %v1981 = vmul.f32 %v445, %v1597
        %v1982 = vmul.f32 %v446, %v1598
        %v1983 = vmul.f32 %v447, %v1599
        %v1984 = vmul.f32 %v448, %v1600
        %v1985 = vmul.f32 %v449, %v1601
        %v1986 = vmul.f32 %v450, %v1602
        %v1987 = vmul.f32 %v451, %v1603
        %v1988 = vmul.f32 %v452, %v1604
        %v1989 = vmul.f32 %v453, %v1605
        %v1990 = vmul.f32 %v454, %v1606
        %v1991 = vmul.f32 %v455, %v1607
        %v1992 = vmul.f32 %v456, %v1608
        %v1993 = vmul.f32 %v457, %v1609
        %v1994 = vmul.f32 %v458, %v1610
        %v1995 = vmul.f32 %v459, %v1611
        %v1996 = vmul.f32 %v460, %v1612
        %v1997 = vmul.f32 %v461, %v1613
        %v1998 = vmul.f32 %v462, %v1614
        %v1999 = vmul.f32 %v463, %v1615
        %v2000 = vmul.f32 %v464, %v1616
        %v2001 = vmul.f32 %v465, %v1617
        %v2002 = vmul.f32 %v466, %v1618
        %v2003 = vmul.f32 %v467, %v1619
        %v2004 = vmul.f32 %v468, %v1620
        %v2005 = vmul.f32 %v469, %v1621
        %v2006 = vmul.f32 %v470, %v1622
        %v2007 = vmul.f32 %v471, %v1623
        %v2008 = vmul.f32 %v472, %v1624
        %v2009 = vmul.f32 %v473, %v1625
        %v2010 = vmul.f32 %v474, %v1626
        %v2011 = vmul.f32 %v475, %v1627
        %v2012 = vmul.f32 %v476, %v1628
        %v2013 = vmul.f32 %v477, %v1629
        %v2014 = vmul.f32 %v478, %v1630
        %v2015 = vmul.f32 %v479, %v1631
        %v2016 = vmul.f32 %v480, %v1632
        %v2017 = vmul.f32 %v481, %v1633
        %v2018 = vmul.f32 %v482, %v1634
        %v2019 = vmul.f32 %v483, %v1635
        %v2020 = vmul.f32 %v484, %v1636
        %v2021 = vmul.f32 %v485, %v1637
        %v2022 = vmul.f32 %v486, %v1638
        %v2023 = vmul.f32 %v487, %v1639
        %v2024 = vmul.f32 %v488, %v1640
        %v2025 = vmul.f32 %v489, %v1641
        %v2026 = vmul.f32 %v490, %v1642
        %v2027 = vmul.f32 %v491, %v1643
        %v2028 = vmul.f32 %v492, %v1644
        %v2029 = vmul.f32 %v493, %v1645
        %v2030 = vmul.f32 %v494, %v1646
        %v2031 = vmul.f32 %v495, %v1647
        %v2032 = vmul.f32 %v496, %v1648
        %v2033 = vmul.f32 %v497, %v1649
        %v2034 = vmul.f32 %v498, %v1650
        %v2035 = vmul.f32 %v499, %v1651
        %v2036 = vmul.f32 %v500, %v1652
        %v2037 = vmul.f32 %v501, %v1653
        %v2038 = vmul.f32 %v502, %v1654
        %v2039 = vmul.f32 %v503, %v1655
        %v2040 = vmul.f32 %v504, %v1656
        %v2041 = vmul.f32 %v505, %v1657
        %v2042 = vmul.f32 %v506, %v1658
        %v2043 = vmul.f32 %v507, %v1659
        %v2044 = vmul.f32 %v508, %v1660
        %v2045 = vmul.f32 %v509, %v1661
        %v2046 = vmul.f32 %v510, %v1662
        %v2047 = vmul.f32 %v511, %v1663
        %v2048 = vmul.f32 %v512, %v1664
        %v2049 = vmul.f32 %v513, %v1665
        %v2050 = vmul.f32 %v514, %v1666
        %v2051 = vmul.f32 %v515, %v1667
        %v2052 = vmul.f32 %v516, %v1668
        %v2053 = vmul.f32 %v517, %v1669
        %v2054 = vmul.f32 %v518, %v1670
        %v2055 = vmul.f32 %v519, %v1671
        %v2056 = vmul.f32 %v520, %v1672
        %v2057 = vmul.f32 %v137, 0.5
        %v2058 = vmul.f32 %v138, 0.5
        %v2059 = vmul.f32 %v139, 0.5
        %v2060 = vmul.f32 %v140, 0.5
        %v2061 = vmul.f32 %v141, 0.5
        %v2062 = vmul.f32 %v142, 0.5
        %v2063 = vmul.f32 %v143, 0.5
        %v2064 = vmul.f32 %v144, 0.5
        %v2065 = vmul.f32 %v145, 0.5
        %v2066 = vmul.f32 %v146, 0.5
        %v2067 = vmul.f32 %v147, 0.5
        %v2068 = vmul.f32 %v148, 0.5
        %v2069 = vmul.f32 %v149, 0.5
        %v2070 = vmul.f32 %v150, 0.5
        %v2071 = vmul.f32 %v151, 0.5
        %v2072 = vmul.f32 %v152, 0.5
        %v2073 = vmul.f32 %v153, 0.5
        %v2074 = vmul.f32 %v154, 0.5
        %v2075 = vmul.f32 %v155, 0.5
        %v2076 = vmul.f32 %v156, 0.5
        %v2077 = vmul.f32 %v157, 0.5
        %v2078 = vmul.f32 %v158, 0.5
        %v2079 = vmul.f32 %v159, 0.5
        %v2080 = vmul.f32 %v160, 0.5
        %v2081 = vmul.f32 %v161, 0.5
        %v2082 = vmul.f32 %v162, 0.5
        %v2083 = vmul.f32 %v163, 0.5
        %v2084 = vmul.f32 %v164, 0.5
        %v2085 = vmul.f32 %v165, 0.5
        %v2086 = vmul.f32 %v166, 0.5
        %v2087 = vmul.f32 %v167, 0.5
        %v2088 = vmul.f32 %v168, 0.5
        %v2089 = vmul.f32 %v169, 0.5
        %v2090 = vmul.f32 %v170, 0.5
        %v2091 = vmul.f32 %v171, 0.5
        %v2092 = vmul.f32 %v172, 0.5
        %v2093 = vmul.f32 %v173, 0.5
        %v2094 = vmul.f32 %v174, 0.5
        %v2095 = vmul.f32 %v175, 0.5
        %v2096 = vmul.f32 %v176, 0.5
        %v2097 = vmul.f32 %v177, 0.5
        %v2098 = vmul.f32 %v178, 0.5
        %v2099 = vmul.f32 %v179, 0.5
        %v2100 = vmul.f32 %v180, 0.5
        %v2101 = vmul.f32 %v181, 0.5
        %v2102 = vmul.f32 %v182, 0.5
        %v2103 = vmul.f32 %v183, 0.5
        %v2104 = vmul.f32 %v184, 0.5
        %v2105 = vmul.f32 %v185, 0.5
        %v2106 = vmul.f32 %v186, 0.5
        %v2107 = vmul.f32 %v187, 0.5
        %v2108 = vmul.f32 %v188, 0.5
        %v2109 = vmul.f32 %v189, 0.5
        %v2110 = vmul.f32 %v190, 0.5
        %v2111 = vmul.f32 %v191, 0.5
        %v2112 = vmul.f32 %v192, 0.5
        %v2113 = vmul.f32 %v193, 0.5
        %v2114 = vmul.f32 %v194, 0.5
        %v2115 = vmul.f32 %v195, 0.5
        %v2116 = vmul.f32 %v196, 0.5
        %v2117 = vmul.f32 %v197, 0.5
        %v2118 = vmul.f32 %v198, 0.5
        %v2119 = vmul.f32 %v199, 0.5
        %v2120 = vmul.f32 %v200, 0.5
        %v2121 = vmul.f32 %v201, 0.5
        %v2122 = vmul.f32 %v202, 0.5
        %v2123 = vmul.f32 %v203, 0.5
        %v2124 = vmul.f32 %v204, 0.5
        %v2125 = vmul.f32 %v205, 0.5
        %v2126 = vmul.f32 %v206, 0.5
        %v2127 = vmul.f32 %v207, 0.5
        %v2128 = vmul.f32 %v208, 0.5
        %v2129 = vmul.f32 %v209, 0.5
        %v2130 = vmul.f32 %v210, 0.5
        %v2131 = vmul.f32 %v211, 0.5
        %v2132 = vmul.f32 %v212, 0.5
        %v2133 = vmul.f32 %v213, 0.5
        %v2134 = vmul.f32 %v214, 0.5
        %v2135 = vmul.f32 %v215, 0.5
        %v2136 = vmul.f32 %v216, 0.5
        %v2137 = vmul.f32 %v217, 0.5
        %v2138 = vmul.f32 %v218, 0.5
        %v2139 = vmul.f32 %v219, 0.5
        %v2140 = vmul.f32 %v220, 0.5
        %v2141 = vmul.f32 %v221, 0.5
        %v2142 = vmul.f32 %v222, 0.5
        %v2143 = vmul.f32 %v223, 0.5
        %v2144 = vmul.f32 %v224, 0.5
        %v2145 = vmul.f32 %v225, 0.5
        %v2146 = vmul.f32 %v226, 0.5
        %v2147 = vmul.f32 %v227, 0.5
        %v2148 = vmul.f32 %v228, 0.5
        %v2149 = vmul.f32 %v229, 0.5
        %v2150 = vmul.f32 %v230, 0.5
        %v2151 = vmul.f32 %v231, 0.5
        %v2152 = vmul.f32 %v232, 0.5
        %v2153 = vmul.f32 %v233, 0.5
        %v2154 = vmul.f32 %v234, 0.5
        %v2155 = vmul.f32 %v235, 0.5
        %v2156 = vmul.f32 %v236, 0.5
        %v2157 = vmul.f32 %v237, 0.5
        %v2158 = vmul.f32 %v238, 0.5
        %v2159 = vmul.f32 %v239, 0.5
        %v2160 = vmul.f32 %v240, 0.5
        %v2161 = vmul.f32 %v241, 0.5
        %v2162 = vmul.f32 %v242, 0.5
        %v2163 = vmul.f32 %v243, 0.5
        %v2164 = vmul.f32 %v244, 0.5
        %v2165 = vmul.f32 %v245, 0.5
        %v2166 = vmul.f32 %v246, 0.5
        %v2167 = vmul.f32 %v247, 0.5
        %v2168 = vmul.f32 %v248, 0.5
        %v2169 = vmul.f32 %v249, 0.5
        %v2170 = vmul.f32 %v250, 0.5
        %v2171 = vmul.f32 %v251, 0.5
        %v2172 = vmul.f32 %v252, 0.5
        %v2173 = vmul.f32 %v253, 0.5
        %v2174 = vmul.f32 %v254, 0.5
        %v2175 = vmul.f32 %v255, 0.5
        %v2176 = vmul.f32 %v256, 0.5
        %v2177 = vmul.f32 %v257, 0.5
        %v2178 = vmul.f32 %v258, 0.5
        %v2179 = vmul.f32 %v259, 0.5
        %v2180 = vmul.f32 %v260, 0.5
        %v2181 = vmul.f32 %v261, 0.5
        %v2182 = vmul.f32 %v262, 0.5
        %v2183 = vmul.f32 %v263, 0.5
        %v2184 = vmul.f32 %v264, 0.5
        %v2185 = vmul.f32 %v265, 0.5
        %v2186 = vmul.f32 %v266, 0.5
        %v2187 = vmul.f32 %v267, 0.5
        %v2188 = vmul.f32 %v268, 0.5
        %v2189 = vmul.f32 %v269, 0.5
        %v2190 = vmul.f32 %v270, 0.5
        %v2191 = vmul.f32 %v271, 0.5
        %v2192 = vmul.f32 %v272, 0.5
        %v2193 = vmul.f32 %v273, 0.5
        %v2194 = vmul.f32 %v274, 0.5
        %v2195 = vmul.f32 %v275, 0.5
        %v2196 = vmul.f32 %v276, 0.5
        %v2197 = vmul.f32 %v277, 0.5
        %v2198 = vmul.f32 %v278, 0.5
        %v2199 = vmul.f32 %v279, 0.5
        %v2200 = vmul.f32 %v280, 0.5
        %v2201 = vmul.f32 %v281, 0.5
        %v2202 = vmul.f32 %v282, 0.5
        %v2203 = vmul.f32 %v283, 0.5
        %v2204 = vmul.f32 %v284, 0.5
        %v2205 = vmul.f32 %v285, 0.5
        %v2206 = vmul.f32 %v286, 0.5
        %v2207 = vmul.f32 %v287, 0.5
        %v2208 = vmul.f32 %v288, 0.5
        %v2209 = vmul.f32 %v289, 0.5
        %v2210 = vmul.f32 %v290, 0.5
        %v2211 = vmul.f32 %v291, 0.5
        %v2212 = vmul.f32 %v292, 0.5
        %v2213 = vmul.f32 %v293, 0.5
        %v2214 = vmul.f32 %v294, 0.5
        %v2215 = vmul.f32 %v295, 0.5
        %v2216 = vmul.f32 %v296, 0.5
        %v2217 = vmul.f32 %v297, 0.5
        %v2218 = vmul.f32 %v298, 0.5
        %v2219 = vmul.f32 %v299, 0.5
        %v2220 = vmul.f32 %v300, 0.5
        %v2221 = vmul.f32 %v301, 0.5
        %v2222 = vmul.f32 %v302, 0.5
        %v2223 = vmul.f32 %v303, 0.5
        %v2224 = vmul.f32 %v304, 0.5
        %v2225 = vmul.f32 %v305, 0.5
        %v2226 = vmul.f32 %v306, 0.5
        %v2227 = vmul.f32 %v307, 0.5
        %v2228 = vmul.f32 %v308, 0.5
        %v2229 = vmul.f32 %v309, 0.5
        %v2230 = vmul.f32 %v310, 0.5
        %v2231 = vmul.f32 %v311, 0.5
        %v2232 = vmul.f32 %v312, 0.5
        %v2233 = vmul.f32 %v313, 0.5
        %v2234 = vmul.f32 %v314, 0.5
        %v2235 = vmul.f32 %v315, 0.5
        %v2236 = vmul.f32 %v316, 0.5
        %v2237 = vmul.f32 %v317, 0.5
        %v2238 = vmul.f32 %v318, 0.5
        %v2239 = vmul.f32 %v319, 0.5
        %v2240 = vmul.f32 %v320, 0.5
        %v2241 = vmul.f32 %v321, 0.5
        %v2242 = vmul.f32 %v322, 0.5
        %v2243 = vmul.f32 %v323, 0.5
        %v2244 = vmul.f32 %v324, 0.5
        %v2245 = vmul.f32 %v325, 0.5
        %v2246 = vmul.f32 %v326, 0.5
        %v2247 = vmul.f32 %v327, 0.5
        %v2248 = vmul.f32 %v328, 0.5
        %v2249 = vmul.f32 %v329, 0.5
        %v2250 = vmul.f32 %v330, 0.5
        %v2251 = vmul.f32 %v331, 0.5
        %v2252 = vmul.f32 %v332, 0.5
        %v2253 = vmul.f32 %v333, 0.5
        %v2254 = vmul.f32 %v334, 0.5
        %v2255 = vmul.f32 %v335, 0.5
        %v2256 = vmul.f32 %v336, 0.5
        %v2257 = vmul.f32 %v337, 0.5
        %v2258 = vmul.f32 %v338, 0.5
        %v2259 = vmul.f32 %v339, 0.5
        %v2260 = vmul.f32 %v340, 0.5
        %v2261 = vmul.f32 %v341, 0.5
        %v2262 = vmul.f32 %v342, 0.5
        %v2263 = vmul.f32 %v343, 0.5
        %v2264 = vmul.f32 %v344, 0.5
        %v2265 = vmul.f32 %v345, 0.5
        %v2266 = vmul.f32 %v346, 0.5
        %v2267 = vmul.f32 %v347, 0.5
        %v2268 = vmul.f32 %v348, 0.5
        %v2269 = vmul.f32 %v349, 0.5
        %v2270 = vmul.f32 %v350, 0.5
        %v2271 = vmul.f32 %v351, 0.5
        %v2272 = vmul.f32 %v352, 0.5
        %v2273 = vmul.f32 %v353, 0.5
        %v2274 = vmul.f32 %v354, 0.5
        %v2275 = vmul.f32 %v355, 0.5
        %v2276 = vmul.f32 %v356, 0.5
        %v2277 = vmul.f32 %v357, 0.5
        %v2278 = vmul.f32 %v358, 0.5
        %v2279 = vmul.f32 %v359, 0.5
        %v2280 = vmul.f32 %v360, 0.5
        %v2281 = vmul.f32 %v361, 0.5
        %v2282 = vmul.f32 %v362, 0.5
        %v2283 = vmul.f32 %v363, 0.5
        %v2284 = vmul.f32 %v364, 0.5
        %v2285 = vmul.f32 %v365, 0.5
        %v2286 = vmul.f32 %v366, 0.5
        %v2287 = vmul.f32 %v367, 0.5
        %v2288 = vmul.f32 %v368, 0.5
        %v2289 = vmul.f32 %v369, 0.5
        %v2290 = vmul.f32 %v370, 0.5
        %v2291 = vmul.f32 %v371, 0.5
        %v2292 = vmul.f32 %v372, 0.5
        %v2293 = vmul.f32 %v373, 0.5
        %v2294 = vmul.f32 %v374, 0.5
        %v2295 = vmul.f32 %v375, 0.5
        %v2296 = vmul.f32 %v376, 0.5
        %v2297 = vmul.f32 %v377, 0.5
        %v2298 = vmul.f32 %v378, 0.5
        %v2299 = vmul.f32 %v379, 0.5
        %v2300 = vmul.f32 %v380, 0.5
        %v2301 = vmul.f32 %v381, 0.5
        %v2302 = vmul.f32 %v382, 0.5
        %v2303 = vmul.f32 %v383, 0.5
        %v2304 = vmul.f32 %v384, 0.5
        %v2305 = vmul.f32 %v385, 0.5
        %v2306 = vmul.f32 %v386, 0.5
        %v2307 = vmul.f32 %v387, 0.5
        %v2308 = vmul.f32 %v388, 0.5
        %v2309 = vmul.f32 %v389, 0.5
        %v2310 = vmul.f32 %v390, 0.5
        %v2311 = vmul.f32 %v391, 0.5
        %v2312 = vmul.f32 %v392, 0.5
        %v2313 = vmul.f32 %v393, 0.5
        %v2314 = vmul.f32 %v394, 0.5
        %v2315 = vmul.f32 %v395, 0.5
        %v2316 = vmul.f32 %v396, 0.5
        %v2317 = vmul.f32 %v397, 0.5
        %v2318 = vmul.f32 %v398, 0.5
        %v2319 = vmul.f32 %v399, 0.5
        %v2320 = vmul.f32 %v400, 0.5
        %v2321 = vmul.f32 %v401, 0.5
        %v2322 = vmul.f32 %v402, 0.5
        %v2323 = vmul.f32 %v403, 0.5
        %v2324 = vmul.f32 %v404, 0.5
        %v2325 = vmul.f32 %v405, 0.5
        %v2326 = vmul.f32 %v406, 0.5
        %v2327 = vmul.f32 %v407, 0.5
        %v2328 = vmul.f32 %v408, 0.5
        %v2329 = vmul.f32 %v409, 0.5
        %v2330 = vmul.f32 %v410, 0.5
        %v2331 = vmul.f32 %v411, 0.5
        %v2332 = vmul.f32 %v412, 0.5
        %v2333 = vmul.f32 %v413, 0.5
        %v2334 = vmul.f32 %v414, 0.5
        %v2335 = vmul.f32 %v415, 0.5
        %v2336 = vmul.f32 %v416, 0.5
        %v2337 = vmul.f32 %v417, 0.5
        %v2338 = vmul.f32 %v418, 0.5
        %v2339 = vmul.f32 %v419, 0.5
        %v2340 = vmul.f32 %v420, 0.5
        %v2341 = vmul.f32 %v421, 0.5
        %v2342 = vmul.f32 %v422, 0.5
        %v2343 = vmul.f32 %v423, 0.5
        %v2344 = vmul.f32 %v424, 0.5
        %v2345 = vmul.f32 %v425, 0.5
        %v2346 = vmul.f32 %v426, 0.5
        %v2347 = vmul.f32 %v427, 0.5
        %v2348 = vmul.f32 %v428, 0.5
        %v2349 = vmul.f32 %v429, 0.5
        %v2350 = vmul.f32 %v430, 0.5
        %v2351 = vmul.f32 %v431, 0.5
        %v2352 = vmul.f32 %v432, 0.5
        %v2353 = vmul.f32 %v433, 0.5
        %v2354 = vmul.f32 %v434, 0.5
        %v2355 = vmul.f32 %v435, 0.5
        %v2356 = vmul.f32 %v436, 0.5
        %v2357 = vmul.f32 %v437, 0.5
        %v2358 = vmul.f32 %v438, 0.5
        %v2359 = vmul.f32 %v439, 0.5
        %v2360 = vmul.f32 %v440, 0.5
        %v2361 = vmul.f32 %v441, 0.5
        %v2362 = vmul.f32 %v442, 0.5
        %v2363 = vmul.f32 %v443, 0.5
        %v2364 = vmul.f32 %v444, 0.5
        %v2365 = vmul.f32 %v445, 0.5
        %v2366 = vmul.f32 %v446, 0.5
        %v2367 = vmul.f32 %v447, 0.5
        %v2368 = vmul.f32 %v448, 0.5
        %v2369 = vmul.f32 %v449, 0.5
        %v2370 = vmul.f32 %v450, 0.5
        %v2371 = vmul.f32 %v451, 0.5
        %v2372 = vmul.f32 %v452, 0.5
        %v2373 = vmul.f32 %v453, 0.5
        %v2374 = vmul.f32 %v454, 0.5
        %v2375 = vmul.f32 %v455, 0.5
        %v2376 = vmul.f32 %v456, 0.5
        %v2377 = vmul.f32 %v457, 0.5
        %v2378 = vmul.f32 %v458, 0.5
        %v2379 = vmul.f32 %v459, 0.5
        %v2380 = vmul.f32 %v460, 0.5
        %v2381 = vmul.f32 %v461, 0.5
        %v2382 = vmul.f32 %v462, 0.5
        %v2383 = vmul.f32 %v463, 0.5
        %v2384 = vmul.f32 %v464, 0.5
        %v2385 = vmul.f32 %v465, 0.5
        %v2386 = vmul.f32 %v466, 0.5
        %v2387 = vmul.f32 %v467, 0.5
        %v2388 = vmul.f32 %v468, 0.5
        %v2389 = vmul.f32 %v469, 0.5
        %v2390 = vmul.f32 %v470, 0.5
        %v2391 = vmul.f32 %v471, 0.5
        %v2392 = vmul.f32 %v472, 0.5
        %v2393 = vmul.f32 %v473, 0.5
        %v2394 = vmul.f32 %v474, 0.5
        %v2395 = vmul.f32 %v475, 0.5
        %v2396 = vmul.f32 %v476, 0.5
        %v2397 = vmul.f32 %v477, 0.5
        %v2398 = vmul.f32 %v478, 0.5
        %v2399 = vmul.f32 %v479, 0.5
        %v2400 = vmul.f32 %v480, 0.5
        %v2401 = vmul.f32 %v481, 0.5
        %v2402 = vmul.f32 %v482, 0.5
        %v2403 = vmul.f32 %v483, 0.5
        %v2404 = vmul.f32 %v484, 0.5
        %v2405 = vmul.f32 %v485, 0.5
        %v2406 = vmul.f32 %v486, 0.5
        %v2407 = vmul.f32 %v487, 0.5
        %v2408 = vmul.f32 %v488, 0.5
        %v2409 = vmul.f32 %v489, 0.5
        %v2410 = vmul.f32 %v490, 0.5
        %v2411 = vmul.f32 %v491, 0.5
        %v2412 = vmul.f32 %v492, 0.5
        %v2413 = vmul.f32 %v493, 0.5
        %v2414 = vmul.f32 %v494, 0.5
        %v2415 = vmul.f32 %v495, 0.5
        %v2416 = vmul.f32 %v496, 0.5
        %v2417 = vmul.f32 %v497, 0.5
        %v2418 = vmul.f32 %v498, 0.5
        %v2419 = vmul.f32 %v499, 0.5
        %v2420 = vmul.f32 %v500, 0.5
        %v2421 = vmul.f32 %v501, 0.5
        %v2422 = vmul.f32 %v502, 0.5
        %v2423 = vmul.f32 %v503, 0.5
        %v2424 = vmul.f32 %v504, 0.5
        %v2425 = vmul.f32 %v505, 0.5
        %v2426 = vmul.f32 %v506, 0.5
        %v2427 = vmul.f32 %v507, 0.5
        %v2428 = vmul.f32 %v508, 0.5
        %v2429 = vmul.f32 %v509, 0.5
        %v2430 = vmul.f32 %v510, 0.5
        %v2431 = vmul.f32 %v511, 0.5
        %v2432 = vmul.f32 %v512, 0.5
        %v2433 = vmul.f32 %v513, 0.5
        %v2434 = vmul.f32 %v514, 0.5
        %v2435 = vmul.f32 %v515, 0.5
        %v2436 = vmul.f32 %v516, 0.5
        %v2437 = vmul.f32 %v517, 0.5
        %v2438 = vmul.f32 %v518, 0.5
        %v2439 = vmul.f32 %v519, 0.5
        %v2440 = vmul.f32 %v520, 0.5
        %v2441 = vtanh.pop %v1673
        %v2442 = vtanh.pop %v1674
        %v2443 = vtanh.pop %v1675
        %v2444 = vtanh.pop %v1676
        %v2445 = vtanh.pop %v1677
        %v2446 = vtanh.pop %v1678
        %v2447 = vtanh.pop %v1679
        %v2448 = vtanh.pop %v1680
        %v2449 = vtanh.pop %v1681
        %v2450 = vtanh.pop %v1682
        %v2451 = vtanh.pop %v1683
        %v2452 = vtanh.pop %v1684
        %v2453 = vtanh.pop %v1685
        %v2454 = vtanh.pop %v1686
        %v2455 = vtanh.pop %v1687
        %v2456 = vtanh.pop %v1688
        %v2457 = vtanh.pop %v1689
        %v2458 = vtanh.pop %v1690
        %v2459 = vtanh.pop %v1691
        %v2460 = vtanh.pop %v1692
        %v2461 = vtanh.pop %v1693
        %v2462 = vtanh.pop %v1694
        %v2463 = vtanh.pop %v1695
        %v2464 = vtanh.pop %v1696
        %v2465 = vtanh.pop %v1697
        %v2466 = vtanh.pop %v1698
        %v2467 = vtanh.pop %v1699
        %v2468 = vtanh.pop %v1700
        %v2469 = vtanh.pop %v1701
        %v2470 = vtanh.pop %v1702
        %v2471 = vtanh.pop %v1703
        %v2472 = vtanh.pop %v1704
        %v2473 = vtanh.pop %v1705
        %v2474 = vtanh.pop %v1706
        %v2475 = vtanh.pop %v1707
        %v2476 = vtanh.pop %v1708
        %v2477 = vtanh.pop %v1709
        %v2478 = vtanh.pop %v1710
        %v2479 = vtanh.pop %v1711
        %v2480 = vtanh.pop %v1712
        %v2481 = vtanh.pop %v1713
        %v2482 = vtanh.pop %v1714
        %v2483 = vtanh.pop %v1715
        %v2484 = vtanh.pop %v1716
        %v2485 = vtanh.pop %v1717
        %v2486 = vtanh.pop %v1718
        %v2487 = vtanh.pop %v1719
        %v2488 = vtanh.pop %v1720
        %v2489 = vtanh.pop %v1721
        %v2490 = vtanh.pop %v1722
        %v2491 = vtanh.pop %v1723
        %v2492 = vtanh.pop %v1724
        %v2493 = vtanh.pop %v1725
        %v2494 = vtanh.pop %v1726
        %v2495 = vtanh.pop %v1727
        %v2496 = vtanh.pop %v1728
        %v2497 = vtanh.pop %v1729
        %v2498 = vtanh.pop %v1730
        %v2499 = vtanh.pop %v1731
        %v2500 = vtanh.pop %v1732
        %v2501 = vtanh.pop %v1733
        %v2502 = vtanh.pop %v1734
        %v2503 = vtanh.pop %v1735
        %v2504 = vtanh.pop %v1736
        %v2505 = vtanh.pop %v1737
        %v2506 = vtanh.pop %v1738
        %v2507 = vtanh.pop %v1739
        %v2508 = vtanh.pop %v1740
        %v2509 = vtanh.pop %v1741
        %v2510 = vtanh.pop %v1742
        %v2511 = vtanh.pop %v1743
        %v2512 = vtanh.pop %v1744
        %v2513 = vtanh.pop %v1745
        %v2514 = vtanh.pop %v1746
        %v2515 = vtanh.pop %v1747
        %v2516 = vtanh.pop %v1748
        %v2517 = vtanh.pop %v1749
        %v2518 = vtanh.pop %v1750
        %v2519 = vtanh.pop %v1751
        %v2520 = vtanh.pop %v1752
        %v2521 = vtanh.pop %v1753
        %v2522 = vtanh.pop %v1754
        %v2523 = vtanh.pop %v1755
        %v2524 = vtanh.pop %v1756
        %v2525 = vtanh.pop %v1757
        %v2526 = vtanh.pop %v1758
        %v2527 = vtanh.pop %v1759
        %v2528 = vtanh.pop %v1760
        %v2529 = vtanh.pop %v1761
        %v2530 = vtanh.pop %v1762
        %v2531 = vtanh.pop %v1763
        %v2532 = vtanh.pop %v1764
        %v2533 = vtanh.pop %v1765
        %v2534 = vtanh.pop %v1766
        %v2535 = vtanh.pop %v1767
        %v2536 = vtanh.pop %v1768
        %v2537 = vtanh.pop %v1769
        %v2538 = vtanh.pop %v1770
        %v2539 = vtanh.pop %v1771
        %v2540 = vtanh.pop %v1772
        %v2541 = vtanh.pop %v1773
        %v2542 = vtanh.pop %v1774
        %v2543 = vtanh.pop %v1775
        %v2544 = vtanh.pop %v1776
        %v2545 = vtanh.pop %v1777
        %v2546 = vtanh.pop %v1778
        %v2547 = vtanh.pop %v1779
        %v2548 = vtanh.pop %v1780
        %v2549 = vtanh.pop %v1781
        %v2550 = vtanh.pop %v1782
        %v2551 = vtanh.pop %v1783
        %v2552 = vtanh.pop %v1784
        %v2553 = vtanh.pop %v1785
        %v2554 = vtanh.pop %v1786
        %v2555 = vtanh.pop %v1787
        %v2556 = vtanh.pop %v1788
        %v2557 = vtanh.pop %v1789
        %v2558 = vtanh.pop %v1790
        %v2559 = vtanh.pop %v1791
        %v2560 = vtanh.pop %v1792
        %v2561 = vtanh.pop %v1793
        %v2562 = vtanh.pop %v1794
        %v2563 = vtanh.pop %v1795
        %v2564 = vtanh.pop %v1796
        %v2565 = vtanh.pop %v1797
        %v2566 = vtanh.pop %v1798
        %v2567 = vtanh.pop %v1799
        %v2568 = vtanh.pop %v1800
        %v2569 = vtanh.pop %v1801
        %v2570 = vtanh.pop %v1802
        %v2571 = vtanh.pop %v1803
        %v2572 = vtanh.pop %v1804
        %v2573 = vtanh.pop %v1805
        %v2574 = vtanh.pop %v1806
        %v2575 = vtanh.pop %v1807
        %v2576 = vtanh.pop %v1808
        %v2577 = vtanh.pop %v1809
        %v2578 = vtanh.pop %v1810
        %v2579 = vtanh.pop %v1811
        %v2580 = vtanh.pop %v1812
        %v2581 = vtanh.pop %v1813
        %v2582 = vtanh.pop %v1814
        %v2583 = vtanh.pop %v1815
        %v2584 = vtanh.pop %v1816
        %v2585 = vtanh.pop %v1817
        %v2586 = vtanh.pop %v1818
        %v2587 = vtanh.pop %v1819
        %v2588 = vtanh.pop %v1820
        %v2589 = vtanh.pop %v1821
        %v2590 = vtanh.pop %v1822
        %v2591 = vtanh.pop %v1823
        %v2592 = vtanh.pop %v1824
        %v2593 = vtanh.pop %v1825
        %v2594 = vtanh.pop %v1826
        %v2595 = vtanh.pop %v1827
        %v2596 = vtanh.pop %v1828
        %v2597 = vtanh.pop %v1829
        %v2598 = vtanh.pop %v1830
        %v2599 = vtanh.pop %v1831
        %v2600 = vtanh.pop %v1832
        %v2601 = vtanh.pop %v1833
        %v2602 = vtanh.pop %v1834
        %v2603 = vtanh.pop %v1835
        %v2604 = vtanh.pop %v1836
        %v2605 = vtanh.pop %v1837
        %v2606 = vtanh.pop %v1838
        %v2607 = vtanh.pop %v1839
        %v2608 = vtanh.pop %v1840
        %v2609 = vtanh.pop %v1841
        %v2610 = vtanh.pop %v1842
        %v2611 = vtanh.pop %v1843
        %v2612 = vtanh.pop %v1844
        %v2613 = vtanh.pop %v1845
        %v2614 = vtanh.pop %v1846
        %v2615 = vtanh.pop %v1847
        %v2616 = vtanh.pop %v1848
        %v2617 = vtanh.pop %v1849
        %v2618 = vtanh.pop %v1850
        %v2619 = vtanh.pop %v1851
        %v2620 = vtanh.pop %v1852
        %v2621 = vtanh.pop %v1853
        %v2622 = vtanh.pop %v1854
        %v2623 = vtanh.pop %v1855
        %v2624 = vtanh.pop %v1856
        %v2625 = vtanh.pop %v1857
        %v2626 = vtanh.pop %v1858
        %v2627 = vtanh.pop %v1859
        %v2628 = vtanh.pop %v1860
        %v2629 = vtanh.pop %v1861
        %v2630 = vtanh.pop %v1862
        %v2631 = vtanh.pop %v1863
        %v2632 = vtanh.pop %v1864
        %v2633 = vtanh.pop %v1865
        %v2634 = vtanh.pop %v1866
        %v2635 = vtanh.pop %v1867
        %v2636 = vtanh.pop %v1868
        %v2637 = vtanh.pop %v1869
        %v2638 = vtanh.pop %v1870
        %v2639 = vtanh.pop %v1871
        %v2640 = vtanh.pop %v1872
        %v2641 = vtanh.pop %v1873
        %v2642 = vtanh.pop %v1874
        %v2643 = vtanh.pop %v1875
        %v2644 = vtanh.pop %v1876
        %v2645 = vtanh.pop %v1877
        %v2646 = vtanh.pop %v1878
        %v2647 = vtanh.pop %v1879
        %v2648 = vtanh.pop %v1880
        %v2649 = vtanh.pop %v1881
        %v2650 = vtanh.pop %v1882
        %v2651 = vtanh.pop %v1883
        %v2652 = vtanh.pop %v1884
        %v2653 = vtanh.pop %v1885
        %v2654 = vtanh.pop %v1886
        %v2655 = vtanh.pop %v1887
        %v2656 = vtanh.pop %v1888
        %v2657 = vtanh.pop %v1889
        %v2658 = vtanh.pop %v1890
        %v2659 = vtanh.pop %v1891
        %v2660 = vtanh.pop %v1892
        %v2661 = vtanh.pop %v1893
        %v2662 = vtanh.pop %v1894
        %v2663 = vtanh.pop %v1895
        %v2664 = vtanh.pop %v1896
        %v2665 = vtanh.pop %v1897
        %v2666 = vtanh.pop %v1898
        %v2667 = vtanh.pop %v1899
        %v2668 = vtanh.pop %v1900
        %v2669 = vtanh.pop %v1901
        %v2670 = vtanh.pop %v1902
        %v2671 = vtanh.pop %v1903
        %v2672 = vtanh.pop %v1904
        %v2673 = vtanh.pop %v1905
        %v2674 = vtanh.pop %v1906
        %v2675 = vtanh.pop %v1907
        %v2676 = vtanh.pop %v1908
        %v2677 = vtanh.pop %v1909
        %v2678 = vtanh.pop %v1910
        %v2679 = vtanh.pop %v1911
        %v2680 = vtanh.pop %v1912
        %v2681 = vtanh.pop %v1913
        %v2682 = vtanh.pop %v1914
        %v2683 = vtanh.pop %v1915
        %v2684 = vtanh.pop %v1916
        %v2685 = vtanh.pop %v1917
        %v2686 = vtanh.pop %v1918
        %v2687 = vtanh.pop %v1919
        %v2688 = vtanh.pop %v1920
        %v2689 = vtanh.pop %v1921
        %v2690 = vtanh.pop %v1922
        %v2691 = vtanh.pop %v1923
        %v2692 = vtanh.pop %v1924
        %v2693 = vtanh.pop %v1925
        %v2694 = vtanh.pop %v1926
        %v2695 = vtanh.pop %v1927
        %v2696 = vtanh.pop %v1928
        %v2697 = vtanh.pop %v1929
        %v2698 = vtanh.pop %v1930
        %v2699 = vtanh.pop %v1931
        %v2700 = vtanh.pop %v1932
        %v2701 = vtanh.pop %v1933
        %v2702 = vtanh.pop %v1934
        %v2703 = vtanh.pop %v1935
        %v2704 = vtanh.pop %v1936
        %v2705 = vtanh.pop %v1937
        %v2706 = vtanh.pop %v1938
        %v2707 = vtanh.pop %v1939
        %v2708 = vtanh.pop %v1940
        %v2709 = vtanh.pop %v1941
        %v2710 = vtanh.pop %v1942
        %v2711 = vtanh.pop %v1943
        %v2712 = vtanh.pop %v1944
        %v2713 = vtanh.pop %v1945
        %v2714 = vtanh.pop %v1946
        %v2715 = vtanh.pop %v1947
        %v2716 = vtanh.pop %v1948
        %v2717 = vtanh.pop %v1949
        %v2718 = vtanh.pop %v1950
        %v2719 = vtanh.pop %v1951
        %v2720 = vtanh.pop %v1952
        %v2721 = vtanh.pop %v1953
        %v2722 = vtanh.pop %v1954
        %v2723 = vtanh.pop %v1955
        %v2724 = vtanh.pop %v1956
        %v2725 = vtanh.pop %v1957
        %v2726 = vtanh.pop %v1958
        %v2727 = vtanh.pop %v1959
        %v2728 = vtanh.pop %v1960
        %v2729 = vtanh.pop %v1961
        %v2730 = vtanh.pop %v1962
        %v2731 = vtanh.pop %v1963
        %v2732 = vtanh.pop %v1964
        %v2733 = vtanh.pop %v1965
        %v2734 = vtanh.pop %v1966
        %v2735 = vtanh.pop %v1967
        %v2736 = vtanh.pop %v1968
        %v2737 = vtanh.pop %v1969
        %v2738 = vtanh.pop %v1970
        %v2739 = vtanh.pop %v1971
        %v2740 = vtanh.pop %v1972
        %v2741 = vtanh.pop %v1973
        %v2742 = vtanh.pop %v1974
        %v2743 = vtanh.pop %v1975
        %v2744 = vtanh.pop %v1976
        %v2745 = vtanh.pop %v1977
        %v2746 = vtanh.pop %v1978
        %v2747 = vtanh.pop %v1979
        %v2748 = vtanh.pop %v1980
        %v2749 = vtanh.pop %v1981
        %v2750 = vtanh.pop %v1982
        %v2751 = vtanh.pop %v1983
        %v2752 = vtanh.pop %v1984
        %v2753 = vtanh.pop %v1985
        %v2754 = vtanh.pop %v1986
        %v2755 = vtanh.pop %v1987
        %v2756 = vtanh.pop %v1988
        %v2757 = vtanh.pop %v1989
        %v2758 = vtanh.pop %v1990
        %v2759 = vtanh.pop %v1991
        %v2760 = vtanh.pop %v1992
        %v2761 = vtanh.pop %v1993
        %v2762 = vtanh.pop %v1994
        %v2763 = vtanh.pop %v1995
        %v2764 = vtanh.pop %v1996
        %v2765 = vtanh.pop %v1997
        %v2766 = vtanh.pop %v1998
        %v2767 = vtanh.pop %v1999
        %v2768 = vtanh.pop %v2000
        %v2769 = vtanh.pop %v2001
        %v2770 = vtanh.pop %v2002
        %v2771 = vtanh.pop %v2003
        %v2772 = vtanh.pop %v2004
        %v2773 = vtanh.pop %v2005
        %v2774 = vtanh.pop %v2006
        %v2775 = vtanh.pop %v2007
        %v2776 = vtanh.pop %v2008
        %v2777 = vtanh.pop %v2009
        %v2778 = vtanh.pop %v2010
        %v2779 = vtanh.pop %v2011
        %v2780 = vtanh.pop %v2012
        %v2781 = vtanh.pop %v2013
        %v2782 = vtanh.pop %v2014
        %v2783 = vtanh.pop %v2015
        %v2784 = vtanh.pop %v2016
        %v2785 = vtanh.pop %v2017
        %v2786 = vtanh.pop %v2018
        %v2787 = vtanh.pop %v2019
        %v2788 = vtanh.pop %v2020
        %v2789 = vtanh.pop %v2021
        %v2790 = vtanh.pop %v2022
        %v2791 = vtanh.pop %v2023
        %v2792 = vtanh.pop %v2024
        %v2793 = vtanh.pop %v2025
        %v2794 = vtanh.pop %v2026
        %v2795 = vtanh.pop %v2027
        %v2796 = vtanh.pop %v2028
        %v2797 = vtanh.pop %v2029
        %v2798 = vtanh.pop %v2030
        %v2799 = vtanh.pop %v2031
        %v2800 = vtanh.pop %v2032
        %v2801 = vtanh.pop %v2033
        %v2802 = vtanh.pop %v2034
        %v2803 = vtanh.pop %v2035
        %v2804 = vtanh.pop %v2036
        %v2805 = vtanh.pop %v2037
        %v2806 = vtanh.pop %v2038
        %v2807 = vtanh.pop %v2039
        %v2808 = vtanh.pop %v2040
        %v2809 = vtanh.pop %v2041
        %v2810 = vtanh.pop %v2042
        %v2811 = vtanh.pop %v2043
        %v2812 = vtanh.pop %v2044
        %v2813 = vtanh.pop %v2045
        %v2814 = vtanh.pop %v2046
        %v2815 = vtanh.pop %v2047
        %v2816 = vtanh.pop %v2048
        %v2817 = vtanh.pop %v2049
        %v2818 = vtanh.pop %v2050
        %v2819 = vtanh.pop %v2051
        %v2820 = vtanh.pop %v2052
        %v2821 = vtanh.pop %v2053
        %v2822 = vtanh.pop %v2054
        %v2823 = vtanh.pop %v2055
        %v2824 = vtanh.pop %v2056
        %v2825 = vmul.f32 %v2057, %v2441
        %v2826 = vmul.f32 %v2058, %v2442
        %v2827 = vmul.f32 %v2059, %v2443
        %v2828 = vmul.f32 %v2060, %v2444
        %v2829 = vmul.f32 %v2061, %v2445
        %v2830 = vmul.f32 %v2062, %v2446
        %v2831 = vmul.f32 %v2063, %v2447
        %v2832 = vmul.f32 %v2064, %v2448
        %v2833 = vmul.f32 %v2065, %v2449
        %v2834 = vmul.f32 %v2066, %v2450
        %v2835 = vmul.f32 %v2067, %v2451
        %v2836 = vmul.f32 %v2068, %v2452
        %v2837 = vmul.f32 %v2069, %v2453
        %v2838 = vmul.f32 %v2070, %v2454
        %v2839 = vmul.f32 %v2071, %v2455
        %v2840 = vmul.f32 %v2072, %v2456
        %v2841 = vmul.f32 %v2073, %v2457
        %v2842 = vmul.f32 %v2074, %v2458
        %v2843 = vmul.f32 %v2075, %v2459
        %v2844 = vmul.f32 %v2076, %v2460
        %v2845 = vmul.f32 %v2077, %v2461
        %v2846 = vmul.f32 %v2078, %v2462
        %v2847 = vmul.f32 %v2079, %v2463
        %v2848 = vmul.f32 %v2080, %v2464
        %v2849 = vmul.f32 %v2081, %v2465
        %v2850 = vmul.f32 %v2082, %v2466
        %v2851 = vmul.f32 %v2083, %v2467
        %v2852 = vmul.f32 %v2084, %v2468
        %v2853 = vmul.f32 %v2085, %v2469
        %v2854 = vmul.f32 %v2086, %v2470
        %v2855 = vmul.f32 %v2087, %v2471
        %v2856 = vmul.f32 %v2088, %v2472
        %v2857 = vmul.f32 %v2089, %v2473
        %v2858 = vmul.f32 %v2090, %v2474
        %v2859 = vmul.f32 %v2091, %v2475
        %v2860 = vmul.f32 %v2092, %v2476
        %v2861 = vmul.f32 %v2093, %v2477
        %v2862 = vmul.f32 %v2094, %v2478
        %v2863 = vmul.f32 %v2095, %v2479
        %v2864 = vmul.f32 %v2096, %v2480
        %v2865 = vmul.f32 %v2097, %v2481
        %v2866 = vmul.f32 %v2098, %v2482
        %v2867 = vmul.f32 %v2099, %v2483
        %v2868 = vmul.f32 %v2100, %v2484
        %v2869 = vmul.f32 %v2101, %v2485
        %v2870 = vmul.f32 %v2102, %v2486
        %v2871 = vmul.f32 %v2103, %v2487
        %v2872 = vmul.f32 %v2104, %v2488
        %v2873 = vmul.f32 %v2105, %v2489
        %v2874 = vmul.f32 %v2106, %v2490
        %v2875 = vmul.f32 %v2107, %v2491
        %v2876 = vmul.f32 %v2108, %v2492
        %v2877 = vmul.f32 %v2109, %v2493
        %v2878 = vmul.f32 %v2110, %v2494
        %v2879 = vmul.f32 %v2111, %v2495
        %v2880 = vmul.f32 %v2112, %v2496
        %v2881 = vmul.f32 %v2113, %v2497
        %v2882 = vmul.f32 %v2114, %v2498
        %v2883 = vmul.f32 %v2115, %v2499
        %v2884 = vmul.f32 %v2116, %v2500
        %v2885 = vmul.f32 %v2117, %v2501
        %v2886 = vmul.f32 %v2118, %v2502
        %v2887 = vmul.f32 %v2119, %v2503
        %v2888 = vmul.f32 %v2120, %v2504
        %v2889 = vmul.f32 %v2121, %v2505
        %v2890 = vmul.f32 %v2122, %v2506
        %v2891 = vmul.f32 %v2123, %v2507
        %v2892 = vmul.f32 %v2124, %v2508
        %v2893 = vmul.f32 %v2125, %v2509
        %v2894 = vmul.f32 %v2126, %v2510
        %v2895 = vmul.f32 %v2127, %v2511
        %v2896 = vmul.f32 %v2128, %v2512
        %v2897 = vmul.f32 %v2129, %v2513
        %v2898 = vmul.f32 %v2130, %v2514
        %v2899 = vmul.f32 %v2131, %v2515
        %v2900 = vmul.f32 %v2132, %v2516
        %v2901 = vmul.f32 %v2133, %v2517
        %v2902 = vmul.f32 %v2134, %v2518
        %v2903 = vmul.f32 %v2135, %v2519
        %v2904 = vmul.f32 %v2136, %v2520
        %v2905 = vmul.f32 %v2137, %v2521
        %v2906 = vmul.f32 %v2138, %v2522
        %v2907 = vmul.f32 %v2139, %v2523
        %v2908 = vmul.f32 %v2140, %v2524
        %v2909 = vmul.f32 %v2141, %v2525
        %v2910 = vmul.f32 %v2142, %v2526
        %v2911 = vmul.f32 %v2143, %v2527
        %v2912 = vmul.f32 %v2144, %v2528
        %v2913 = vmul.f32 %v2145, %v2529
        %v2914 = vmul.f32 %v2146, %v2530
        %v2915 = vmul.f32 %v2147, %v2531
        %v2916 = vmul.f32 %v2148, %v2532
        %v2917 = vmul.f32 %v2149, %v2533
        %v2918 = vmul.f32 %v2150, %v2534
        %v2919 = vmul.f32 %v2151, %v2535
        %v2920 = vmul.f32 %v2152, %v2536
        %v2921 = vmul.f32 %v2153, %v2537
        %v2922 = vmul.f32 %v2154, %v2538
        %v2923 = vmul.f32 %v2155, %v2539
        %v2924 = vmul.f32 %v2156, %v2540
        %v2925 = vmul.f32 %v2157, %v2541
        %v2926 = vmul.f32 %v2158, %v2542
        %v2927 = vmul.f32 %v2159, %v2543
        %v2928 = vmul.f32 %v2160, %v2544
        %v2929 = vmul.f32 %v2161, %v2545
        %v2930 = vmul.f32 %v2162, %v2546
        %v2931 = vmul.f32 %v2163, %v2547
        %v2932 = vmul.f32 %v2164, %v2548
        %v2933 = vmul.f32 %v2165, %v2549
        %v2934 = vmul.f32 %v2166, %v2550
        %v2935 = vmul.f32 %v2167, %v2551
        %v2936 = vmul.f32 %v2168, %v2552
        %v2937 = vmul.f32 %v2169, %v2553
        %v2938 = vmul.f32 %v2170, %v2554
        %v2939 = vmul.f32 %v2171, %v2555
        %v2940 = vmul.f32 %v2172, %v2556
        %v2941 = vmul.f32 %v2173, %v2557
        %v2942 = vmul.f32 %v2174, %v2558
        %v2943 = vmul.f32 %v2175, %v2559
        %v2944 = vmul.f32 %v2176, %v2560
        %v2945 = vmul.f32 %v2177, %v2561
        %v2946 = vmul.f32 %v2178, %v2562
        %v2947 = vmul.f32 %v2179, %v2563
        %v2948 = vmul.f32 %v2180, %v2564
        %v2949 = vmul.f32 %v2181, %v2565
        %v2950 = vmul.f32 %v2182, %v2566
        %v2951 = vmul.f32 %v2183, %v2567
        %v2952 = vmul.f32 %v2184, %v2568
        %v2953 = vmul.f32 %v2185, %v2569
        %v2954 = vmul.f32 %v2186, %v2570
        %v2955 = vmul.f32 %v2187, %v2571
        %v2956 = vmul.f32 %v2188, %v2572
        %v2957 = vmul.f32 %v2189, %v2573
        %v2958 = vmul.f32 %v2190, %v2574
        %v2959 = vmul.f32 %v2191, %v2575
        %v2960 = vmul.f32 %v2192, %v2576
        %v2961 = vmul.f32 %v2193, %v2577
        %v2962 = vmul.f32 %v2194, %v2578
        %v2963 = vmul.f32 %v2195, %v2579
        %v2964 = vmul.f32 %v2196, %v2580
        %v2965 = vmul.f32 %v2197, %v2581
        %v2966 = vmul.f32 %v2198, %v2582
        %v2967 = vmul.f32 %v2199, %v2583
        %v2968 = vmul.f32 %v2200, %v2584
        %v2969 = vmul.f32 %v2201, %v2585
        %v2970 = vmul.f32 %v2202, %v2586
        %v2971 = vmul.f32 %v2203, %v2587
        %v2972 = vmul.f32 %v2204, %v2588
        %v2973 = vmul.f32 %v2205, %v2589
        %v2974 = vmul.f32 %v2206, %v2590
        %v2975 = vmul.f32 %v2207, %v2591
        %v2976 = vmul.f32 %v2208, %v2592
        %v2977 = vmul.f32 %v2209, %v2593
        %v2978 = vmul.f32 %v2210, %v2594
        %v2979 = vmul.f32 %v2211, %v2595
        %v2980 = vmul.f32 %v2212, %v2596
        %v2981 = vmul.f32 %v2213, %v2597
        %v2982 = vmul.f32 %v2214, %v2598
        %v2983 = vmul.f32 %v2215, %v2599
        %v2984 = vmul.f32 %v2216, %v2600
        %v2985 = vmul.f32 %v2217, %v2601
        %v2986 = vmul.f32 %v2218, %v2602
        %v2987 = vmul.f32 %v2219, %v2603
        %v2988 = vmul.f32 %v2220, %v2604
        %v2989 = vmul.f32 %v2221, %v2605
        %v2990 = vmul.f32 %v2222, %v2606
        %v2991 = vmul.f32 %v2223, %v2607
        %v2992 = vmul.f32 %v2224, %v2608
        %v2993 = vmul.f32 %v2225, %v2609
        %v2994 = vmul.f32 %v2226, %v2610
        %v2995 = vmul.f32 %v2227, %v2611
        %v2996 = vmul.f32 %v2228, %v2612
        %v2997 = vmul.f32 %v2229, %v2613
        %v2998 = vmul.f32 %v2230, %v2614
        %v2999 = vmul.f32 %v2231, %v2615
        %v3000 = vmul.f32 %v2232, %v2616
        %v3001 = vmul.f32 %v2233, %v2617
        %v3002 = vmul.f32 %v2234, %v2618
        %v3003 = vmul.f32 %v2235, %v2619
        %v3004 = vmul.f32 %v2236, %v2620
        %v3005 = vmul.f32 %v2237, %v2621
        %v3006 = vmul.f32 %v2238, %v2622
        %v3007 = vmul.f32 %v2239, %v2623
        %v3008 = vmul.f32 %v2240, %v2624
        %v3009 = vmul.f32 %v2241, %v2625
        %v3010 = vmul.f32 %v2242, %v2626
        %v3011 = vmul.f32 %v2243, %v2627
        %v3012 = vmul.f32 %v2244, %v2628
        %v3013 = vmul.f32 %v2245, %v2629
        %v3014 = vmul.f32 %v2246, %v2630
        %v3015 = vmul.f32 %v2247, %v2631
        %v3016 = vmul.f32 %v2248, %v2632
        %v3017 = vmul.f32 %v2249, %v2633
        %v3018 = vmul.f32 %v2250, %v2634
        %v3019 = vmul.f32 %v2251, %v2635
        %v3020 = vmul.f32 %v2252, %v2636
        %v3021 = vmul.f32 %v2253, %v2637
        %v3022 = vmul.f32 %v2254, %v2638
        %v3023 = vmul.f32 %v2255, %v2639
        %v3024 = vmul.f32 %v2256, %v2640
        %v3025 = vmul.f32 %v2257, %v2641
        %v3026 = vmul.f32 %v2258, %v2642
        %v3027 = vmul.f32 %v2259, %v2643
        %v3028 = vmul.f32 %v2260, %v2644
        %v3029 = vmul.f32 %v2261, %v2645
        %v3030 = vmul.f32 %v2262, %v2646
        %v3031 = vmul.f32 %v2263, %v2647
        %v3032 = vmul.f32 %v2264, %v2648
        %v3033 = vmul.f32 %v2265, %v2649
        %v3034 = vmul.f32 %v2266, %v2650
        %v3035 = vmul.f32 %v2267, %v2651
        %v3036 = vmul.f32 %v2268, %v2652
        %v3037 = vmul.f32 %v2269, %v2653
        %v3038 = vmul.f32 %v2270, %v2654
        %v3039 = vmul.f32 %v2271, %v2655
        %v3040 = vmul.f32 %v2272, %v2656
        %v3041 = vmul.f32 %v2273, %v2657
        %v3042 = vmul.f32 %v2274, %v2658
        %v3043 = vmul.f32 %v2275, %v2659
        %v3044 = vmul.f32 %v2276, %v2660
        %v3045 = vmul.f32 %v2277, %v2661
        %v3046 = vmul.f32 %v2278, %v2662
        %v3047 = vmul.f32 %v2279, %v2663
        %v3048 = vmul.f32 %v2280, %v2664
        %v3049 = vmul.f32 %v2281, %v2665
        %v3050 = vmul.f32 %v2282, %v2666
        %v3051 = vmul.f32 %v2283, %v2667
        %v3052 = vmul.f32 %v2284, %v2668
        %v3053 = vmul.f32 %v2285, %v2669
        %v3054 = vmul.f32 %v2286, %v2670
        %v3055 = vmul.f32 %v2287, %v2671
        %v3056 = vmul.f32 %v2288, %v2672
        %v3057 = vmul.f32 %v2289, %v2673
        %v3058 = vmul.f32 %v2290, %v2674
        %v3059 = vmul.f32 %v2291, %v2675
        %v3060 = vmul.f32 %v2292, %v2676
        %v3061 = vmul.f32 %v2293, %v2677
        %v3062 = vmul.f32 %v2294, %v2678
        %v3063 = vmul.f32 %v2295, %v2679
        %v3064 = vmul.f32 %v2296, %v2680
        %v3065 = vmul.f32 %v2297, %v2681
        %v3066 = vmul.f32 %v2298, %v2682
        %v3067 = vmul.f32 %v2299, %v2683
        %v3068 = vmul.f32 %v2300, %v2684
        %v3069 = vmul.f32 %v2301, %v2685
        %v3070 = vmul.f32 %v2302, %v2686
        %v3071 = vmul.f32 %v2303, %v2687
        %v3072 = vmul.f32 %v2304, %v2688
        %v3073 = vmul.f32 %v2305, %v2689
        %v3074 = vmul.f32 %v2306, %v2690
        %v3075 = vmul.f32 %v2307, %v2691
        %v3076 = vmul.f32 %v2308, %v2692
        %v3077 = vmul.f32 %v2309, %v2693
        %v3078 = vmul.f32 %v2310, %v2694
        %v3079 = vmul.f32 %v2311, %v2695
        %v3080 = vmul.f32 %v2312, %v2696
        %v3081 = vmul.f32 %v2313, %v2697
        %v3082 = vmul.f32 %v2314, %v2698
        %v3083 = vmul.f32 %v2315, %v2699
        %v3084 = vmul.f32 %v2316, %v2700
        %v3085 = vmul.f32 %v2317, %v2701
        %v3086 = vmul.f32 %v2318, %v2702
        %v3087 = vmul.f32 %v2319, %v2703
        %v3088 = vmul.f32 %v2320, %v2704
        %v3089 = vmul.f32 %v2321, %v2705
        %v3090 = vmul.f32 %v2322, %v2706
        %v3091 = vmul.f32 %v2323, %v2707
        %v3092 = vmul.f32 %v2324, %v2708
        %v3093 = vmul.f32 %v2325, %v2709
        %v3094 = vmul.f32 %v2326, %v2710
        %v3095 = vmul.f32 %v2327, %v2711
        %v3096 = vmul.f32 %v2328, %v2712
        %v3097 = vmul.f32 %v2329, %v2713
        %v3098 = vmul.f32 %v2330, %v2714
        %v3099 = vmul.f32 %v2331, %v2715
        %v3100 = vmul.f32 %v2332, %v2716
        %v3101 = vmul.f32 %v2333, %v2717
        %v3102 = vmul.f32 %v2334, %v2718
        %v3103 = vmul.f32 %v2335, %v2719
        %v3104 = vmul.f32 %v2336, %v2720
        %v3105 = vmul.f32 %v2337, %v2721
        %v3106 = vmul.f32 %v2338, %v2722
        %v3107 = vmul.f32 %v2339, %v2723
        %v3108 = vmul.f32 %v2340, %v2724
        %v3109 = vmul.f32 %v2341, %v2725
        %v3110 = vmul.f32 %v2342, %v2726
        %v3111 = vmul.f32 %v2343, %v2727
        %v3112 = vmul.f32 %v2344, %v2728
        %v3113 = vmul.f32 %v2345, %v2729
        %v3114 = vmul.f32 %v2346, %v2730
        %v3115 = vmul.f32 %v2347, %v2731
        %v3116 = vmul.f32 %v2348, %v2732
        %v3117 = vmul.f32 %v2349, %v2733
        %v3118 = vmul.f32 %v2350, %v2734
        %v3119 = vmul.f32 %v2351, %v2735
        %v3120 = vmul.f32 %v2352, %v2736
        %v3121 = vmul.f32 %v2353, %v2737
        %v3122 = vmul.f32 %v2354, %v2738
        %v3123 = vmul.f32 %v2355, %v2739
        %v3124 = vmul.f32 %v2356, %v2740
        %v3125 = vmul.f32 %v2357, %v2741
        %v3126 = vmul.f32 %v2358, %v2742
        %v3127 = vmul.f32 %v2359, %v2743
        %v3128 = vmul.f32 %v2360, %v2744
        %v3129 = vmul.f32 %v2361, %v2745
        %v3130 = vmul.f32 %v2362, %v2746
        %v3131 = vmul.f32 %v2363, %v2747
        %v3132 = vmul.f32 %v2364, %v2748
        %v3133 = vmul.f32 %v2365, %v2749
        %v3134 = vmul.f32 %v2366, %v2750
        %v3135 = vmul.f32 %v2367, %v2751
        %v3136 = vmul.f32 %v2368, %v2752
        %v3137 = vmul.f32 %v2369, %v2753
        %v3138 = vmul.f32 %v2370, %v2754
        %v3139 = vmul.f32 %v2371, %v2755
        %v3140 = vmul.f32 %v2372, %v2756
        %v3141 = vmul.f32 %v2373, %v2757
        %v3142 = vmul.f32 %v2374, %v2758
        %v3143 = vmul.f32 %v2375, %v2759
        %v3144 = vmul.f32 %v2376, %v2760
        %v3145 = vmul.f32 %v2377, %v2761
        %v3146 = vmul.f32 %v2378, %v2762
        %v3147 = vmul.f32 %v2379, %v2763
        %v3148 = vmul.f32 %v2380, %v2764
        %v3149 = vmul.f32 %v2381, %v2765
        %v3150 = vmul.f32 %v2382, %v2766
        %v3151 = vmul.f32 %v2383, %v2767
        %v3152 = vmul.f32 %v2384, %v2768
        %v3153 = vmul.f32 %v2385, %v2769
        %v3154 = vmul.f32 %v2386, %v2770
        %v3155 = vmul.f32 %v2387, %v2771
        %v3156 = vmul.f32 %v2388, %v2772
        %v3157 = vmul.f32 %v2389, %v2773
        %v3158 = vmul.f32 %v2390, %v2774
        %v3159 = vmul.f32 %v2391, %v2775
        %v3160 = vmul.f32 %v2392, %v2776
        %v3161 = vmul.f32 %v2393, %v2777
        %v3162 = vmul.f32 %v2394, %v2778
        %v3163 = vmul.f32 %v2395, %v2779
        %v3164 = vmul.f32 %v2396, %v2780
        %v3165 = vmul.f32 %v2397, %v2781
        %v3166 = vmul.f32 %v2398, %v2782
        %v3167 = vmul.f32 %v2399, %v2783
        %v3168 = vmul.f32 %v2400, %v2784
        %v3169 = vmul.f32 %v2401, %v2785
        %v3170 = vmul.f32 %v2402, %v2786
        %v3171 = vmul.f32 %v2403, %v2787
        %v3172 = vmul.f32 %v2404, %v2788
        %v3173 = vmul.f32 %v2405, %v2789
        %v3174 = vmul.f32 %v2406, %v2790
        %v3175 = vmul.f32 %v2407, %v2791
        %v3176 = vmul.f32 %v2408, %v2792
        %v3177 = vmul.f32 %v2409, %v2793
        %v3178 = vmul.f32 %v2410, %v2794
        %v3179 = vmul.f32 %v2411, %v2795
        %v3180 = vmul.f32 %v2412, %v2796
        %v3181 = vmul.f32 %v2413, %v2797
        %v3182 = vmul.f32 %v2414, %v2798
        %v3183 = vmul.f32 %v2415, %v2799
        %v3184 = vmul.f32 %v2416, %v2800
        %v3185 = vmul.f32 %v2417, %v2801
        %v3186 = vmul.f32 %v2418, %v2802
        %v3187 = vmul.f32 %v2419, %v2803
        %v3188 = vmul.f32 %v2420, %v2804
        %v3189 = vmul.f32 %v2421, %v2805
        %v3190 = vmul.f32 %v2422, %v2806
        %v3191 = vmul.f32 %v2423, %v2807
        %v3192 = vmul.f32 %v2424, %v2808
        %v3193 = vmul.f32 %v2425, %v2809
        %v3194 = vmul.f32 %v2426, %v2810
        %v3195 = vmul.f32 %v2427, %v2811
        %v3196 = vmul.f32 %v2428, %v2812
        %v3197 = vmul.f32 %v2429, %v2813
        %v3198 = vmul.f32 %v2430, %v2814
        %v3199 = vmul.f32 %v2431, %v2815
        %v3200 = vmul.f32 %v2432, %v2816
        %v3201 = vmul.f32 %v2433, %v2817
        %v3202 = vmul.f32 %v2434, %v2818
        %v3203 = vmul.f32 %v2435, %v2819
        %v3204 = vmul.f32 %v2436, %v2820
        %v3205 = vmul.f32 %v2437, %v2821
        %v3206 = vmul.f32 %v2438, %v2822
        %v3207 = vmul.f32 %v2439, %v2823
        %v3208 = vmul.f32 %v2440, %v2824
        %v3209 = vadd.f32 %v2057, %v2825
        %v3210 = vadd.f32 %v2058, %v2826
        %v3211 = vadd.f32 %v2059, %v2827
        %v3212 = vadd.f32 %v2060, %v2828
        %v3213 = vadd.f32 %v2061, %v2829
        %v3214 = vadd.f32 %v2062, %v2830
        %v3215 = vadd.f32 %v2063, %v2831
        %v3216 = vadd.f32 %v2064, %v2832
        %v3217 = vadd.f32 %v2065, %v2833
        %v3218 = vadd.f32 %v2066, %v2834
        %v3219 = vadd.f32 %v2067, %v2835
        %v3220 = vadd.f32 %v2068, %v2836
        %v3221 = vadd.f32 %v2069, %v2837
        %v3222 = vadd.f32 %v2070, %v2838
        %v3223 = vadd.f32 %v2071, %v2839
        %v3224 = vadd.f32 %v2072, %v2840
        %v3225 = vadd.f32 %v2073, %v2841
        %v3226 = vadd.f32 %v2074, %v2842
        %v3227 = vadd.f32 %v2075, %v2843
        %v3228 = vadd.f32 %v2076, %v2844
        %v3229 = vadd.f32 %v2077, %v2845
        %v3230 = vadd.f32 %v2078, %v2846
        %v3231 = vadd.f32 %v2079, %v2847
        %v3232 = vadd.f32 %v2080, %v2848
        %v3233 = vadd.f32 %v2081, %v2849
        %v3234 = vadd.f32 %v2082, %v2850
        %v3235 = vadd.f32 %v2083, %v2851
        %v3236 = vadd.f32 %v2084, %v2852
        %v3237 = vadd.f32 %v2085, %v2853
        %v3238 = vadd.f32 %v2086, %v2854
        %v3239 = vadd.f32 %v2087, %v2855
        %v3240 = vadd.f32 %v2088, %v2856
        %v3241 = vadd.f32 %v2089, %v2857
        %v3242 = vadd.f32 %v2090, %v2858
        %v3243 = vadd.f32 %v2091, %v2859
        %v3244 = vadd.f32 %v2092, %v2860
        %v3245 = vadd.f32 %v2093, %v2861
        %v3246 = vadd.f32 %v2094, %v2862
        %v3247 = vadd.f32 %v2095, %v2863
        %v3248 = vadd.f32 %v2096, %v2864
        %v3249 = vadd.f32 %v2097, %v2865
        %v3250 = vadd.f32 %v2098, %v2866
        %v3251 = vadd.f32 %v2099, %v2867
        %v3252 = vadd.f32 %v2100, %v2868
        %v3253 = vadd.f32 %v2101, %v2869
        %v3254 = vadd.f32 %v2102, %v2870
        %v3255 = vadd.f32 %v2103, %v2871
        %v3256 = vadd.f32 %v2104, %v2872
        %v3257 = vadd.f32 %v2105, %v2873
        %v3258 = vadd.f32 %v2106, %v2874
        %v3259 = vadd.f32 %v2107, %v2875
        %v3260 = vadd.f32 %v2108, %v2876
        %v3261 = vadd.f32 %v2109, %v2877
        %v3262 = vadd.f32 %v2110, %v2878
        %v3263 = vadd.f32 %v2111, %v2879
        %v3264 = vadd.f32 %v2112, %v2880
        %v3265 = vadd.f32 %v2113, %v2881
        %v3266 = vadd.f32 %v2114, %v2882
        %v3267 = vadd.f32 %v2115, %v2883
        %v3268 = vadd.f32 %v2116, %v2884
        %v3269 = vadd.f32 %v2117, %v2885
        %v3270 = vadd.f32 %v2118, %v2886
        %v3271 = vadd.f32 %v2119, %v2887
        %v3272 = vadd.f32 %v2120, %v2888
        %v3273 = vadd.f32 %v2121, %v2889
        %v3274 = vadd.f32 %v2122, %v2890
        %v3275 = vadd.f32 %v2123, %v2891
        %v3276 = vadd.f32 %v2124, %v2892
        %v3277 = vadd.f32 %v2125, %v2893
        %v3278 = vadd.f32 %v2126, %v2894
        %v3279 = vadd.f32 %v2127, %v2895
        %v3280 = vadd.f32 %v2128, %v2896
        %v3281 = vadd.f32 %v2129, %v2897
        %v3282 = vadd.f32 %v2130, %v2898
        %v3283 = vadd.f32 %v2131, %v2899
        %v3284 = vadd.f32 %v2132, %v2900
        %v3285 = vadd.f32 %v2133, %v2901
        %v3286 = vadd.f32 %v2134, %v2902
        %v3287 = vadd.f32 %v2135, %v2903
        %v3288 = vadd.f32 %v2136, %v2904
        %v3289 = vadd.f32 %v2137, %v2905
        %v3290 = vadd.f32 %v2138, %v2906
        %v3291 = vadd.f32 %v2139, %v2907
        %v3292 = vadd.f32 %v2140, %v2908
        %v3293 = vadd.f32 %v2141, %v2909
        %v3294 = vadd.f32 %v2142, %v2910
        %v3295 = vadd.f32 %v2143, %v2911
        %v3296 = vadd.f32 %v2144, %v2912
        %v3297 = vadd.f32 %v2145, %v2913
        %v3298 = vadd.f32 %v2146, %v2914
        %v3299 = vadd.f32 %v2147, %v2915
        %v3300 = vadd.f32 %v2148, %v2916
        %v3301 = vadd.f32 %v2149, %v2917
        %v3302 = vadd.f32 %v2150, %v2918
        %v3303 = vadd.f32 %v2151, %v2919
        %v3304 = vadd.f32 %v2152, %v2920
        %v3305 = vadd.f32 %v2153, %v2921
        %v3306 = vadd.f32 %v2154, %v2922
        %v3307 = vadd.f32 %v2155, %v2923
        %v3308 = vadd.f32 %v2156, %v2924
        %v3309 = vadd.f32 %v2157, %v2925
        %v3310 = vadd.f32 %v2158, %v2926
        %v3311 = vadd.f32 %v2159, %v2927
        %v3312 = vadd.f32 %v2160, %v2928
        %v3313 = vadd.f32 %v2161, %v2929
        %v3314 = vadd.f32 %v2162, %v2930
        %v3315 = vadd.f32 %v2163, %v2931
        %v3316 = vadd.f32 %v2164, %v2932
        %v3317 = vadd.f32 %v2165, %v2933
        %v3318 = vadd.f32 %v2166, %v2934
        %v3319 = vadd.f32 %v2167, %v2935
        %v3320 = vadd.f32 %v2168, %v2936
        %v3321 = vadd.f32 %v2169, %v2937
        %v3322 = vadd.f32 %v2170, %v2938
        %v3323 = vadd.f32 %v2171, %v2939
        %v3324 = vadd.f32 %v2172, %v2940
        %v3325 = vadd.f32 %v2173, %v2941
        %v3326 = vadd.f32 %v2174, %v2942
        %v3327 = vadd.f32 %v2175, %v2943
        %v3328 = vadd.f32 %v2176, %v2944
        %v3329 = vadd.f32 %v2177, %v2945
        %v3330 = vadd.f32 %v2178, %v2946
        %v3331 = vadd.f32 %v2179, %v2947
        %v3332 = vadd.f32 %v2180, %v2948
        %v3333 = vadd.f32 %v2181, %v2949
        %v3334 = vadd.f32 %v2182, %v2950
        %v3335 = vadd.f32 %v2183, %v2951
        %v3336 = vadd.f32 %v2184, %v2952
        %v3337 = vadd.f32 %v2185, %v2953
        %v3338 = vadd.f32 %v2186, %v2954
        %v3339 = vadd.f32 %v2187, %v2955
        %v3340 = vadd.f32 %v2188, %v2956
        %v3341 = vadd.f32 %v2189, %v2957
        %v3342 = vadd.f32 %v2190, %v2958
        %v3343 = vadd.f32 %v2191, %v2959
        %v3344 = vadd.f32 %v2192, %v2960
        %v3345 = vadd.f32 %v2193, %v2961
        %v3346 = vadd.f32 %v2194, %v2962
        %v3347 = vadd.f32 %v2195, %v2963
        %v3348 = vadd.f32 %v2196, %v2964
        %v3349 = vadd.f32 %v2197, %v2965
        %v3350 = vadd.f32 %v2198, %v2966
        %v3351 = vadd.f32 %v2199, %v2967
        %v3352 = vadd.f32 %v2200, %v2968
        %v3353 = vadd.f32 %v2201, %v2969
        %v3354 = vadd.f32 %v2202, %v2970
        %v3355 = vadd.f32 %v2203, %v2971
        %v3356 = vadd.f32 %v2204, %v2972
        %v3357 = vadd.f32 %v2205, %v2973
        %v3358 = vadd.f32 %v2206, %v2974
        %v3359 = vadd.f32 %v2207, %v2975
        %v3360 = vadd.f32 %v2208, %v2976
        %v3361 = vadd.f32 %v2209, %v2977
        %v3362 = vadd.f32 %v2210, %v2978
        %v3363 = vadd.f32 %v2211, %v2979
        %v3364 = vadd.f32 %v2212, %v2980
        %v3365 = vadd.f32 %v2213, %v2981
        %v3366 = vadd.f32 %v2214, %v2982
        %v3367 = vadd.f32 %v2215, %v2983
        %v3368 = vadd.f32 %v2216, %v2984
        %v3369 = vadd.f32 %v2217, %v2985
        %v3370 = vadd.f32 %v2218, %v2986
        %v3371 = vadd.f32 %v2219, %v2987
        %v3372 = vadd.f32 %v2220, %v2988
        %v3373 = vadd.f32 %v2221, %v2989
        %v3374 = vadd.f32 %v2222, %v2990
        %v3375 = vadd.f32 %v2223, %v2991
        %v3376 = vadd.f32 %v2224, %v2992
        %v3377 = vadd.f32 %v2225, %v2993
        %v3378 = vadd.f32 %v2226, %v2994
        %v3379 = vadd.f32 %v2227, %v2995
        %v3380 = vadd.f32 %v2228, %v2996
        %v3381 = vadd.f32 %v2229, %v2997
        %v3382 = vadd.f32 %v2230, %v2998
        %v3383 = vadd.f32 %v2231, %v2999
        %v3384 = vadd.f32 %v2232, %v3000
        %v3385 = vadd.f32 %v2233, %v3001
        %v3386 = vadd.f32 %v2234, %v3002
        %v3387 = vadd.f32 %v2235, %v3003
        %v3388 = vadd.f32 %v2236, %v3004
        %v3389 = vadd.f32 %v2237, %v3005
        %v3390 = vadd.f32 %v2238, %v3006
        %v3391 = vadd.f32 %v2239, %v3007
        %v3392 = vadd.f32 %v2240, %v3008
        %v3393 = vadd.f32 %v2241, %v3009
        %v3394 = vadd.f32 %v2242, %v3010
        %v3395 = vadd.f32 %v2243, %v3011
        %v3396 = vadd.f32 %v2244, %v3012
        %v3397 = vadd.f32 %v2245, %v3013
        %v3398 = vadd.f32 %v2246, %v3014
        %v3399 = vadd.f32 %v2247, %v3015
        %v3400 = vadd.f32 %v2248, %v3016
        %v3401 = vadd.f32 %v2249, %v3017
        %v3402 = vadd.f32 %v2250, %v3018
        %v3403 = vadd.f32 %v2251, %v3019
        %v3404 = vadd.f32 %v2252, %v3020
        %v3405 = vadd.f32 %v2253, %v3021
        %v3406 = vadd.f32 %v2254, %v3022
        %v3407 = vadd.f32 %v2255, %v3023
        %v3408 = vadd.f32 %v2256, %v3024
        %v3409 = vadd.f32 %v2257, %v3025
        %v3410 = vadd.f32 %v2258, %v3026
        %v3411 = vadd.f32 %v2259, %v3027
        %v3412 = vadd.f32 %v2260, %v3028
        %v3413 = vadd.f32 %v2261, %v3029
        %v3414 = vadd.f32 %v2262, %v3030
        %v3415 = vadd.f32 %v2263, %v3031
        %v3416 = vadd.f32 %v2264, %v3032
        %v3417 = vadd.f32 %v2265, %v3033
        %v3418 = vadd.f32 %v2266, %v3034
        %v3419 = vadd.f32 %v2267, %v3035
        %v3420 = vadd.f32 %v2268, %v3036
        %v3421 = vadd.f32 %v2269, %v3037
        %v3422 = vadd.f32 %v2270, %v3038
        %v3423 = vadd.f32 %v2271, %v3039
        %v3424 = vadd.f32 %v2272, %v3040
        %v3425 = vadd.f32 %v2273, %v3041
        %v3426 = vadd.f32 %v2274, %v3042
        %v3427 = vadd.f32 %v2275, %v3043
        %v3428 = vadd.f32 %v2276, %v3044
        %v3429 = vadd.f32 %v2277, %v3045
        %v3430 = vadd.f32 %v2278, %v3046
        %v3431 = vadd.f32 %v2279, %v3047
        %v3432 = vadd.f32 %v2280, %v3048
        %v3433 = vadd.f32 %v2281, %v3049
        %v3434 = vadd.f32 %v2282, %v3050
        %v3435 = vadd.f32 %v2283, %v3051
        %v3436 = vadd.f32 %v2284, %v3052
        %v3437 = vadd.f32 %v2285, %v3053
        %v3438 = vadd.f32 %v2286, %v3054
        %v3439 = vadd.f32 %v2287, %v3055
        %v3440 = vadd.f32 %v2288, %v3056
        %v3441 = vadd.f32 %v2289, %v3057
        %v3442 = vadd.f32 %v2290, %v3058
        %v3443 = vadd.f32 %v2291, %v3059
        %v3444 = vadd.f32 %v2292, %v3060
        %v3445 = vadd.f32 %v2293, %v3061
        %v3446 = vadd.f32 %v2294, %v3062
        %v3447 = vadd.f32 %v2295, %v3063
        %v3448 = vadd.f32 %v2296, %v3064
        %v3449 = vadd.f32 %v2297, %v3065
        %v3450 = vadd.f32 %v2298, %v3066
        %v3451 = vadd.f32 %v2299, %v3067
        %v3452 = vadd.f32 %v2300, %v3068
        %v3453 = vadd.f32 %v2301, %v3069
        %v3454 = vadd.f32 %v2302, %v3070
        %v3455 = vadd.f32 %v2303, %v3071
        %v3456 = vadd.f32 %v2304, %v3072
        %v3457 = vadd.f32 %v2305, %v3073
        %v3458 = vadd.f32 %v2306, %v3074
        %v3459 = vadd.f32 %v2307, %v3075
        %v3460 = vadd.f32 %v2308, %v3076
        %v3461 = vadd.f32 %v2309, %v3077
        %v3462 = vadd.f32 %v2310, %v3078
        %v3463 = vadd.f32 %v2311, %v3079
        %v3464 = vadd.f32 %v2312, %v3080
        %v3465 = vadd.f32 %v2313, %v3081
        %v3466 = vadd.f32 %v2314, %v3082
        %v3467 = vadd.f32 %v2315, %v3083
        %v3468 = vadd.f32 %v2316, %v3084
        %v3469 = vadd.f32 %v2317, %v3085
        %v3470 = vadd.f32 %v2318, %v3086
        %v3471 = vadd.f32 %v2319, %v3087
        %v3472 = vadd.f32 %v2320, %v3088
        %v3473 = vadd.f32 %v2321, %v3089
        %v3474 = vadd.f32 %v2322, %v3090
        %v3475 = vadd.f32 %v2323, %v3091
        %v3476 = vadd.f32 %v2324, %v3092
        %v3477 = vadd.f32 %v2325, %v3093
        %v3478 = vadd.f32 %v2326, %v3094
        %v3479 = vadd.f32 %v2327, %v3095
        %v3480 = vadd.f32 %v2328, %v3096
        %v3481 = vadd.f32 %v2329, %v3097
        %v3482 = vadd.f32 %v2330, %v3098
        %v3483 = vadd.f32 %v2331, %v3099
        %v3484 = vadd.f32 %v2332, %v3100
        %v3485 = vadd.f32 %v2333, %v3101
        %v3486 = vadd.f32 %v2334, %v3102
        %v3487 = vadd.f32 %v2335, %v3103
        %v3488 = vadd.f32 %v2336, %v3104
        %v3489 = vadd.f32 %v2337, %v3105
        %v3490 = vadd.f32 %v2338, %v3106
        %v3491 = vadd.f32 %v2339, %v3107
        %v3492 = vadd.f32 %v2340, %v3108
        %v3493 = vadd.f32 %v2341, %v3109
        %v3494 = vadd.f32 %v2342, %v3110
        %v3495 = vadd.f32 %v2343, %v3111
        %v3496 = vadd.f32 %v2344, %v3112
        %v3497 = vadd.f32 %v2345, %v3113
        %v3498 = vadd.f32 %v2346, %v3114
        %v3499 = vadd.f32 %v2347, %v3115
        %v3500 = vadd.f32 %v2348, %v3116
        %v3501 = vadd.f32 %v2349, %v3117
        %v3502 = vadd.f32 %v2350, %v3118
        %v3503 = vadd.f32 %v2351, %v3119
        %v3504 = vadd.f32 %v2352, %v3120
        %v3505 = vadd.f32 %v2353, %v3121
        %v3506 = vadd.f32 %v2354, %v3122
        %v3507 = vadd.f32 %v2355, %v3123
        %v3508 = vadd.f32 %v2356, %v3124
        %v3509 = vadd.f32 %v2357, %v3125
        %v3510 = vadd.f32 %v2358, %v3126
        %v3511 = vadd.f32 %v2359, %v3127
        %v3512 = vadd.f32 %v2360, %v3128
        %v3513 = vadd.f32 %v2361, %v3129
        %v3514 = vadd.f32 %v2362, %v3130
        %v3515 = vadd.f32 %v2363, %v3131
        %v3516 = vadd.f32 %v2364, %v3132
        %v3517 = vadd.f32 %v2365, %v3133
        %v3518 = vadd.f32 %v2366, %v3134
        %v3519 = vadd.f32 %v2367, %v3135
        %v3520 = vadd.f32 %v2368, %v3136
        %v3521 = vadd.f32 %v2369, %v3137
        %v3522 = vadd.f32 %v2370, %v3138
        %v3523 = vadd.f32 %v2371, %v3139
        %v3524 = vadd.f32 %v2372, %v3140
        %v3525 = vadd.f32 %v2373, %v3141
        %v3526 = vadd.f32 %v2374, %v3142
        %v3527 = vadd.f32 %v2375, %v3143
        %v3528 = vadd.f32 %v2376, %v3144
        %v3529 = vadd.f32 %v2377, %v3145
        %v3530 = vadd.f32 %v2378, %v3146
        %v3531 = vadd.f32 %v2379, %v3147
        %v3532 = vadd.f32 %v2380, %v3148
        %v3533 = vadd.f32 %v2381, %v3149
        %v3534 = vadd.f32 %v2382, %v3150
        %v3535 = vadd.f32 %v2383, %v3151
        %v3536 = vadd.f32 %v2384, %v3152
        %v3537 = vadd.f32 %v2385, %v3153
        %v3538 = vadd.f32 %v2386, %v3154
        %v3539 = vadd.f32 %v2387, %v3155
        %v3540 = vadd.f32 %v2388, %v3156
        %v3541 = vadd.f32 %v2389, %v3157
        %v3542 = vadd.f32 %v2390, %v3158
        %v3543 = vadd.f32 %v2391, %v3159
        %v3544 = vadd.f32 %v2392, %v3160
        %v3545 = vadd.f32 %v2393, %v3161
        %v3546 = vadd.f32 %v2394, %v3162
        %v3547 = vadd.f32 %v2395, %v3163
        %v3548 = vadd.f32 %v2396, %v3164
        %v3549 = vadd.f32 %v2397, %v3165
        %v3550 = vadd.f32 %v2398, %v3166
        %v3551 = vadd.f32 %v2399, %v3167
        %v3552 = vadd.f32 %v2400, %v3168
        %v3553 = vadd.f32 %v2401, %v3169
        %v3554 = vadd.f32 %v2402, %v3170
        %v3555 = vadd.f32 %v2403, %v3171
        %v3556 = vadd.f32 %v2404, %v3172
        %v3557 = vadd.f32 %v2405, %v3173
        %v3558 = vadd.f32 %v2406, %v3174
        %v3559 = vadd.f32 %v2407, %v3175
        %v3560 = vadd.f32 %v2408, %v3176
        %v3561 = vadd.f32 %v2409, %v3177
        %v3562 = vadd.f32 %v2410, %v3178
        %v3563 = vadd.f32 %v2411, %v3179
        %v3564 = vadd.f32 %v2412, %v3180
        %v3565 = vadd.f32 %v2413, %v3181
        %v3566 = vadd.f32 %v2414, %v3182
        %v3567 = vadd.f32 %v2415, %v3183
        %v3568 = vadd.f32 %v2416, %v3184
        %v3569 = vadd.f32 %v2417, %v3185
        %v3570 = vadd.f32 %v2418, %v3186
        %v3571 = vadd.f32 %v2419, %v3187
        %v3572 = vadd.f32 %v2420, %v3188
        %v3573 = vadd.f32 %v2421, %v3189
        %v3574 = vadd.f32 %v2422, %v3190
        %v3575 = vadd.f32 %v2423, %v3191
        %v3576 = vadd.f32 %v2424, %v3192
        %v3577 = vadd.f32 %v2425, %v3193
        %v3578 = vadd.f32 %v2426, %v3194
        %v3579 = vadd.f32 %v2427, %v3195
        %v3580 = vadd.f32 %v2428, %v3196
        %v3581 = vadd.f32 %v2429, %v3197
        %v3582 = vadd.f32 %v2430, %v3198
        %v3583 = vadd.f32 %v2431, %v3199
        %v3584 = vadd.f32 %v2432, %v3200
        %v3585 = vadd.f32 %v2433, %v3201
        %v3586 = vadd.f32 %v2434, %v3202
        %v3587 = vadd.f32 %v2435, %v3203
        %v3588 = vadd.f32 %v2436, %v3204
        %v3589 = vadd.f32 %v2437, %v3205
        %v3590 = vadd.f32 %v2438, %v3206
        %v3591 = vadd.f32 %v2439, %v3207
        %v3592 = vadd.f32 %v2440, %v3208
        %3593 = vst [vmem:[%s134] sm:$0xff] %v3209
        %3594 = vst [vmem:[%s134 + $0x8] sm:$0xff] %v3210
        %3595 = vst [vmem:[%s134 + $0x10] sm:$0xff] %v3211
        %3596 = vst [vmem:[%s134 + $0x18] sm:$0xff] %v3212
        %3597 = vst [vmem:[%s134 + $0x20] sm:$0xff] %v3213
        %3598 = vst [vmem:[%s134 + $0x28] sm:$0xff] %v3214
        %3599 = vst [vmem:[%s134 + $0x30] sm:$0xff] %v3215
        %3600 = vst [vmem:[%s134 + $0x38] sm:$0xff] %v3216
        %3601 = vst [vmem:[%s134 + $0x40] sm:$0xff] %v3217
        %3602 = vst [vmem:[%s134 + $0x48] sm:$0xff] %v3218
        %3603 = vst [vmem:[%s134 + $0x50] sm:$0xff] %v3219
        %3604 = vst [vmem:[%s134 + $0x58] sm:$0xff] %v3220
        %3605 = vst [vmem:[%s134 + $0x60] sm:$0xff] %v3221
        %3606 = vst [vmem:[%s134 + $0x68] sm:$0xff] %v3222
        %3607 = vst [vmem:[%s134 + $0x70] sm:$0xff] %v3223
        %3608 = vst [vmem:[%s134 + $0x78] sm:$0xff] %v3224
        %3609 = vst [vmem:[%s134 + $0x80] sm:$0xff] %v3225
        %3610 = vst [vmem:[%s134 + $0x88] sm:$0xff] %v3226
        %3611 = vst [vmem:[%s134 + $0x90] sm:$0xff] %v3227
        %3612 = vst [vmem:[%s134 + $0x98] sm:$0xff] %v3228
        %3613 = vst [vmem:[%s134 + $0xa0] sm:$0xff] %v3229
        %3614 = vst [vmem:[%s134 + $0xa8] sm:$0xff] %v3230
        %3615 = vst [vmem:[%s134 + $0xb0] sm:$0xff] %v3231
        %3616 = vst [vmem:[%s134 + $0xb8] sm:$0xff] %v3232
        %3617 = vst [vmem:[%s134 + $0xc0] sm:$0xff] %v3233
        %3618 = vst [vmem:[%s134 + $0xc8] sm:$0xff] %v3234
        %3619 = vst [vmem:[%s134 + $0xd0] sm:$0xff] %v3235
        %3620 = vst [vmem:[%s134 + $0xd8] sm:$0xff] %v3236
        %3621 = vst [vmem:[%s134 + $0xe0] sm:$0xff] %v3237
        %3622 = vst [vmem:[%s134 + $0xe8] sm:$0xff] %v3238
        %3623 = vst [vmem:[%s134 + $0xf0] sm:$0xff] %v3239
        %3624 = vst [vmem:[%s134 + $0xf8] sm:$0xff] %v3240
        %3625 = vst [vmem:[%s134 + $0x100] sm:$0xff] %v3241
        %3626 = vst [vmem:[%s134 + $0x108] sm:$0xff] %v3242
        %3627 = vst [vmem:[%s134 + $0x110] sm:$0xff] %v3243
        %3628 = vst [vmem:[%s134 + $0x118] sm:$0xff] %v3244
        %3629 = vst [vmem:[%s134 + $0x120] sm:$0xff] %v3245
        %3630 = vst [vmem:[%s134 + $0x128] sm:$0xff] %v3246
        %3631 = vst [vmem:[%s134 + $0x130] sm:$0xff] %v3247
        %3632 = vst [vmem:[%s134 + $0x138] sm:$0xff] %v3248
        %3633 = vst [vmem:[%s134 + $0x140] sm:$0xff] %v3249
        %3634 = vst [vmem:[%s134 + $0x148] sm:$0xff] %v3250
        %3635 = vst [vmem:[%s134 + $0x150] sm:$0xff] %v3251
        %3636 = vst [vmem:[%s134 + $0x158] sm:$0xff] %v3252
        %3637 = vst [vmem:[%s134 + $0x160] sm:$0xff] %v3253
        %3638 = vst [vmem:[%s134 + $0x168] sm:$0xff] %v3254
        %3639 = vst [vmem:[%s134 + $0x170] sm:$0xff] %v3255
        %3640 = vst [vmem:[%s134 + $0x178] sm:$0xff] %v3256
        %3641 = vst [vmem:[%s134 + $0x180] sm:$0xff] %v3257
        %3642 = vst [vmem:[%s134 + $0x188] sm:$0xff] %v3258
        %3643 = vst [vmem:[%s134 + $0x190] sm:$0xff] %v3259
        %3644 = vst [vmem:[%s134 + $0x198] sm:$0xff] %v3260
        %3645 = vst [vmem:[%s134 + $0x1a0] sm:$0xff] %v3261
        %3646 = vst [vmem:[%s134 + $0x1a8] sm:$0xff] %v3262
        %3647 = vst [vmem:[%s134 + $0x1b0] sm:$0xff] %v3263
        %3648 = vst [vmem:[%s134 + $0x1b8] sm:$0xff] %v3264
        %3649 = vst [vmem:[%s134 + $0x1c0] sm:$0xff] %v3265
        %3650 = vst [vmem:[%s134 + $0x1c8] sm:$0xff] %v3266
        %3651 = vst [vmem:[%s134 + $0x1d0] sm:$0xff] %v3267
        %3652 = vst [vmem:[%s134 + $0x1d8] sm:$0xff] %v3268
        %3653 = vst [vmem:[%s134 + $0x1e0] sm:$0xff] %v3269
        %3654 = vst [vmem:[%s134 + $0x1e8] sm:$0xff] %v3270
        %3655 = vst [vmem:[%s134 + $0x1f0] sm:$0xff] %v3271
        %3656 = vst [vmem:[%s134 + $0x1f8] sm:$0xff] %v3272
        %3657 = vst [vmem:[%s134 + $0x200] sm:$0xff] %v3273
        %3658 = vst [vmem:[%s134 + $0x208] sm:$0xff] %v3274
        %3659 = vst [vmem:[%s134 + $0x210] sm:$0xff] %v3275
        %3660 = vst [vmem:[%s134 + $0x218] sm:$0xff] %v3276
        %3661 = vst [vmem:[%s134 + $0x220] sm:$0xff] %v3277
        %3662 = vst [vmem:[%s134 + $0x228] sm:$0xff] %v3278
        %3663 = vst [vmem:[%s134 + $0x230] sm:$0xff] %v3279
        %3664 = vst [vmem:[%s134 + $0x238] sm:$0xff] %v3280
        %3665 = vst [vmem:[%s134 + $0x240] sm:$0xff] %v3281
        %3666 = vst [vmem:[%s134 + $0x248] sm:$0xff] %v3282
        %3667 = vst [vmem:[%s134 + $0x250] sm:$0xff] %v3283
        %3668 = vst [vmem:[%s134 + $0x258] sm:$0xff] %v3284
        %3669 = vst [vmem:[%s134 + $0x260] sm:$0xff] %v3285
        %3670 = vst [vmem:[%s134 + $0x268] sm:$0xff] %v3286
        %3671 = vst [vmem:[%s134 + $0x270] sm:$0xff] %v3287
        %3672 = vst [vmem:[%s134 + $0x278] sm:$0xff] %v3288
        %3673 = vst [vmem:[%s134 + $0x280] sm:$0xff] %v3289
        %3674 = vst [vmem:[%s134 + $0x288] sm:$0xff] %v3290
        %3675 = vst [vmem:[%s134 + $0x290] sm:$0xff] %v3291
        %3676 = vst [vmem:[%s134 + $0x298] sm:$0xff] %v3292
        %3677 = vst [vmem:[%s134 + $0x2a0] sm:$0xff] %v3293
        %3678 = vst [vmem:[%s134 + $0x2a8] sm:$0xff] %v3294
        %3679 = vst [vmem:[%s134 + $0x2b0] sm:$0xff] %v3295
        %3680 = vst [vmem:[%s134 + $0x2b8] sm:$0xff] %v3296
        %3681 = vst [vmem:[%s134 + $0x2c0] sm:$0xff] %v3297
        %3682 = vst [vmem:[%s134 + $0x2c8] sm:$0xff] %v3298
        %3683 = vst [vmem:[%s134 + $0x2d0] sm:$0xff] %v3299
        %3684 = vst [vmem:[%s134 + $0x2d8] sm:$0xff] %v3300
        %3685 = vst [vmem:[%s134 + $0x2e0] sm:$0xff] %v3301
        %3686 = vst [vmem:[%s134 + $0x2e8] sm:$0xff] %v3302
        %3687 = vst [vmem:[%s134 + $0x2f0] sm:$0xff] %v3303
        %3688 = vst [vmem:[%s134 + $0x2f8] sm:$0xff] %v3304
        %3689 = vst [vmem:[%s134 + $0x300] sm:$0xff] %v3305
        %3690 = vst [vmem:[%s134 + $0x308] sm:$0xff] %v3306
        %3691 = vst [vmem:[%s134 + $0x310] sm:$0xff] %v3307
        %3692 = vst [vmem:[%s134 + $0x318] sm:$0xff] %v3308
        %3693 = vst [vmem:[%s134 + $0x320] sm:$0xff] %v3309
        %3694 = vst [vmem:[%s134 + $0x328] sm:$0xff] %v3310
        %3695 = vst [vmem:[%s134 + $0x330] sm:$0xff] %v3311
        %3696 = vst [vmem:[%s134 + $0x338] sm:$0xff] %v3312
        %3697 = vst [vmem:[%s134 + $0x340] sm:$0xff] %v3313
        %3698 = vst [vmem:[%s134 + $0x348] sm:$0xff] %v3314
        %3699 = vst [vmem:[%s134 + $0x350] sm:$0xff] %v3315
        %3700 = vst [vmem:[%s134 + $0x358] sm:$0xff] %v3316
        %3701 = vst [vmem:[%s134 + $0x360] sm:$0xff] %v3317
        %3702 = vst [vmem:[%s134 + $0x368] sm:$0xff] %v3318
        %3703 = vst [vmem:[%s134 + $0x370] sm:$0xff] %v3319
        %3704 = vst [vmem:[%s134 + $0x378] sm:$0xff] %v3320
        %3705 = vst [vmem:[%s134 + $0x380] sm:$0xff] %v3321
        %3706 = vst [vmem:[%s134 + $0x388] sm:$0xff] %v3322
        %3707 = vst [vmem:[%s134 + $0x390] sm:$0xff] %v3323
        %3708 = vst [vmem:[%s134 + $0x398] sm:$0xff] %v3324
        %3709 = vst [vmem:[%s134 + $0x3a0] sm:$0xff] %v3325
        %3710 = vst [vmem:[%s134 + $0x3a8] sm:$0xff] %v3326
        %3711 = vst [vmem:[%s134 + $0x3b0] sm:$0xff] %v3327
        %3712 = vst [vmem:[%s134 + $0x3b8] sm:$0xff] %v3328
        %3713 = vst [vmem:[%s134 + $0x3c0] sm:$0xff] %v3329
        %3714 = vst [vmem:[%s134 + $0x3c8] sm:$0xff] %v3330
        %3715 = vst [vmem:[%s134 + $0x3d0] sm:$0xff] %v3331
        %3716 = vst [vmem:[%s134 + $0x3d8] sm:$0xff] %v3332
        %3717 = vst [vmem:[%s134 + $0x3e0] sm:$0xff] %v3333
        %3718 = vst [vmem:[%s134 + $0x3e8] sm:$0xff] %v3334
        %3719 = vst [vmem:[%s134 + $0x3f0] sm:$0xff] %v3335
        %3720 = vst [vmem:[%s134 + $0x3f8] sm:$0xff] %v3336
        %3721 = vst [vmem:[%s134 + $0x400] sm:$0xff] %v3337
        %3722 = vst [vmem:[%s134 + $0x408] sm:$0xff] %v3338
        %3723 = vst [vmem:[%s134 + $0x410] sm:$0xff] %v3339
        %3724 = vst [vmem:[%s134 + $0x418] sm:$0xff] %v3340
        %3725 = vst [vmem:[%s134 + $0x420] sm:$0xff] %v3341
        %3726 = vst [vmem:[%s134 + $0x428] sm:$0xff] %v3342
        %3727 = vst [vmem:[%s134 + $0x430] sm:$0xff] %v3343
        %3728 = vst [vmem:[%s134 + $0x438] sm:$0xff] %v3344
        %3729 = vst [vmem:[%s134 + $0x440] sm:$0xff] %v3345
        %3730 = vst [vmem:[%s134 + $0x448] sm:$0xff] %v3346
        %3731 = vst [vmem:[%s134 + $0x450] sm:$0xff] %v3347
        %3732 = vst [vmem:[%s134 + $0x458] sm:$0xff] %v3348
        %3733 = vst [vmem:[%s134 + $0x460] sm:$0xff] %v3349
        %3734 = vst [vmem:[%s134 + $0x468] sm:$0xff] %v3350
        %3735 = vst [vmem:[%s134 + $0x470] sm:$0xff] %v3351
        %3736 = vst [vmem:[%s134 + $0x478] sm:$0xff] %v3352
        %3737 = vst [vmem:[%s134 + $0x480] sm:$0xff] %v3353
        %3738 = vst [vmem:[%s134 + $0x488] sm:$0xff] %v3354
        %3739 = vst [vmem:[%s134 + $0x490] sm:$0xff] %v3355
        %3740 = vst [vmem:[%s134 + $0x498] sm:$0xff] %v3356
        %3741 = vst [vmem:[%s134 + $0x4a0] sm:$0xff] %v3357
        %3742 = vst [vmem:[%s134 + $0x4a8] sm:$0xff] %v3358
        %3743 = vst [vmem:[%s134 + $0x4b0] sm:$0xff] %v3359
        %3744 = vst [vmem:[%s134 + $0x4b8] sm:$0xff] %v3360
        %3745 = vst [vmem:[%s134 + $0x4c0] sm:$0xff] %v3361
        %3746 = vst [vmem:[%s134 + $0x4c8] sm:$0xff] %v3362
        %3747 = vst [vmem:[%s134 + $0x4d0] sm:$0xff] %v3363
        %3748 = vst [vmem:[%s134 + $0x4d8] sm:$0xff] %v3364
        %3749 = vst [vmem:[%s134 + $0x4e0] sm:$0xff] %v3365
        %3750 = vst [vmem:[%s134 + $0x4e8] sm:$0xff] %v3366
        %3751 = vst [vmem:[%s134 + $0x4f0] sm:$0xff] %v3367
        %3752 = vst [vmem:[%s134 + $0x4f8] sm:$0xff] %v3368
        %3753 = vst [vmem:[%s134 + $0x500] sm:$0xff] %v3369
        %3754 = vst [vmem:[%s134 + $0x508] sm:$0xff] %v3370
        %3755 = vst [vmem:[%s134 + $0x510] sm:$0xff] %v3371
        %3756 = vst [vmem:[%s134 + $0x518] sm:$0xff] %v3372
        %3757 = vst [vmem:[%s134 + $0x520] sm:$0xff] %v3373
        %3758 = vst [vmem:[%s134 + $0x528] sm:$0xff] %v3374
        %3759 = vst [vmem:[%s134 + $0x530] sm:$0xff] %v3375
        %3760 = vst [vmem:[%s134 + $0x538] sm:$0xff] %v3376
        %3761 = vst [vmem:[%s134 + $0x540] sm:$0xff] %v3377
        %3762 = vst [vmem:[%s134 + $0x548] sm:$0xff] %v3378
        %3763 = vst [vmem:[%s134 + $0x550] sm:$0xff] %v3379
        %3764 = vst [vmem:[%s134 + $0x558] sm:$0xff] %v3380
        %3765 = vst [vmem:[%s134 + $0x560] sm:$0xff] %v3381
        %3766 = vst [vmem:[%s134 + $0x568] sm:$0xff] %v3382
        %3767 = vst [vmem:[%s134 + $0x570] sm:$0xff] %v3383
        %3768 = vst [vmem:[%s134 + $0x578] sm:$0xff] %v3384
        %3769 = vst [vmem:[%s134 + $0x580] sm:$0xff] %v3385
        %3770 = vst [vmem:[%s134 + $0x588] sm:$0xff] %v3386
        %3771 = vst [vmem:[%s134 + $0x590] sm:$0xff] %v3387
        %3772 = vst [vmem:[%s134 + $0x598] sm:$0xff] %v3388
        %3773 = vst [vmem:[%s134 + $0x5a0] sm:$0xff] %v3389
        %3774 = vst [vmem:[%s134 + $0x5a8] sm:$0xff] %v3390
        %3775 = vst [vmem:[%s134 + $0x5b0] sm:$0xff] %v3391
        %3776 = vst [vmem:[%s134 + $0x5b8] sm:$0xff] %v3392
        %3777 = vst [vmem:[%s134 + $0x5c0] sm:$0xff] %v3393
        %3778 = vst [vmem:[%s134 + $0x5c8] sm:$0xff] %v3394
        %3779 = vst [vmem:[%s134 + $0x5d0] sm:$0xff] %v3395
        %3780 = vst [vmem:[%s134 + $0x5d8] sm:$0xff] %v3396
        %3781 = vst [vmem:[%s134 + $0x5e0] sm:$0xff] %v3397
        %3782 = vst [vmem:[%s134 + $0x5e8] sm:$0xff] %v3398
        %3783 = vst [vmem:[%s134 + $0x5f0] sm:$0xff] %v3399
        %3784 = vst [vmem:[%s134 + $0x5f8] sm:$0xff] %v3400
        %3785 = vst [vmem:[%s134 + $0x600] sm:$0xff] %v3401
        %3786 = vst [vmem:[%s134 + $0x608] sm:$0xff] %v3402
        %3787 = vst [vmem:[%s134 + $0x610] sm:$0xff] %v3403
        %3788 = vst [vmem:[%s134 + $0x618] sm:$0xff] %v3404
        %3789 = vst [vmem:[%s134 + $0x620] sm:$0xff] %v3405
        %3790 = vst [vmem:[%s134 + $0x628] sm:$0xff] %v3406
        %3791 = vst [vmem:[%s134 + $0x630] sm:$0xff] %v3407
        %3792 = vst [vmem:[%s134 + $0x638] sm:$0xff] %v3408
        %3793 = vst [vmem:[%s134 + $0x640] sm:$0xff] %v3409
        %3794 = vst [vmem:[%s134 + $0x648] sm:$0xff] %v3410
        %3795 = vst [vmem:[%s134 + $0x650] sm:$0xff] %v3411
        %3796 = vst [vmem:[%s134 + $0x658] sm:$0xff] %v3412
        %3797 = vst [vmem:[%s134 + $0x660] sm:$0xff] %v3413
        %3798 = vst [vmem:[%s134 + $0x668] sm:$0xff] %v3414
        %3799 = vst [vmem:[%s134 + $0x670] sm:$0xff] %v3415
        %3800 = vst [vmem:[%s134 + $0x678] sm:$0xff] %v3416
        %3801 = vst [vmem:[%s134 + $0x680] sm:$0xff] %v3417
        %3802 = vst [vmem:[%s134 + $0x688] sm:$0xff] %v3418
        %3803 = vst [vmem:[%s134 + $0x690] sm:$0xff] %v3419
        %3804 = vst [vmem:[%s134 + $0x698] sm:$0xff] %v3420
        %3805 = vst [vmem:[%s134 + $0x6a0] sm:$0xff] %v3421
        %3806 = vst [vmem:[%s134 + $0x6a8] sm:$0xff] %v3422
        %3807 = vst [vmem:[%s134 + $0x6b0] sm:$0xff] %v3423
        %3808 = vst [vmem:[%s134 + $0x6b8] sm:$0xff] %v3424
        %3809 = vst [vmem:[%s134 + $0x6c0] sm:$0xff] %v3425
        %3810 = vst [vmem:[%s134 + $0x6c8] sm:$0xff] %v3426
        %3811 = vst [vmem:[%s134 + $0x6d0] sm:$0xff] %v3427
        %3812 = vst [vmem:[%s134 + $0x6d8] sm:$0xff] %v3428
        %3813 = vst [vmem:[%s134 + $0x6e0] sm:$0xff] %v3429
        %3814 = vst [vmem:[%s134 + $0x6e8] sm:$0xff] %v3430
        %3815 = vst [vmem:[%s134 + $0x6f0] sm:$0xff] %v3431
        %3816 = vst [vmem:[%s134 + $0x6f8] sm:$0xff] %v3432
        %3817 = vst [vmem:[%s134 + $0x700] sm:$0xff] %v3433
        %3818 = vst [vmem:[%s134 + $0x708] sm:$0xff] %v3434
        %3819 = vst [vmem:[%s134 + $0x710] sm:$0xff] %v3435
        %3820 = vst [vmem:[%s134 + $0x718] sm:$0xff] %v3436
        %3821 = vst [vmem:[%s134 + $0x720] sm:$0xff] %v3437
        %3822 = vst [vmem:[%s134 + $0x728] sm:$0xff] %v3438
        %3823 = vst [vmem:[%s134 + $0x730] sm:$0xff] %v3439
        %3824 = vst [vmem:[%s134 + $0x738] sm:$0xff] %v3440
        %3825 = vst [vmem:[%s134 + $0x740] sm:$0xff] %v3441
        %3826 = vst [vmem:[%s134 + $0x748] sm:$0xff] %v3442
        %3827 = vst [vmem:[%s134 + $0x750] sm:$0xff] %v3443
        %3828 = vst [vmem:[%s134 + $0x758] sm:$0xff] %v3444
        %3829 = vst [vmem:[%s134 + $0x760] sm:$0xff] %v3445
        %3830 = vst [vmem:[%s134 + $0x768] sm:$0xff] %v3446
        %3831 = vst [vmem:[%s134 + $0x770] sm:$0xff] %v3447
        %3832 = vst [vmem:[%s134 + $0x778] sm:$0xff] %v3448
        %3833 = vst [vmem:[%s134 + $0x780] sm:$0xff] %v3449
        %3834 = vst [vmem:[%s134 + $0x788] sm:$0xff] %v3450
        %3835 = vst [vmem:[%s134 + $0x790] sm:$0xff] %v3451
        %3836 = vst [vmem:[%s134 + $0x798] sm:$0xff] %v3452
        %3837 = vst [vmem:[%s134 + $0x7a0] sm:$0xff] %v3453
        %3838 = vst [vmem:[%s134 + $0x7a8] sm:$0xff] %v3454
        %3839 = vst [vmem:[%s134 + $0x7b0] sm:$0xff] %v3455
        %3840 = vst [vmem:[%s134 + $0x7b8] sm:$0xff] %v3456
        %3841 = vst [vmem:[%s134 + $0x7c0] sm:$0xff] %v3457
        %3842 = vst [vmem:[%s134 + $0x7c8] sm:$0xff] %v3458
        %3843 = vst [vmem:[%s134 + $0x7d0] sm:$0xff] %v3459
        %3844 = vst [vmem:[%s134 + $0x7d8] sm:$0xff] %v3460
        %3845 = vst [vmem:[%s134 + $0x7e0] sm:$0xff] %v3461
        %3846 = vst [vmem:[%s134 + $0x7e8] sm:$0xff] %v3462
        %3847 = vst [vmem:[%s134 + $0x7f0] sm:$0xff] %v3463
        %3848 = vst [vmem:[%s134 + $0x7f8] sm:$0xff] %v3464
        %3849 = vst [vmem:[%s134 + $0x800] sm:$0xff] %v3465
        %3850 = vst [vmem:[%s134 + $0x808] sm:$0xff] %v3466
        %3851 = vst [vmem:[%s134 + $0x810] sm:$0xff] %v3467
        %3852 = vst [vmem:[%s134 + $0x818] sm:$0xff] %v3468
        %3853 = vst [vmem:[%s134 + $0x820] sm:$0xff] %v3469
        %3854 = vst [vmem:[%s134 + $0x828] sm:$0xff] %v3470
        %3855 = vst [vmem:[%s134 + $0x830] sm:$0xff] %v3471
        %3856 = vst [vmem:[%s134 + $0x838] sm:$0xff] %v3472
        %3857 = vst [vmem:[%s134 + $0x840] sm:$0xff] %v3473
        %3858 = vst [vmem:[%s134 + $0x848] sm:$0xff] %v3474
        %3859 = vst [vmem:[%s134 + $0x850] sm:$0xff] %v3475
        %3860 = vst [vmem:[%s134 + $0x858] sm:$0xff] %v3476
        %3861 = vst [vmem:[%s134 + $0x860] sm:$0xff] %v3477
        %3862 = vst [vmem:[%s134 + $0x868] sm:$0xff] %v3478
        %3863 = vst [vmem:[%s134 + $0x870] sm:$0xff] %v3479
        %3864 = vst [vmem:[%s134 + $0x878] sm:$0xff] %v3480
        %3865 = vst [vmem:[%s134 + $0x880] sm:$0xff] %v3481
        %3866 = vst [vmem:[%s134 + $0x888] sm:$0xff] %v3482
        %3867 = vst [vmem:[%s134 + $0x890] sm:$0xff] %v3483
        %3868 = vst [vmem:[%s134 + $0x898] sm:$0xff] %v3484
        %3869 = vst [vmem:[%s134 + $0x8a0] sm:$0xff] %v3485
        %3870 = vst [vmem:[%s134 + $0x8a8] sm:$0xff] %v3486
        %3871 = vst [vmem:[%s134 + $0x8b0] sm:$0xff] %v3487
        %3872 = vst [vmem:[%s134 + $0x8b8] sm:$0xff] %v3488
        %3873 = vst [vmem:[%s134 + $0x8c0] sm:$0xff] %v3489
        %3874 = vst [vmem:[%s134 + $0x8c8] sm:$0xff] %v3490
        %3875 = vst [vmem:[%s134 + $0x8d0] sm:$0xff] %v3491
        %3876 = vst [vmem:[%s134 + $0x8d8] sm:$0xff] %v3492
        %3877 = vst [vmem:[%s134 + $0x8e0] sm:$0xff] %v3493
        %3878 = vst [vmem:[%s134 + $0x8e8] sm:$0xff] %v3494
        %3879 = vst [vmem:[%s134 + $0x8f0] sm:$0xff] %v3495
        %3880 = vst [vmem:[%s134 + $0x8f8] sm:$0xff] %v3496
        %3881 = vst [vmem:[%s134 + $0x900] sm:$0xff] %v3497
        %3882 = vst [vmem:[%s134 + $0x908] sm:$0xff] %v3498
        %3883 = vst [vmem:[%s134 + $0x910] sm:$0xff] %v3499
        %3884 = vst [vmem:[%s134 + $0x918] sm:$0xff] %v3500
        %3885 = vst [vmem:[%s134 + $0x920] sm:$0xff] %v3501
        %3886 = vst [vmem:[%s134 + $0x928] sm:$0xff] %v3502
        %3887 = vst [vmem:[%s134 + $0x930] sm:$0xff] %v3503
        %3888 = vst [vmem:[%s134 + $0x938] sm:$0xff] %v3504
        %3889 = vst [vmem:[%s134 + $0x940] sm:$0xff] %v3505
        %3890 = vst [vmem:[%s134 + $0x948] sm:$0xff] %v3506
        %3891 = vst [vmem:[%s134 + $0x950] sm:$0xff] %v3507
        %3892 = vst [vmem:[%s134 + $0x958] sm:$0xff] %v3508
        %3893 = vst [vmem:[%s134 + $0x960] sm:$0xff] %v3509
        %3894 = vst [vmem:[%s134 + $0x968] sm:$0xff] %v3510
        %3895 = vst [vmem:[%s134 + $0x970] sm:$0xff] %v3511
        %3896 = vst [vmem:[%s134 + $0x978] sm:$0xff] %v3512
        %3897 = vst [vmem:[%s134 + $0x980] sm:$0xff] %v3513
        %3898 = vst [vmem:[%s134 + $0x988] sm:$0xff] %v3514
        %3899 = vst [vmem:[%s134 + $0x990] sm:$0xff] %v3515
        %3900 = vst [vmem:[%s134 + $0x998] sm:$0xff] %v3516
        %3901 = vst [vmem:[%s134 + $0x9a0] sm:$0xff] %v3517
        %3902 = vst [vmem:[%s134 + $0x9a8] sm:$0xff] %v3518
        %3903 = vst [vmem:[%s134 + $0x9b0] sm:$0xff] %v3519
        %3904 = vst [vmem:[%s134 + $0x9b8] sm:$0xff] %v3520
        %3905 = vst [vmem:[%s134 + $0x9c0] sm:$0xff] %v3521
        %3906 = vst [vmem:[%s134 + $0x9c8] sm:$0xff] %v3522
        %3907 = vst [vmem:[%s134 + $0x9d0] sm:$0xff] %v3523
        %3908 = vst [vmem:[%s134 + $0x9d8] sm:$0xff] %v3524
        %3909 = vst [vmem:[%s134 + $0x9e0] sm:$0xff] %v3525
        %3910 = vst [vmem:[%s134 + $0x9e8] sm:$0xff] %v3526
        %3911 = vst [vmem:[%s134 + $0x9f0] sm:$0xff] %v3527
        %3912 = vst [vmem:[%s134 + $0x9f8] sm:$0xff] %v3528
        %3913 = vst [vmem:[%s134 + $0xa00] sm:$0xff] %v3529
        %3914 = vst [vmem:[%s134 + $0xa08] sm:$0xff] %v3530
        %3915 = vst [vmem:[%s134 + $0xa10] sm:$0xff] %v3531
        %3916 = vst [vmem:[%s134 + $0xa18] sm:$0xff] %v3532
        %3917 = vst [vmem:[%s134 + $0xa20] sm:$0xff] %v3533
        %3918 = vst [vmem:[%s134 + $0xa28] sm:$0xff] %v3534
        %3919 = vst [vmem:[%s134 + $0xa30] sm:$0xff] %v3535
        %3920 = vst [vmem:[%s134 + $0xa38] sm:$0xff] %v3536
        %3921 = vst [vmem:[%s134 + $0xa40] sm:$0xff] %v3537
        %3922 = vst [vmem:[%s134 + $0xa48] sm:$0xff] %v3538
        %3923 = vst [vmem:[%s134 + $0xa50] sm:$0xff] %v3539
        %3924 = vst [vmem:[%s134 + $0xa58] sm:$0xff] %v3540
        %3925 = vst [vmem:[%s134 + $0xa60] sm:$0xff] %v3541
        %3926 = vst [vmem:[%s134 + $0xa68] sm:$0xff] %v3542
        %3927 = vst [vmem:[%s134 + $0xa70] sm:$0xff] %v3543
        %3928 = vst [vmem:[%s134 + $0xa78] sm:$0xff] %v3544
        %3929 = vst [vmem:[%s134 + $0xa80] sm:$0xff] %v3545
        %3930 = vst [vmem:[%s134 + $0xa88] sm:$0xff] %v3546
        %3931 = vst [vmem:[%s134 + $0xa90] sm:$0xff] %v3547
        %3932 = vst [vmem:[%s134 + $0xa98] sm:$0xff] %v3548
        %3933 = vst [vmem:[%s134 + $0xaa0] sm:$0xff] %v3549
        %3934 = vst [vmem:[%s134 + $0xaa8] sm:$0xff] %v3550
        %3935 = vst [vmem:[%s134 + $0xab0] sm:$0xff] %v3551
        %3936 = vst [vmem:[%s134 + $0xab8] sm:$0xff] %v3552
        %3937 = vst [vmem:[%s134 + $0xac0] sm:$0xff] %v3553
        %3938 = vst [vmem:[%s134 + $0xac8] sm:$0xff] %v3554
        %3939 = vst [vmem:[%s134 + $0xad0] sm:$0xff] %v3555
        %3940 = vst [vmem:[%s134 + $0xad8] sm:$0xff] %v3556
        %3941 = vst [vmem:[%s134 + $0xae0] sm:$0xff] %v3557
        %3942 = vst [vmem:[%s134 + $0xae8] sm:$0xff] %v3558
        %3943 = vst [vmem:[%s134 + $0xaf0] sm:$0xff] %v3559
        %3944 = vst [vmem:[%s134 + $0xaf8] sm:$0xff] %v3560
        %3945 = vst [vmem:[%s134 + $0xb00] sm:$0xff] %v3561
        %3946 = vst [vmem:[%s134 + $0xb08] sm:$0xff] %v3562
        %3947 = vst [vmem:[%s134 + $0xb10] sm:$0xff] %v3563
        %3948 = vst [vmem:[%s134 + $0xb18] sm:$0xff] %v3564
        %3949 = vst [vmem:[%s134 + $0xb20] sm:$0xff] %v3565
        %3950 = vst [vmem:[%s134 + $0xb28] sm:$0xff] %v3566
        %3951 = vst [vmem:[%s134 + $0xb30] sm:$0xff] %v3567
        %3952 = vst [vmem:[%s134 + $0xb38] sm:$0xff] %v3568
        %3953 = vst [vmem:[%s134 + $0xb40] sm:$0xff] %v3569
        %3954 = vst [vmem:[%s134 + $0xb48] sm:$0xff] %v3570
        %3955 = vst [vmem:[%s134 + $0xb50] sm:$0xff] %v3571
        %3956 = vst [vmem:[%s134 + $0xb58] sm:$0xff] %v3572
        %3957 = vst [vmem:[%s134 + $0xb60] sm:$0xff] %v3573
        %3958 = vst [vmem:[%s134 + $0xb68] sm:$0xff] %v3574
        %3959 = vst [vmem:[%s134 + $0xb70] sm:$0xff] %v3575
        %3960 = vst [vmem:[%s134 + $0xb78] sm:$0xff] %v3576
        %3961 = vst [vmem:[%s134 + $0xb80] sm:$0xff] %v3577
        %3962 = vst [vmem:[%s134 + $0xb88] sm:$0xff] %v3578
        %3963 = vst [vmem:[%s134 + $0xb90] sm:$0xff] %v3579
        %3964 = vst [vmem:[%s134 + $0xb98] sm:$0xff] %v3580
        %3965 = vst [vmem:[%s134 + $0xba0] sm:$0xff] %v3581
        %3966 = vst [vmem:[%s134 + $0xba8] sm:$0xff] %v3582
        %3967 = vst [vmem:[%s134 + $0xbb0] sm:$0xff] %v3583
        %3968 = vst [vmem:[%s134 + $0xbb8] sm:$0xff] %v3584
        %3969 = vst [vmem:[%s134 + $0xbc0] sm:$0xff] %v3585
        %3970 = vst [vmem:[%s134 + $0xbc8] sm:$0xff] %v3586
        %3971 = vst [vmem:[%s134 + $0xbd0] sm:$0xff] %v3587
        %3972 = vst [vmem:[%s134 + $0xbd8] sm:$0xff] %v3588
        %3973 = vst [vmem:[%s134 + $0xbe0] sm:$0xff] %v3589
        %3974 = vst [vmem:[%s134 + $0xbe8] sm:$0xff] %v3590
        %3975 = vst [vmem:[%s134 + $0xbf0] sm:$0xff] %v3591
        %3976 = vst [vmem:[%s134 + $0xbf8] sm:$0xff] %v3592
        %s3977 = sand.u32 %s52, 1
        %s3978 = scalar_lea.sflag [#allocation4], %s3977
        %s3979 = sand.u32 %s52, 1
        %s3980 = smul.addr %s3979, 3072
        %s3981 = scalar_lea.vmem [#allocation5], %s3980
        // Predicated region
        $region29: #{tpu_custom_call.1} parent=23 // pred_check
          %p3982 = pneg %p62
        $region30: #{tpu_custom_call.1} parent=23 // pred_check_branch
          %3984 = sbr.rel (%p3982) target = $region32
        $region31: #{tpu_custom_call.1} parent=23 // pred_region
          %s3985 = smul.u32 384, %s18
          %s3987 = ssub.s32 49152, 49152
          %3988 = vsyncadd %s3978, %s3987
          %s3989 = smul.addr %s3985, 128
          %s3990 = scalar_lea.hbm %s1, %s3989
          %s3991 = sshll.u32 %s3981, 4
          %s3992 = int_to_ptr.vmem [resolvable:$true] %s3991
          %3997 = dma.vmem_to_hbm [thread:$0]  %s3992, 49152, %s3990, %s3978, 128, 128, 8
        $region32: #{tpu_custom_call.1} parent=23 // pred_fallthru
          _
      $region24: #{tpu_custom_call.1} parent=5 // pred_fallthru
        _
      %p3998 = scmp.le.s32.totalorder 2, %s13
      // Predicated region
      $region33: #{tpu_custom_call.1} parent=5 // pred_check
        %p3999 = pneg %p3998
      $region34: #{tpu_custom_call.1} parent=5 // pred_check_branch
        %4001 = sbr.rel (%p3999) target = $region36
      $region35: #{tpu_custom_call.1} parent=5 // pred_region
        %s4002 = ssub.s32 %s13, 2
        // Predicated region
        $region37: #{tpu_custom_call.1} parent=35 // pred_check
          %p4003 = pneg %p68
        $region38: #{tpu_custom_call.1} parent=35 // pred_check_branch
          %4005 = sbr.rel (%p4003) target = $region40
        $region39: #{tpu_custom_call.1} parent=35 // pred_region
          %s4006 = sand.u32 %s53, 1
          %s4007 = scalar_lea.sflag [#allocation4], %s4006
          %s4008 = sand.u32 %s53, 1
          %s4009 = smul.addr %s4008, 3072
          %s4010 = scalar_lea.vmem [#allocation5], %s4009
          %4011 = dma.done %s4007, 49152
        $region40: #{tpu_custom_call.1} parent=35 // pred_fallthru
          _
      $region36: #{tpu_custom_call.1} parent=5 // pred_fallthru
        _
    $region6: #{tpu_custom_call.1} parent=1 // loop_footer
      %s17 = sadd.s32 1, %s13
    $region7: #{tpu_custom_call.1} parent=1 // loop_footer_branch
      %12 = sbr.rel target = $region3
    $region8: #{tpu_custom_call.1} parent=1 // loop_exit
      _
    %4012 = vsyncpa [#allocation3], 1
    %s4013 = scalar_lea.sflag [#allocation3], 1
    %4014 = vsyncpa %s4013, 1
    %4015 = vsyncpa [#allocation4], 1
    %s4016 = scalar_lea.sflag [#allocation4], 1
    %4017 = vsyncpa %s4016, 1

</llo_original>
